<compile_context>
chip_gen: v7x
topology: tpu7x:2x2x1
jax: 0.10.0
libtpu: 0.0.40
codegen_flags: <defaults>
</compile_context>

<pallas_src>
import jax
import jax.numpy as jnp
from jax.experimental import pallas as pl
from jax.experimental.pallas import tpu as pltpu


def _round_up(n, m):
    return ((n + m - 1) // m) * m


def _choose_time_tile(t, max_tile=512):
    """Pick an 8/128-aligned time tile that bounds padding waste."""
    tp8 = _round_up(t, 8)
    if tp8 <= max_tile:
        return tp8, tp8                      # single tile, minimal padding
    best = None
    for tt in (512, 384, 256, 128):
        if tt > max_tile:
            continue
        tp = _round_up(t, tt)
        if best is None:
            best = (tt, tp)
        if (tp - t) / tp <= 0.15:
            return tt, tp
    if best is not None:
        tt = 128
        return tt, _round_up(t, tt)
    tt = min(128, max_tile)
    return tt, _round_up(t, tt)


# ----------------------------------------------------------------------------
# Fused kernel: wavlm branch + spectrum branch + CAF + time-sums, one grid
# step per (batch, time-tile).
# ----------------------------------------------------------------------------
def _fused_kernel(tlen_ref, frames_ref, mel_ref,
                  wp_ref, wx_ref, bx_ref,
                  sp_ref, wy_ref, by_ref,
                  wr_ref, br_ref, g_ref,
                  wfeat_ref, sfeat_ref, fused_ref, rx_ref, ry_ref,
                  wsum_ref, ssum_ref, fsum_ref):
    ti = pl.program_id(1)
    tt = frames_ref.shape[1]
    t_true = tlen_ref[0]

    # --- wavlm branch: frames -> stand-in projection -> fc_x -> ReLU --------
    x = frames_ref[0].astype(jnp.bfloat16)                     # (tt, frame)
    h = jnp.dot(x, wp_ref[...], preferred_element_type=jnp.float32)
    wfeat = jnp.dot(h.astype(jnp.bfloat16), wx_ref[...],
                    preferred_element_type=jnp.float32)
    wfeat = jnp.maximum(wfeat + bx_ref[...], 0.0)               # (tt, D) f32

    # --- spectrum branch: contract the mel axis directly (no transpose in the
    #     wrapper), then fc_y -> ReLU -----------------------------------------
    m = mel_ref[0].astype(jnp.bfloat16)                         # (n_mels, tt)
    hs = jax.lax.dot_general(m, sp_ref[...],
                             dimension_numbers=(((0,), (0,)), ((), ())),
                             preferred_element_type=jnp.float32)  # (tt, D)
    sfeat = jnp.dot(hs.astype(jnp.bfloat16), wy_ref[...],
                    preferred_element_type=jnp.float32)
    sfeat = jnp.maximum(sfeat + by_ref[...], 0.0)

    # --- mask padded time rows so features / time-sums stay exact -----------
    row = ti * tt + jax.lax.broadcasted_iota(jnp.int32, (tt, 1), 0)
    valid = (row < t_true).astype(jnp.float32)
    wfeat = wfeat * valid
    sfeat = sfeat * valid

    # --- CAF stand-in: weight-shared cross reconstructions + gated blend ----
    # TODO(synk): FeatureFusionWithCRN_WS internals are not in the reference
    #             source; this keeps a weight-shared reconstruction + sigmoid
    #             gated blend as the stand-in.
    rx = jnp.dot(sfeat.astype(jnp.bfloat16), wr_ref[...],
                 preferred_element_type=jnp.float32) + br_ref[...]
    ry = jnp.dot(wfeat.astype(jnp.bfloat16), wr_ref[...],
                 preferred_element_type=jnp.float32) + br_ref[...]
    g = jax.nn.sigmoid(g_ref[...])                              # (1, D) f32
    fused = g * wfeat + (1.0 - g) * sfeat

    # --- bf16 stores of the large tensors ------------------------------------
    wfeat_ref[0] = wfeat.astype(jnp.bfloat16)
    sfeat_ref[0] = sfeat.astype(jnp.bfloat16)
    fused_ref[0] = fused.astype(jnp.bfloat16)
    rx_ref[0] = rx.astype(jnp.bfloat16)
    ry_ref[0] = ry.astype(jnp.bfloat16)

    # --- f32 time-sum accumulators (resident across the arbitrary time axis) -
    @pl.when(ti == 0)
    def _():
        wsum_ref[...] = jnp.zeros_like(wsum_ref)
        ssum_ref[...] = jnp.zeros_like(ssum_ref)
        fsum_ref[...] = jnp.zeros_like(fsum_ref)

    wsum_ref[0] += jnp.sum(wfeat, axis=0, keepdims=True)
    ssum_ref[0] += jnp.sum(sfeat, axis=0, keepdims=True)
    fsum_ref[0] += jnp.sum(fused, axis=0, keepdims=True)


def fused_forward(t_arr, frames, mel, params, tt):
    B, Tp, Din0 = frames.shape
    n_mels = mel.shape[1]
    Dmid = params["wavlm_proj"].shape[1]
    D = params["fc_x_w"].shape[1]
    nt = Tp // tt

    feat_shape = jax.ShapeDtypeStruct((B, Tp, D), jnp.bfloat16)
    sum_shape = jax.ShapeDtypeStruct((B, 1, D), jnp.float32)
    feat_spec = pl.BlockSpec((1, tt, D), lambda bi, ti: (bi, ti, 0))
    sum_spec = pl.BlockSpec((1, 1, D), lambda bi, ti: (bi, 0, 0))

    def rep(shape):
        return pl.BlockSpec(shape, lambda bi, ti: (0,) * len(shape))

    return pl.pallas_call(
        _fused_kernel,
        out_shape=(feat_shape,) * 5 + (sum_shape,) * 3,
        grid=(B, nt),
        in_specs=[
            pl.BlockSpec(memory_space=pltpu.MemorySpace.SMEM),       # t_true
            pl.BlockSpec((1, tt, Din0), lambda bi, ti: (bi, ti, 0)),  # frames
            pl.BlockSpec((1, n_mels, tt), lambda bi, ti: (bi, 0, ti)),  # mel
            rep((Din0, Dmid)),   # wavlm_proj
            rep((Dmid, D)),      # fc_x_w
            rep((1, D)),         # fc_x_b
            rep((n_mels, D)),    # spec_proj
            rep((D, D)),         # fc_y_w
            rep((1, D)),         # fc_y_b
            rep((D, D)),         # caf_wr
            rep((1, D)),         # caf_br
            rep((1, D)),         # caf_gate
        ],
        out_specs=(feat_spec,) * 5 + (sum_spec,) * 3,
        compiler_params=pltpu.CompilerParams(
            dimension_semantics=("parallel", "arbitrary")),
    )(t_arr, frames, mel,
      params["wavlm_proj"], params["fc_x_w"], params["fc_x_b"],
      params["spec_proj"], params["fc_y_w"], params["fc_y_b"],
      params["caf_wr"], params["caf_br"], params["caf_gate"])


# ----------------------------------------------------------------------------
# Classifier heads: mean -> Linear -> ReLU -> Linear, three heads in one call.
# ----------------------------------------------------------------------------
def _heads_kernel(invt_ref, sums_ref, w1_ref, b1_ref, w2_ref, b2_ref, o_ref):
    m = sums_ref[0] * invt_ref[0]                               # (B, D) mean
    h = jnp.dot(m.astype(jnp.bfloat16), w1_ref[0],
                preferred_element_type=jnp.float32) + b1_ref[0]
    h = jnp.maximum(h, 0.0)                                     # (B, H)
    lo = jnp.dot(h.astype(jnp.bfloat16), w2_ref[0],
                 preferred_element_type=jnp.float32) + b2_ref[0]
    o_ref[0] = lo                                               # (B, Cp)


def classifier_heads(inv_t, sums, w1, b1, w2, b2):
    K, B, D = sums.shape
    H = w1.shape[2]
    Cp = w2.shape[2]
    return pl.pallas_call(
        _heads_kernel,
        out_shape=jax.ShapeDtypeStruct((K, B, Cp), jnp.float32),
        grid=(K,),
        in_specs=[
            pl.BlockSpec(memory_space=pltpu.MemorySpace.SMEM),   # 1/T
            pl.BlockSpec((1, B, D), lambda k: (k, 0, 0)),
            pl.BlockSpec((1, D, H), lambda k: (k, 0, 0)),
            pl.BlockSpec((1, 1, H), lambda k: (k, 0, 0)),
            pl.BlockSpec((1, H, Cp), lambda k: (k, 0, 0)),
            pl.BlockSpec((1, 1, Cp), lambda k: (k, 0, 0)),
        ],
        out_specs=pl.BlockSpec((1, B, Cp), lambda k: (k, 0, 0)),
        compiler_params=pltpu.CompilerParams(
            dimension_semantics=("parallel",)),
    )(inv_t, sums, w1, b1, w2, b2)


# ----------------------------------------------------------------------------
# Parameters (deterministic, synthetic). Matmul weights stored in bf16,
# biases / gate in f32. Head output weights are lane-padded to 128 columns.
# ----------------------------------------------------------------------------
def init_params(key, feature_dim=768, hidden=256, num_classes=7,
                frame=160, n_mels=64, head_hidden=128):
    ks = jax.random.split(key, 10)
    s = 0.02

    def nrm(k, shape, dtype=jnp.bfloat16):
        return (s * jax.random.normal(k, shape)).astype(dtype)

    c_pad = _round_up(num_classes, 128)
    w2 = jnp.zeros((3, head_hidden, c_pad), jnp.float32)
    w2 = w2.at[:, :, :num_classes].set(
        s * jax.random.normal(ks[7], (3, head_hidden, num_classes)))

    return {
        # stand-in feature extractors (projection weights)
        "wavlm_proj": nrm(ks[0], (frame, feature_dim)),
        "spec_proj": nrm(ks[1], (n_mels, hidden)),
        # fc_x / fc_y
        "fc_x_w": nrm(ks[2], (feature_dim, hidden)),
        "fc_x_b": jnp.zeros((1, hidden), jnp.float32),
        "fc_y_w": nrm(ks[3], (hidden, hidden)),
        "fc_y_b": jnp.zeros((1, hidden), jnp.float32),
        # CAF stand-in
        "caf_wr": nrm(ks[4], (hidden, hidden)),
        "caf_br": jnp.zeros((1, hidden), jnp.float32),
        "caf_gate": nrm(ks[5], (1, hidden), jnp.float32),
        # three classifier heads, stacked
        "cls_w1": nrm(ks[6], (3, hidden, head_hidden)),
        "cls_b1": jnp.zeros((3, 1, head_hidden), jnp.float32),
        "cls_w2": w2.astype(jnp.bfloat16),
        "cls_b2": jnp.zeros((3, 1, c_pad), jnp.float32),
    }


# ----------------------------------------------------------------------------
# Forward pass
# ----------------------------------------------------------------------------
def joint_network_forward(params, raw_audio, log_mel, *, frame=160,
                          num_classes=7, max_tile=512):
    B = raw_audio.shape[0]

    # TODO(synk): WavLMFeatureExtractor internals undefined; stand-in = frame
    #             the raw audio and project to feature_dim inside the kernel.
    frames = raw_audio.reshape(B, -1, frame)                    # (B, T, frame)
    T = frames.shape[1]

    # TODO(synk): SpectrumModel internals undefined; stand-in = linear
    #             projection over the mel axis (contraction done in-kernel,
    #             no wrapper transpose of log_mel).
    T2 = log_mel.shape[2]
    # TODO(synk): with real front-ends T and T2 may differ; the CAF fusion
    #             requires aligned time axes, so we assert here.
    assert T == T2, "CAF stand-in requires matching time lengths"

    tt, Tp = _choose_time_tile(T, max_tile)
    frames_p = frames if Tp == T else jnp.pad(
        frames, ((0, 0), (0, Tp - T), (0, 0)))
    mel_p = log_mel if Tp == T else jnp.pad(
        log_mel, ((0, 0), (0, 0), (0, Tp - T)))

    t_arr = jnp.asarray([T], jnp.int32)
    (wfeat, sfeat, fused, recon_wavlm, recon_sser,
     wsum, ssum, fsum) = fused_forward(t_arr, frames_p, mel_p, params, tt)

    sums = jnp.stack([wsum[:, 0, :], ssum[:, 0, :], fsum[:, 0, :]], axis=0)
    inv_t = jnp.asarray([1.0 / T], jnp.float32)
    logits_pad = classifier_heads(inv_t, sums, params["cls_w1"],
                                  params["cls_b1"], params["cls_w2"],
                                  params["cls_b2"])
    logits = logits_pad[:, :, :num_classes]

    return {
        "logits": [logits[0], logits[1], logits[2]],
        "features": (wfeat[:, :T, :], sfeat[:, :T, :]),
        "reconstructions": (recon_wavlm[:, :T, :], recon_sser[:, :T, :]),
    }


if __name__ == "__main__":
    key = jax.random.PRNGKey(0)
    pkey, akey, mkey = jax.random.split(key, 3)

    B, T, frame, n_mels = 2, 8, 160, 64
    params = init_params(pkey, frame=frame, n_mels=n_mels)

    raw_audio = jax.random.normal(akey, (B, T * frame), dtype=jnp.float32)
    log_mel = jax.random.normal(mkey, (B, n_mels, T), dtype=jnp.float32)

    out = joint_network_forward(params, raw_audio, log_mel, frame=frame)
    jax.block_until_ready(out)

    assert out["logits"][0].shape == (B, 7)
    assert out["logits"][1].shape == (B, 7)
    assert out["logits"][2].shape == (B, 7)
    assert out["features"][0].shape == (B, T, 256)
    assert out["features"][1].shape == (B, T, 256)
    assert out["reconstructions"][0].shape == (B, T, 256)
    assert out["reconstructions"][1].shape == (B, T, 256)
    print("KERNEL_OK")
</pallas_src>

<mosaic_0001>
module attributes {stable_mosaic.version = 11 : i64} {
  func.func @_fused_kernel(%arg0: i32, %arg1: i32, %arg2: memref<1xi32, #tpu.memory_space<smem>>, %arg3: memref<1x8x160xf32, #tpu.memory_space<vmem>>, %arg4: memref<1x64x8xf32, #tpu.memory_space<vmem>>, %arg5: memref<160x768xbf16, #tpu.memory_space<vmem>>, %arg6: memref<768x256xbf16, #tpu.memory_space<vmem>>, %arg7: memref<1x256xf32, #tpu.memory_space<vmem>>, %arg8: memref<64x256xbf16, #tpu.memory_space<vmem>>, %arg9: memref<256x256xbf16, #tpu.memory_space<vmem>>, %arg10: memref<1x256xf32, #tpu.memory_space<vmem>>, %arg11: memref<256x256xbf16, #tpu.memory_space<vmem>>, %arg12: memref<1x256xf32, #tpu.memory_space<vmem>>, %arg13: memref<1x256xf32, #tpu.memory_space<vmem>>, %arg14: memref<1x8x256xbf16, #tpu.memory_space<vmem>>, %arg15: memref<1x8x256xbf16, #tpu.memory_space<vmem>>, %arg16: memref<1x8x256xbf16, #tpu.memory_space<vmem>>, %arg17: memref<1x8x256xbf16, #tpu.memory_space<vmem>>, %arg18: memref<1x8x256xbf16, #tpu.memory_space<vmem>>, %arg19: memref<1x1x256xf32, #tpu.memory_space<vmem>>, %arg20: memref<1x1x256xf32, #tpu.memory_space<vmem>>, %arg21: memref<1x1x256xf32, #tpu.memory_space<vmem>>) attributes {dimension_semantics = [#tpu.dimension_semantics<parallel>, #tpu.dimension_semantics<arbitrary>], iteration_bounds = array<i64: 2, 1>, scalar_prefetch = 0 : i64, scratch_operands = 0 : i64, tpu.core_type = #tpu.core_type<tc>, window_params = [{transform_indices = @transform_0, window_bounds = array<i64: 1>}, {transform_indices = @transform_1, window_bounds = array<i64: 1, 8, 160>}, {transform_indices = @transform_2, window_bounds = array<i64: 1, 64, 8>}, {pipeline_mode = #tpu.pipeline_mode<synchronous>, transform_indices = @transform_3, window_bounds = array<i64: 160, 768>}, {pipeline_mode = #tpu.pipeline_mode<synchronous>, transform_indices = @transform_4, window_bounds = array<i64: 768, 256>}, {pipeline_mode = #tpu.pipeline_mode<synchronous>, transform_indices = @transform_5, window_bounds = array<i64: 1, 256>}, {pipeline_mode = #tpu.pipeline_mode<synchronous>, transform_indices = @transform_6, window_bounds = array<i64: 64, 256>}, {pipeline_mode = #tpu.pipeline_mode<synchronous>, transform_indices = @transform_7, window_bounds = array<i64: 256, 256>}, {pipeline_mode = #tpu.pipeline_mode<synchronous>, transform_indices = @transform_8, window_bounds = array<i64: 1, 256>}, {pipeline_mode = #tpu.pipeline_mode<synchronous>, transform_indices = @transform_9, window_bounds = array<i64: 256, 256>}, {pipeline_mode = #tpu.pipeline_mode<synchronous>, transform_indices = @transform_10, window_bounds = array<i64: 1, 256>}, {pipeline_mode = #tpu.pipeline_mode<synchronous>, transform_indices = @transform_11, window_bounds = array<i64: 1, 256>}, {transform_indices = @transform_12, window_bounds = array<i64: 1, 8, 256>}, {transform_indices = @transform_13, window_bounds = array<i64: 1, 8, 256>}, {transform_indices = @transform_14, window_bounds = array<i64: 1, 8, 256>}, {transform_indices = @transform_15, window_bounds = array<i64: 1, 8, 256>}, {transform_indices = @transform_16, window_bounds = array<i64: 1, 8, 256>}, {transform_indices = @transform_17, window_bounds = array<i64: 1, 1, 256>}, {transform_indices = @transform_18, window_bounds = array<i64: 1, 1, 256>}, {transform_indices = @transform_19, window_bounds = array<i64: 1, 1, 256>}]} {
    %c0 = arith.constant 0 : index
    %0 = memref.load %arg2[%c0] : memref<1xi32, #tpu.memory_space<smem>>
    %c0_0 = arith.constant 0 : index
    %c0_1 = arith.constant 0 : index
    %c0_2 = arith.constant 0 : index
    %1 = vector.load %arg3[%c0_0, %c0_1, %c0_2] : memref<1x8x160xf32, #tpu.memory_space<vmem>>, vector<1x8x160xf32>
    %2 = vector.shape_cast %1 : vector<1x8x160xf32> to vector<8x160xf32>
    %3 = arith.truncf %2 : vector<8x160xf32> to vector<8x160xbf16>
    %c0_3 = arith.constant 0 : index
    %c0_4 = arith.constant 0 : index
    %4 = vector.load %arg5[%c0_3, %c0_4] : memref<160x768xbf16, #tpu.memory_space<vmem>>, vector<160x768xbf16>
    %cst = arith.constant dense<0.000000e+00> : vector<8x768xf32>
    %5 = tpu.matmul %3, %4, %cst {dimension_numbers = #tpu.dot_dimension_numbers<[1], [0], [0], [1], [0, 0, 1, 1], [], []>} : vector<8x160xbf16>, vector<160x768xbf16>, vector<8x768xf32> -> vector<8x768xf32>
    %6 = arith.truncf %5 : vector<8x768xf32> to vector<8x768xbf16>
    %c0_5 = arith.constant 0 : index
    %c0_6 = arith.constant 0 : index
    %7 = vector.load %arg6[%c0_5, %c0_6] : memref<768x256xbf16, #tpu.memory_space<vmem>>, vector<768x256xbf16>
    %cst_7 = arith.constant dense<0.000000e+00> : vector<8x256xf32>
    %8 = tpu.matmul %6, %7, %cst_7 {dimension_numbers = #tpu.dot_dimension_numbers<[1], [0], [0], [1], [0, 0, 1, 1], [], []>} : vector<8x768xbf16>, vector<768x256xbf16>, vector<8x256xf32> -> vector<8x256xf32>
    %c0_8 = arith.constant 0 : index
    %c0_9 = arith.constant 0 : index
    %9 = vector.load %arg7[%c0_8, %c0_9] : memref<1x256xf32, #tpu.memory_space<vmem>>, vector<1x256xf32>
    %10 = vector.broadcast %9 : vector<1x256xf32> to vector<8x256xf32>
    %11 = arith.addf %8, %10 : vector<8x256xf32>
    %cst_10 = arith.constant 0.000000e+00 : f32
    %12 = vector.broadcast %cst_10 : f32 to vector<8x256xf32>
    %13 = arith.maximumf %11, %12 : vector<8x256xf32>
    %c0_11 = arith.constant 0 : index
    %c0_12 = arith.constant 0 : index
    %c0_13 = arith.constant 0 : index
    %14 = vector.load %arg4[%c0_11, %c0_12, %c0_13] : memref<1x64x8xf32, #tpu.memory_space<vmem>>, vector<1x64x8xf32>
    %15 = vector.shape_cast %14 : vector<1x64x8xf32> to vector<64x8xf32>
    %16 = arith.truncf %15 : vector<64x8xf32> to vector<64x8xbf16>
    %c0_14 = arith.constant 0 : index
    %c0_15 = arith.constant 0 : index
    %17 = vector.load %arg8[%c0_14, %c0_15] : memref<64x256xbf16, #tpu.memory_space<vmem>>, vector<64x256xbf16>
    %cst_16 = arith.constant dense<0.000000e+00> : vector<8x256xf32>
    %18 = tpu.matmul %16, %17, %cst_16 {dimension_numbers = #tpu.dot_dimension_numbers<[0], [0], [1], [1], [0, 1, 1, 1], [], []>} : vector<64x8xbf16>, vector<64x256xbf16>, vector<8x256xf32> -> vector<8x256xf32>
    %19 = arith.truncf %18 : vector<8x256xf32> to vector<8x256xbf16>
    %c0_17 = arith.constant 0 : index
    %c0_18 = arith.constant 0 : index
    %20 = vector.load %arg9[%c0_17, %c0_18] : memref<256x256xbf16, #tpu.memory_space<vmem>>, vector<256x256xbf16>
    %cst_19 = arith.constant dense<0.000000e+00> : vector<8x256xf32>
    %21 = tpu.matmul %19, %20, %cst_19 {dimension_numbers = #tpu.dot_dimension_numbers<[1], [0], [0], [1], [0, 0, 1, 1], [], []>} : vector<8x256xbf16>, vector<256x256xbf16>, vector<8x256xf32> -> vector<8x256xf32>
    %c0_20 = arith.constant 0 : index
    %c0_21 = arith.constant 0 : index
    %22 = vector.load %arg10[%c0_20, %c0_21] : memref<1x256xf32, #tpu.memory_space<vmem>>, vector<1x256xf32>
    %23 = vector.broadcast %22 : vector<1x256xf32> to vector<8x256xf32>
    %24 = arith.addf %21, %23 : vector<8x256xf32>
    %cst_22 = arith.constant 0.000000e+00 : f32
    %25 = vector.broadcast %cst_22 : f32 to vector<8x256xf32>
    %26 = arith.maximumf %24, %25 : vector<8x256xf32>
    %c8_i32 = arith.constant 8 : i32
    %27 = arith.muli %arg1, %c8_i32 : i32
    %28 = tpu.iota {dimensions = array<i32: 0>} : vector<8x1xi32>
    %29 = vector.broadcast %27 : i32 to vector<8x1xi32>
    %30 = arith.addi %29, %28 : vector<8x1xi32>
    %31 = vector.broadcast %0 : i32 to vector<8x1xi32>
    %32 = arith.cmpi slt, %30, %31 : vector<8x1xi32>
    %33 = arith.extui %32 : vector<8x1xi1> to vector<8x1xi32>
    %34 = arith.sitofp %33 : vector<8x1xi32> to vector<8x1xf32>
    %35 = vector.broadcast %34 : vector<8x1xf32> to vector<8x256xf32>
    %36 = arith.mulf %13, %35 : vector<8x256xf32>
    %37 = vector.broadcast %34 : vector<8x1xf32> to vector<8x256xf32>
    %38 = arith.mulf %26, %37 : vector<8x256xf32>
    %39 = arith.truncf %38 : vector<8x256xf32> to vector<8x256xbf16>
    %c0_23 = arith.constant 0 : index
    %c0_24 = arith.constant 0 : index
    %40 = vector.load %arg11[%c0_23, %c0_24] : memref<256x256xbf16, #tpu.memory_space<vmem>>, vector<256x256xbf16>
    %cst_25 = arith.constant dense<0.000000e+00> : vector<8x256xf32>
    %41 = tpu.matmul %39, %40, %cst_25 {dimension_numbers = #tpu.dot_dimension_numbers<[1], [0], [0], [1], [0, 0, 1, 1], [], []>} : vector<8x256xbf16>, vector<256x256xbf16>, vector<8x256xf32> -> vector<8x256xf32>
    %c0_26 = arith.constant 0 : index
    %c0_27 = arith.constant 0 : index
    %42 = vector.load %arg12[%c0_26, %c0_27] : memref<1x256xf32, #tpu.memory_space<vmem>>, vector<1x256xf32>
    %43 = vector.broadcast %42 : vector<1x256xf32> to vector<8x256xf32>
    %44 = arith.addf %41, %43 : vector<8x256xf32>
    %45 = arith.truncf %36 : vector<8x256xf32> to vector<8x256xbf16>
    %c0_28 = arith.constant 0 : index
    %c0_29 = arith.constant 0 : index
    %46 = vector.load %arg11[%c0_28, %c0_29] : memref<256x256xbf16, #tpu.memory_space<vmem>>, vector<256x256xbf16>
    %cst_30 = arith.constant dense<0.000000e+00> : vector<8x256xf32>
    %47 = tpu.matmul %45, %46, %cst_30 {dimension_numbers = #tpu.dot_dimension_numbers<[1], [0], [0], [1], [0, 0, 1, 1], [], []>} : vector<8x256xbf16>, vector<256x256xbf16>, vector<8x256xf32> -> vector<8x256xf32>
    %c0_31 = arith.constant 0 : index
    %c0_32 = arith.constant 0 : index
    %48 = vector.load %arg12[%c0_31, %c0_32] : memref<1x256xf32, #tpu.memory_space<vmem>>, vector<1x256xf32>
    %49 = vector.broadcast %48 : vector<1x256xf32> to vector<8x256xf32>
    %50 = arith.addf %47, %49 : vector<8x256xf32>
    %c0_33 = arith.constant 0 : index
    %c0_34 = arith.constant 0 : index
    %51 = vector.load %arg13[%c0_33, %c0_34] : memref<1x256xf32, #tpu.memory_space<vmem>>, vector<1x256xf32>
    %52 = arith.negf %51 : vector<1x256xf32>
    %53 = math.exp %52 : vector<1x256xf32>
    %cst_35 = arith.constant 1.000000e+00 : f32
    %54 = vector.broadcast %cst_35 : f32 to vector<1x256xf32>
    %55 = arith.addf %54, %53 : vector<1x256xf32>
    %56 = arith.divf %54, %55 : vector<1x256xf32>
    %57 = vector.broadcast %56 : vector<1x256xf32> to vector<8x256xf32>
    %58 = arith.mulf %57, %36 : vector<8x256xf32>
    %cst_36 = arith.constant 1.000000e+00 : f32
    %59 = vector.broadcast %cst_36 : f32 to vector<1x256xf32>
    %60 = arith.subf %59, %56 : vector<1x256xf32>
    %61 = vector.broadcast %60 : vector<1x256xf32> to vector<8x256xf32>
    %62 = arith.mulf %61, %38 : vector<8x256xf32>
    %63 = arith.addf %58, %62 : vector<8x256xf32>
    %64 = arith.truncf %36 : vector<8x256xf32> to vector<8x256xbf16>
    %c0_37 = arith.constant 0 : index
    %c0_38 = arith.constant 0 : index
    %c0_39 = arith.constant 0 : index
    %65 = vector.load %arg14[%c0_37, %c0_38, %c0_39] : memref<1x8x256xbf16, #tpu.memory_space<vmem>>, vector<1x8x256xbf16>
    %66 = vector.shape_cast %65 : vector<1x8x256xbf16> to vector<8x256xbf16>
    %67 = vector.shape_cast %64 : vector<8x256xbf16> to vector<1x8x256xbf16>
    tpu.vector_store %arg14[%c0_37, %c0_38, %c0_39], %67 {strides = array<i32>} : memref<1x8x256xbf16, #tpu.memory_space<vmem>>, vector<1x8x256xbf16>,
    %68 = arith.truncf %38 : vector<8x256xf32> to vector<8x256xbf16>
    %c0_40 = arith.constant 0 : index
    %c0_41 = arith.constant 0 : index
    %c0_42 = arith.constant 0 : index
    %69 = vector.load %arg15[%c0_40, %c0_41, %c0_42] : memref<1x8x256xbf16, #tpu.memory_space<vmem>>, vector<1x8x256xbf16>
    %70 = vector.shape_cast %69 : vector<1x8x256xbf16> to vector<8x256xbf16>
    %71 = vector.shape_cast %68 : vector<8x256xbf16> to vector<1x8x256xbf16>
    tpu.vector_store %arg15[%c0_40, %c0_41, %c0_42], %71 {strides = array<i32>} : memref<1x8x256xbf16, #tpu.memory_space<vmem>>, vector<1x8x256xbf16>,
    %72 = arith.truncf %63 : vector<8x256xf32> to vector<8x256xbf16>
    %c0_43 = arith.constant 0 : index
    %c0_44 = arith.constant 0 : index
    %c0_45 = arith.constant 0 : index
    %73 = vector.load %arg16[%c0_43, %c0_44, %c0_45] : memref<1x8x256xbf16, #tpu.memory_space<vmem>>, vector<1x8x256xbf16>
    %74 = vector.shape_cast %73 : vector<1x8x256xbf16> to vector<8x256xbf16>
    %75 = vector.shape_cast %72 : vector<8x256xbf16> to vector<1x8x256xbf16>
    tpu.vector_store %arg16[%c0_43, %c0_44, %c0_45], %75 {strides = array<i32>} : memref<1x8x256xbf16, #tpu.memory_space<vmem>>, vector<1x8x256xbf16>,
    %76 = arith.truncf %44 : vector<8x256xf32> to vector<8x256xbf16>
    %c0_46 = arith.constant 0 : index
    %c0_47 = arith.constant 0 : index
    %c0_48 = arith.constant 0 : index
    %77 = vector.load %arg17[%c0_46, %c0_47, %c0_48] : memref<1x8x256xbf16, #tpu.memory_space<vmem>>, vector<1x8x256xbf16>
    %78 = vector.shape_cast %77 : vector<1x8x256xbf16> to vector<8x256xbf16>
    %79 = vector.shape_cast %76 : vector<8x256xbf16> to vector<1x8x256xbf16>
    tpu.vector_store %arg17[%c0_46, %c0_47, %c0_48], %79 {strides = array<i32>} : memref<1x8x256xbf16, #tpu.memory_space<vmem>>, vector<1x8x256xbf16>,
    %80 = arith.truncf %50 : vector<8x256xf32> to vector<8x256xbf16>
    %c0_49 = arith.constant 0 : index
    %c0_50 = arith.constant 0 : index
    %c0_51 = arith.constant 0 : index
    %81 = vector.load %arg18[%c0_49, %c0_50, %c0_51] : memref<1x8x256xbf16, #tpu.memory_space<vmem>>, vector<1x8x256xbf16>
    %82 = vector.shape_cast %81 : vector<1x8x256xbf16> to vector<8x256xbf16>
    %83 = vector.shape_cast %80 : vector<8x256xbf16> to vector<1x8x256xbf16>
    tpu.vector_store %arg18[%c0_49, %c0_50, %c0_51], %83 {strides = array<i32>} : memref<1x8x256xbf16, #tpu.memory_space<vmem>>, vector<1x8x256xbf16>,
    %c0_i32 = arith.constant 0 : i32
    %84 = arith.cmpi eq, %arg1, %c0_i32 : i32
    %85 = arith.extui %84 : i1 to i32
    %c0_i32_52 = arith.constant 0 : i32
    %86 = arith.cmpi ne, %85, %c0_i32_52 : i32
    scf.if %86 {
      %cst_74 = arith.constant 0.000000e+00 : f32
      %111 = vector.broadcast %cst_74 : f32 to vector<1x1x256xf32>
      %c0_75 = arith.constant 0 : index
      %c0_76 = arith.constant 0 : index
      %c0_77 = arith.constant 0 : index
      %112 = vector.load %arg19[%c0_75, %c0_76, %c0_77] : memref<1x1x256xf32, #tpu.memory_space<vmem>>, vector<1x1x256xf32>
      tpu.vector_store %arg19[%c0_75, %c0_76, %c0_77], %111 {strides = array<i32>} : memref<1x1x256xf32, #tpu.memory_space<vmem>>, vector<1x1x256xf32>,
      %cst_78 = arith.constant 0.000000e+00 : f32
      %113 = vector.broadcast %cst_78 : f32 to vector<1x1x256xf32>
      %c0_79 = arith.constant 0 : index
      %c0_80 = arith.constant 0 : index
      %c0_81 = arith.constant 0 : index
      %114 = vector.load %arg20[%c0_79, %c0_80, %c0_81] : memref<1x1x256xf32, #tpu.memory_space<vmem>>, vector<1x1x256xf32>
      tpu.vector_store %arg20[%c0_79, %c0_80, %c0_81], %113 {strides = array<i32>} : memref<1x1x256xf32, #tpu.memory_space<vmem>>, vector<1x1x256xf32>,
      %cst_82 = arith.constant 0.000000e+00 : f32
      %115 = vector.broadcast %cst_82 : f32 to vector<1x1x256xf32>
      %c0_83 = arith.constant 0 : index
      %c0_84 = arith.constant 0 : index
      %c0_85 = arith.constant 0 : index
      %116 = vector.load %arg21[%c0_83, %c0_84, %c0_85] : memref<1x1x256xf32, #tpu.memory_space<vmem>>, vector<1x1x256xf32>
      tpu.vector_store %arg21[%c0_83, %c0_84, %c0_85], %115 {strides = array<i32>} : memref<1x1x256xf32, #tpu.memory_space<vmem>>, vector<1x1x256xf32>,
    } else {
    }
    %c0_53 = arith.constant 0 : index
    %c0_54 = arith.constant 0 : index
    %c0_55 = arith.constant 0 : index
    %87 = vector.load %arg19[%c0_53, %c0_54, %c0_55] : memref<1x1x256xf32, #tpu.memory_space<vmem>>, vector<1x1x256xf32>
    %88 = vector.shape_cast %87 : vector<1x1x256xf32> to vector<1x256xf32>
    %cst_56 = arith.constant dense<0.000000e+00> : vector<256xf32>
    %89 = vector.multi_reduction <add>, %36, %cst_56 [0] : vector<8x256xf32> to vector<256xf32>
    %90 = vector.shape_cast %89 : vector<256xf32> to vector<1x256xf32>
    %91 = arith.addf %88, %90 : vector<1x256xf32>
    %c0_57 = arith.constant 0 : index
    %c0_58 = arith.constant 0 : index
    %c0_59 = arith.constant 0 : index
    %92 = vector.load %arg19[%c0_57, %c0_58, %c0_59] : memref<1x1x256xf32, #tpu.memory_space<vmem>>, vector<1x1x256xf32>
    %93 = vector.shape_cast %92 : vector<1x1x256xf32> to vector<1x256xf32>
    %94 = vector.shape_cast %91 : vector<1x256xf32> to vector<1x1x256xf32>
    tpu.vector_store %arg19[%c0_57, %c0_58, %c0_59], %94 {strides = array<i32>} : memref<1x1x256xf32, #tpu.memory_space<vmem>>, vector<1x1x256xf32>,
    %c0_60 = arith.constant 0 : index
    %c0_61 = arith.constant 0 : index
    %c0_62 = arith.constant 0 : index
    %95 = vector.load %arg20[%c0_60, %c0_61, %c0_62] : memref<1x1x256xf32, #tpu.memory_space<vmem>>, vector<1x1x256xf32>
    %96 = vector.shape_cast %95 : vector<1x1x256xf32> to vector<1x256xf32>
    %cst_63 = arith.constant dense<0.000000e+00> : vector<256xf32>
    %97 = vector.multi_reduction <add>, %38, %cst_63 [0] : vector<8x256xf32> to vector<256xf32>
    %98 = vector.shape_cast %97 : vector<256xf32> to vector<1x256xf32>
    %99 = arith.addf %96, %98 : vector<1x256xf32>
    %c0_64 = arith.constant 0 : index
    %c0_65 = arith.constant 0 : index
    %c0_66 = arith.constant 0 : index
    %100 = vector.load %arg20[%c0_64, %c0_65, %c0_66] : memref<1x1x256xf32, #tpu.memory_space<vmem>>, vector<1x1x256xf32>
    %101 = vector.shape_cast %100 : vector<1x1x256xf32> to vector<1x256xf32>
    %102 = vector.shape_cast %99 : vector<1x256xf32> to vector<1x1x256xf32>
    tpu.vector_store %arg20[%c0_64, %c0_65, %c0_66], %102 {strides = array<i32>} : memref<1x1x256xf32, #tpu.memory_space<vmem>>, vector<1x1x256xf32>,
    %c0_67 = arith.constant 0 : index
    %c0_68 = arith.constant 0 : index
    %c0_69 = arith.constant 0 : index
    %103 = vector.load %arg21[%c0_67, %c0_68, %c0_69] : memref<1x1x256xf32, #tpu.memory_space<vmem>>, vector<1x1x256xf32>
    %104 = vector.shape_cast %103 : vector<1x1x256xf32> to vector<1x256xf32>
    %cst_70 = arith.constant dense<0.000000e+00> : vector<256xf32>
    %105 = vector.multi_reduction <add>, %63, %cst_70 [0] : vector<8x256xf32> to vector<256xf32>
    %106 = vector.shape_cast %105 : vector<256xf32> to vector<1x256xf32>
    %107 = arith.addf %104, %106 : vector<1x256xf32>
    %c0_71 = arith.constant 0 : index
    %c0_72 = arith.constant 0 : index
    %c0_73 = arith.constant 0 : index
    %108 = vector.load %arg21[%c0_71, %c0_72, %c0_73] : memref<1x1x256xf32, #tpu.memory_space<vmem>>, vector<1x1x256xf32>
    %109 = vector.shape_cast %108 : vector<1x1x256xf32> to vector<1x256xf32>
    %110 = vector.shape_cast %107 : vector<1x256xf32> to vector<1x1x256xf32>
    tpu.vector_store %arg21[%c0_71, %c0_72, %c0_73], %110 {strides = array<i32>} : memref<1x1x256xf32, #tpu.memory_space<vmem>>, vector<1x1x256xf32>,
    return
  }
  func.func @transform_0(%arg0: i32, %arg1: i32) -> i32 {
    %c0_i32 = arith.constant 0 : i32
    %c0_i32_0 = arith.constant 0 : i32
    return %c0_i32 : i32
  }
  func.func @transform_1(%arg0: i32, %arg1: i32) -> (i32, i32, i32) {
    %c0_i32 = arith.constant 0 : i32
    %c0_i32_0 = arith.constant 0 : i32
    return %arg0, %arg1, %c0_i32 : i32, i32, i32
  }
  func.func @transform_2(%arg0: i32, %arg1: i32) -> (i32, i32, i32) {
    %c0_i32 = arith.constant 0 : i32
    %c0_i32_0 = arith.constant 0 : i32
    return %arg0, %c0_i32, %arg1 : i32, i32, i32
  }
  func.func @transform_3(%arg0: i32, %arg1: i32) -> (i32, i32) {
    %c0_i32 = arith.constant 0 : i32
    %c0_i32_0 = arith.constant 0 : i32
    %c0_i32_1 = arith.constant 0 : i32
    return %c0_i32, %c0_i32_0 : i32, i32
  }
  func.func @transform_4(%arg0: i32, %arg1: i32) -> (i32, i32) {
    %c0_i32 = arith.constant 0 : i32
    %c0_i32_0 = arith.constant 0 : i32
    %c0_i32_1 = arith.constant 0 : i32
    return %c0_i32, %c0_i32_0 : i32, i32
  }
  func.func @transform_5(%arg0: i32, %arg1: i32) -> (i32, i32) {
    %c0_i32 = arith.constant 0 : i32
    %c0_i32_0 = arith.constant 0 : i32
    %c0_i32_1 = arith.constant 0 : i32
    return %c0_i32, %c0_i32_0 : i32, i32
  }
  func.func @transform_6(%arg0: i32, %arg1: i32) -> (i32, i32) {
    %c0_i32 = arith.constant 0 : i32
    %c0_i32_0 = arith.constant 0 : i32
    %c0_i32_1 = arith.constant 0 : i32
    return %c0_i32, %c0_i32_0 : i32, i32
  }
  func.func @transform_7(%arg0: i32, %arg1: i32) -> (i32, i32) {
    %c0_i32 = arith.constant 0 : i32
    %c0_i32_0 = arith.constant 0 : i32
    %c0_i32_1 = arith.constant 0 : i32
    return %c0_i32, %c0_i32_0 : i32, i32
  }
  func.func @transform_8(%arg0: i32, %arg1: i32) -> (i32, i32) {
    %c0_i32 = arith.constant 0 : i32
    %c0_i32_0 = arith.constant 0 : i32
    %c0_i32_1 = arith.constant 0 : i32
    return %c0_i32, %c0_i32_0 : i32, i32
  }
  func.func @transform_9(%arg0: i32, %arg1: i32) -> (i32, i32) {
    %c0_i32 = arith.constant 0 : i32
    %c0_i32_0 = arith.constant 0 : i32
    %c0_i32_1 = arith.constant 0 : i32
    return %c0_i32, %c0_i32_0 : i32, i32
  }
  func.func @transform_10(%arg0: i32, %arg1: i32) -> (i32, i32) {
    %c0_i32 = arith.constant 0 : i32
    %c0_i32_0 = arith.constant 0 : i32
    %c0_i32_1 = arith.constant 0 : i32
    return %c0_i32, %c0_i32_0 : i32, i32
  }
  func.func @transform_11(%arg0: i32, %arg1: i32) -> (i32, i32) {
    %c0_i32 = arith.constant 0 : i32
    %c0_i32_0 = arith.constant 0 : i32
    %c0_i32_1 = arith.constant 0 : i32
    return %c0_i32, %c0_i32_0 : i32, i32
  }
  func.func @transform_12(%arg0: i32, %arg1: i32) -> (i32, i32, i32) {
    %c0_i32 = arith.constant 0 : i32
    %c0_i32_0 = arith.constant 0 : i32
    return %arg0, %arg1, %c0_i32 : i32, i32, i32
  }
  func.func @transform_13(%arg0: i32, %arg1: i32) -> (i32, i32, i32) {
    %c0_i32 = arith.constant 0 : i32
    %c0_i32_0 = arith.constant 0 : i32
    return %arg0, %arg1, %c0_i32 : i32, i32, i32
  }
  func.func @transform_14(%arg0: i32, %arg1: i32) -> (i32, i32, i32) {
    %c0_i32 = arith.constant 0 : i32
    %c0_i32_0 = arith.constant 0 : i32
    return %arg0, %arg1, %c0_i32 : i32, i32, i32
  }
  func.func @transform_15(%arg0: i32, %arg1: i32) -> (i32, i32, i32) {
    %c0_i32 = arith.constant 0 : i32
    %c0_i32_0 = arith.constant 0 : i32
    return %arg0, %arg1, %c0_i32 : i32, i32, i32
  }
  func.func @transform_16(%arg0: i32, %arg1: i32) -> (i32, i32, i32) {
    %c0_i32 = arith.constant 0 : i32
    %c0_i32_0 = arith.constant 0 : i32
    return %arg0, %arg1, %c0_i32 : i32, i32, i32
  }
  func.func @transform_17(%arg0: i32, %arg1: i32) -> (i32, i32, i32) {
    %c0_i32 = arith.constant 0 : i32
    %c0_i32_0 = arith.constant 0 : i32
    %c0_i32_1 = arith.constant 0 : i32
    return %arg0, %c0_i32, %c0_i32_0 : i32, i32, i32
  }
  func.func @transform_18(%arg0: i32, %arg1: i32) -> (i32, i32, i32) {
    %c0_i32 = arith.constant 0 : i32
    %c0_i32_0 = arith.constant 0 : i32
    %c0_i32_1 = arith.constant 0 : i32
    return %arg0, %c0_i32, %c0_i32_0 : i32, i32, i32
  }
  func.func @transform_19(%arg0: i32, %arg1: i32) -> (i32, i32, i32) {
    %c0_i32 = arith.constant 0 : i32
    %c0_i32_0 = arith.constant 0 : i32
    %c0_i32_1 = arith.constant 0 : i32
    return %arg0, %c0_i32, %c0_i32_0 : i32, i32, i32
  }
}

</mosaic_0001>

<llo_original>
// kernel: tpu_custom_call.1
$region0: #{tpu_custom_call.1}
  #allocation0 [shape = 'u32[]', space=smem, size = 0x4, offset = 0x4, fixed_abs, tag = 'smem constant byte address 0x4 - core index']
  #allocation1 [shape = 'u32[144,128]{1,0:T(1,128)}', space=vmem, size = 0x12000, scoped, tag = 'internal scratch']
  #allocation2 [shape = 's32[1]{0:T(128)S(6)}', space=smem, size = 0x200, scoped, tag = 'scoped memory for tpu_custom_call.1']
  %s0 = inlined_call_operand.<no memory space> [shape: s32[1], index: 0, kind: input, shape index: {}]
  %s1 = inlined_call_operand.vmem [shape: f32[2,8,160], index: 1, kind: input, shape index: {}]
  %s2 = inlined_call_operand.vmem [shape: f32[2,64,8], index: 2, kind: input, shape index: {}]
  %s3 = inlined_call_operand.hbm [shape: bf16[160,768], index: 3, kind: input, shape index: {}]
  %s4 = inlined_call_operand.hbm [shape: bf16[768,256], index: 4, kind: input, shape index: {}]
  %s5 = inlined_call_operand.vmem [shape: f32[1,256], index: 5, kind: input, shape index: {}]
  %s6 = inlined_call_operand.vmem [shape: bf16[64,256], index: 6, kind: input, shape index: {}]
  %s7 = inlined_call_operand.hbm [shape: bf16[256,256], index: 7, kind: input, shape index: {}]
  %s8 = inlined_call_operand.vmem [shape: f32[1,256], index: 8, kind: input, shape index: {}]
  %s9 = inlined_call_operand.hbm [shape: bf16[256,256], index: 9, kind: input, shape index: {}]
  %s10 = inlined_call_operand.vmem [shape: f32[1,256], index: 10, kind: input, shape index: {}]
  %s11 = inlined_call_operand.vmem [shape: f32[1,256], index: 11, kind: input, shape index: {}]
  %s12 = inlined_call_operand.hbm [shape: bf16[2,8,256], index: 12, kind: output, shape index: {0}]
  %s13 = inlined_call_operand.hbm [shape: bf16[2,8,256], index: 13, kind: output, shape index: {1}]
  %s14 = inlined_call_operand.hbm [shape: bf16[2,8,256], index: 14, kind: output, shape index: {2}]
  %s15 = inlined_call_operand.hbm [shape: bf16[2,8,256], index: 15, kind: output, shape index: {3}]
  %s16 = inlined_call_operand.hbm [shape: bf16[2,8,256], index: 16, kind: output, shape index: {4}]
  %s17 = inlined_call_operand.hbm [shape: f32[2,1,256], index: 17, kind: output, shape index: {5}]
  %s18 = inlined_call_operand.hbm [shape: f32[2,1,256], index: 18, kind: output, shape index: {6}]
  %s19 = inlined_call_operand.hbm [shape: f32[2,1,256], index: 19, kind: output, shape index: {7}]
  %20 = xla_tuple %s12, %s13, %s14, %s15, %s16, %s17, %s18, %s19
  %s21 = sld [smem:[#allocation0]]
  $region157: #{tpu_custom_call.1} parent=0
    _
  %s23 = ssub.s32 1, %s21
  %s24 = scalar_select 0, %s23, %s21
  %25 = sst [smem:[#allocation2]] %s0
  $region1: #{tpu_custom_call.1} parent=0
    #allocation3 [shape = 'u8[245760]{0}', space=vmem, size = 0x3c000, scoped, tag = 'input window, operand 3, single buffered']
    #allocation4 [shape = 's32[2]{0}', space=sflag, size = 0x8, scoped, tag = 'scoped memory for tpu_custom_call.1']
    #allocation5 [shape = 's32[2]{0}', space=sflag, size = 0x8, scoped, tag = 'scoped memory for tpu_custom_call.1']
    #allocation6 [shape = 'u8[393216]{0}', space=vmem, size = 0x60000, scoped, tag = 'input window, operand 4, single buffered']
    #allocation7 [shape = 's32[1]{0}', space=sflag, size = 0x4, scoped, tag = 'scoped memory for tpu_custom_call.1']
    #allocation8 [shape = 'u8[131072]{0}', space=vmem, size = 0x20000, scoped, tag = 'input window, operand 7, single buffered']
    #allocation9 [shape = 'u8[131072]{0}', space=vmem, size = 0x20000, scoped, tag = 'input window, operand 9, single buffered']
    #allocation10 [shape = 's32[1]{0}', space=sflag, size = 0x4, scoped, tag = 'scoped memory for tpu_custom_call.1']
    #allocation11 [shape = 'u8[8192]{0}', space=vmem, size = 0x2000, scoped, tag = 'output window, operand 0']
    #allocation12 [shape = 'u8[8192]{0}', space=vmem, size = 0x2000, scoped, tag = 'output window, operand 1']
    #allocation13 [shape = 's32[2]{0}', space=sflag, size = 0x8, scoped, tag = 'scoped memory for tpu_custom_call.1']
    #allocation14 [shape = 'u8[8192]{0}', space=vmem, size = 0x2000, scoped, tag = 'output window, operand 2']
    #allocation15 [shape = 'u8[8192]{0}', space=vmem, size = 0x2000, scoped, tag = 'output window, operand 3']
    #allocation16 [shape = 's32[2]{0}', space=sflag, size = 0x8, scoped, tag = 'scoped memory for tpu_custom_call.1']
    #allocation17 [shape = 'u8[8192]{0}', space=vmem, size = 0x2000, scoped, tag = 'output window, operand 4']
    #allocation18 [shape = 'u8[2048]{0}', space=vmem, size = 0x800, scoped, tag = 'output window, operand 5']
    #allocation19 [shape = 's32[2]{0}', space=sflag, size = 0x8, scoped, tag = 'scoped memory for tpu_custom_call.1']
    #allocation20 [shape = 'u8[2048]{0}', space=vmem, size = 0x800, scoped, tag = 'output window, operand 6']
    #allocation21 [shape = 'u8[2048]{0}', space=vmem, size = 0x800, scoped, tag = 'output window, operand 7']
    #allocation22 [shape = 's32[2]{0}', space=sflag, size = 0x8, scoped, tag = 'scoped memory for tpu_custom_call.1']
    %26 = vsyncpa [#allocation4], 0
    %27 = vsyncpa [#allocation7], 0
    %28 = vsyncpa [#allocation10], 0
    %29 = vsyncpa [#allocation5], 0
    %s30 = scalar_lea.sflag [#allocation5], 1
    %31 = vsyncpa %s30, 0
    %32 = vsyncpa [#allocation13], 0
    %s33 = scalar_lea.sflag [#allocation13], 1
    %34 = vsyncpa %s33, 0
    %35 = vsyncpa [#allocation16], 0
    %s36 = scalar_lea.sflag [#allocation16], 1
    %37 = vsyncpa %s36, 0
    %38 = vsyncpa [#allocation19], 0
    %s39 = scalar_lea.sflag [#allocation19], 1
    %40 = vsyncpa %s39, 0
    %41 = vsyncpa [#allocation22], 0
    %s42 = scalar_lea.sflag [#allocation22], 1
    %43 = vsyncpa %s42, 0
    loop: start=0, step=1, limit=4
    $region2: #{tpu_custom_call.1} parent=1 // loop_pre_header
      _
    $region3: #{tpu_custom_call.1} parent=1 // loop_header
      %s45 = sphi 0, %s49
      %p46 = scmp.ge.s32.totalorder %s45, 4
      %s52 = sphi 0, %s64
      %s53 = sphi 0, %s60
      %s54 = sphi 0, %s52
      %s55 = sphi 0, %s53
      %s56 = sphi 0, %s54
      %s57 = sphi 0, %s55
      %s65 = sphi 0, %s65
      %s67 = sphi 0, %s65
      %s68 = sphi 0, %s67
      %s82 = sphi 0, %s68
      %s90 = sphi 0, %s92
      %s93 = sphi 0, %s90
      %s94 = sphi 0, %s93
      %s110 = sphi 0, %s94
      %s118 = sphi 0, %s120
      %s121 = sphi 0, %s118
      %s122 = sphi 0, %s121
      %s138 = sphi 0, %s122
      %s142 = sphi 0, %s142
      %s144 = sphi 0, %s142
      %s145 = sphi 0, %s144
      %s159 = sphi 0, %s145
      %s163 = sphi 0, %s163
      %s165 = sphi 0, %s163
      %s166 = sphi 0, %s165
      %s180 = sphi 0, %s166
      %s184 = sphi 0, %s184
      %s186 = sphi 0, %s184
      %s187 = sphi 0, %s186
      %s201 = sphi 0, %s187
      %s205 = sphi 0, %s205
      %s207 = sphi 0, %s205
      %s208 = sphi 0, %s207
      %s222 = sphi 0, %s208
      %s226 = sphi 0, %s226
      %s228 = sphi 0, %s226
      %s229 = sphi 0, %s228
      %s243 = sphi 0, %s229
      %s247 = sphi 0, %s247
      %s249 = sphi 0, %s247
      %s250 = sphi 0, %s249
      %s264 = sphi 0, %s250
      %s268 = sphi 0, %s268
      %s270 = sphi 0, %s268
      %s271 = sphi 0, %s270
      %s285 = sphi 0, %s271
      %s289 = sphi 0, %s289
      %s291 = sphi 0, %s289
      %s292 = sphi 0, %s291
      %s306 = sphi 0, %s292
      %s310 = sphi 0, %s310
      %s312 = sphi 0, %s310
      %s313 = sphi 0, %s312
      %s327 = sphi 0, %s313
      %s335 = sphi 0, %s337
      %s338 = sphi 0, %s335
      %s339 = sphi 0, %s338
      %s355 = sphi 0, %s339
      %s363 = sphi 0, %s365
      %s366 = sphi 0, %s363
      %s367 = sphi 0, %s366
      %s383 = sphi 0, %s367
      %s391 = sphi 0, %s393
      %s394 = sphi 0, %s391
      %s395 = sphi 0, %s394
      %s411 = sphi 0, %s395
      %s419 = sphi 0, %s421
      %s422 = sphi 0, %s419
      %s423 = sphi 0, %s422
      %s439 = sphi 0, %s423
      %s447 = sphi 0, %s449
      %s450 = sphi 0, %s447
      %s451 = sphi 0, %s450
      %s467 = sphi 0, %s451
      %s473 = sphi 0, %s475
      %s476 = sphi 0, %s473
      %s477 = sphi 0, %s476
      %s493 = sphi 0, %s477
      %s499 = sphi 0, %s501
      %s502 = sphi 0, %s499
      %s503 = sphi 0, %s502
      %s519 = sphi 0, %s503
      %s525 = sphi 0, %s527
      %s528 = sphi 0, %s525
      %s529 = sphi 0, %s528
      %s545 = sphi 0, %s529
    $region4: #{tpu_custom_call.1} parent=1 // loop_header_branch
      %48 = sbr.rel (%p46) target = $region8
    $region5: #{tpu_custom_call.1} parent=1 // loop_body
      %s50 = ssub.s32 %s45, 1
      %s51 = ssub.s32 %s45, 2
      %s58 = sadd.s32 1, %s53
      %p59 = scmp.ge.s32.totalorder %s58, 1
      %s60 = scalar_select %p59, 0, %s58
      %s61 = sadd.s32 1, %s52
      %s62 = scalar_select %p59, %s61, %s52
      %p63 = scmp.ge.s32.totalorder %s62, 2
      %s64 = scalar_select %p63, 0, %s62
      %s66 = sadd.s32 %s65, 1
      %p69 = scmp.eq.s32.totalorder %s45, 1
      %p70 = scmp.ne.s32.totalorder %s65, %s67
      %p71 = scmp.eq.s32.totalorder %s45, 0
      %p72 = por %p70, %p71
      %p73 = scmp.ne.s32.totalorder %s65, %s67
      %p74 = scmp.eq.s32.totalorder %s50, 1
      %p75 = por %p73, %p74
      %p76 = scmp.ne.s32.totalorder %s67, %s68
      %p77 = scmp.eq.s32.totalorder %s50, 0
      %p78 = por %p76, %p77
      %p79 = scmp.ne.s32.totalorder %s67, %s68
      %p80 = scmp.eq.s32.totalorder %s51, 1
      %p81 = por %p79, %p80
      %p83 = scmp.ne.s32.totalorder %s68, %s82
      %p84 = scmp.eq.s32.totalorder %s51, 0
      %p85 = por %p83, %p84
      %s86 = ssub.s32 %s52, %s64
      %s87 = ssub.s32 %s53, %s60
      %s88 = sor.u32 %s86, %s87
      %p89 = scmp.eq.s32.totalorder %s88, 0
      %s91 = sadd.s32 %s90, 1
      %s92 = scalar_select %p89, %s90, %s91
      %p95 = pneg %p89
      %p96 = scmp.eq.s32.totalorder %s45, 1
      %p97 = por %p95, %p96
      %p98 = scmp.ne.s32.totalorder %s90, %s93
      %p99 = scmp.eq.s32.totalorder %s45, 0
      %p100 = por %p98, %p99
      %p101 = scmp.ne.s32.totalorder %s90, %s93
      %p102 = scmp.eq.s32.totalorder %s50, 1
      %p103 = por %p101, %p102
      %p104 = scmp.ne.s32.totalorder %s93, %s94
      %p105 = scmp.eq.s32.totalorder %s50, 0
      %p106 = por %p104, %p105
      %p107 = scmp.ne.s32.totalorder %s93, %s94
      %p108 = scmp.eq.s32.totalorder %s51, 1
      %p109 = por %p107, %p108
      %p111 = scmp.ne.s32.totalorder %s94, %s110
      %p112 = scmp.eq.s32.totalorder %s51, 0
      %p113 = por %p111, %p112
      %s114 = ssub.s32 %s52, %s64
      %s115 = ssub.s32 %s53, %s60
      %s116 = sor.u32 %s114, %s115
      %p117 = scmp.eq.s32.totalorder %s116, 0
      %s119 = sadd.s32 %s118, 1
      %s120 = scalar_select %p117, %s118, %s119
      %p123 = pneg %p117
      %p124 = scmp.eq.s32.totalorder %s45, 1
      %p125 = por %p123, %p124
      %p126 = scmp.ne.s32.totalorder %s118, %s121
      %p127 = scmp.eq.s32.totalorder %s45, 0
      %p128 = por %p126, %p127
      %p129 = scmp.ne.s32.totalorder %s118, %s121
      %p130 = scmp.eq.s32.totalorder %s50, 1
      %p131 = por %p129, %p130
      %p132 = scmp.ne.s32.totalorder %s121, %s122
      %p133 = scmp.eq.s32.totalorder %s50, 0
      %p134 = por %p132, %p133
      %p135 = scmp.ne.s32.totalorder %s121, %s122
      %p136 = scmp.eq.s32.totalorder %s51, 1
      %p137 = por %p135, %p136
      %p139 = scmp.ne.s32.totalorder %s122, %s138
      %p140 = scmp.eq.s32.totalorder %s51, 0
      %p141 = por %p139, %p140
      %s143 = sadd.s32 %s142, 1
      %p146 = scmp.eq.s32.totalorder %s45, 1
      %p147 = scmp.ne.s32.totalorder %s142, %s144
      %p148 = scmp.eq.s32.totalorder %s45, 0
      %p149 = por %p147, %p148
      %p150 = scmp.ne.s32.totalorder %s142, %s144
      %p151 = scmp.eq.s32.totalorder %s50, 1
      %p152 = por %p150, %p151
      %p153 = scmp.ne.s32.totalorder %s144, %s145
      %p154 = scmp.eq.s32.totalorder %s50, 0
      %p155 = por %p153, %p154
      %p156 = scmp.ne.s32.totalorder %s144, %s145
      %p157 = scmp.eq.s32.totalorder %s51, 1
      %p158 = por %p156, %p157
      %p160 = scmp.ne.s32.totalorder %s145, %s159
      %p161 = scmp.eq.s32.totalorder %s51, 0
      %p162 = por %p160, %p161
      %s164 = sadd.s32 %s163, 1
      %p167 = scmp.eq.s32.totalorder %s45, 1
      %p168 = scmp.ne.s32.totalorder %s163, %s165
      %p169 = scmp.eq.s32.totalorder %s45, 0
      %p170 = por %p168, %p169
      %p171 = scmp.ne.s32.totalorder %s163, %s165
      %p172 = scmp.eq.s32.totalorder %s50, 1
      %p173 = por %p171, %p172
      %p174 = scmp.ne.s32.totalorder %s165, %s166
      %p175 = scmp.eq.s32.totalorder %s50, 0
      %p176 = por %p174, %p175
      %p177 = scmp.ne.s32.totalorder %s165, %s166
      %p178 = scmp.eq.s32.totalorder %s51, 1
      %p179 = por %p177, %p178
      %p181 = scmp.ne.s32.totalorder %s166, %s180
      %p182 = scmp.eq.s32.totalorder %s51, 0
      %p183 = por %p181, %p182
      %s185 = sadd.s32 %s184, 1
      %p188 = scmp.eq.s32.totalorder %s45, 1
      %p189 = scmp.ne.s32.totalorder %s184, %s186
      %p190 = scmp.eq.s32.totalorder %s45, 0
      %p191 = por %p189, %p190
      %p192 = scmp.ne.s32.totalorder %s184, %s186
      %p193 = scmp.eq.s32.totalorder %s50, 1
      %p194 = por %p192, %p193
      %p195 = scmp.ne.s32.totalorder %s186, %s187
      %p196 = scmp.eq.s32.totalorder %s50, 0
      %p197 = por %p195, %p196
      %p198 = scmp.ne.s32.totalorder %s186, %s187
      %p199 = scmp.eq.s32.totalorder %s51, 1
      %p200 = por %p198, %p199
      %p202 = scmp.ne.s32.totalorder %s187, %s201
      %p203 = scmp.eq.s32.totalorder %s51, 0
      %p204 = por %p202, %p203
      %s206 = sadd.s32 %s205, 1
      %p209 = scmp.eq.s32.totalorder %s45, 1
      %p210 = scmp.ne.s32.totalorder %s205, %s207
      %p211 = scmp.eq.s32.totalorder %s45, 0
      %p212 = por %p210, %p211
      %p213 = scmp.ne.s32.totalorder %s205, %s207
      %p214 = scmp.eq.s32.totalorder %s50, 1
      %p215 = por %p213, %p214
      %p216 = scmp.ne.s32.totalorder %s207, %s208
      %p217 = scmp.eq.s32.totalorder %s50, 0
      %p218 = por %p216, %p217
      %p219 = scmp.ne.s32.totalorder %s207, %s208
      %p220 = scmp.eq.s32.totalorder %s51, 1
      %p221 = por %p219, %p220
      %p223 = scmp.ne.s32.totalorder %s208, %s222
      %p224 = scmp.eq.s32.totalorder %s51, 0
      %p225 = por %p223, %p224
      %s227 = sadd.s32 %s226, 1
      %p230 = scmp.eq.s32.totalorder %s45, 1
      %p231 = scmp.ne.s32.totalorder %s226, %s228
      %p232 = scmp.eq.s32.totalorder %s45, 0
      %p233 = por %p231, %p232
      %p234 = scmp.ne.s32.totalorder %s226, %s228
      %p235 = scmp.eq.s32.totalorder %s50, 1
      %p236 = por %p234, %p235
      %p237 = scmp.ne.s32.totalorder %s228, %s229
      %p238 = scmp.eq.s32.totalorder %s50, 0
      %p239 = por %p237, %p238
      %p240 = scmp.ne.s32.totalorder %s228, %s229
      %p241 = scmp.eq.s32.totalorder %s51, 1
      %p242 = por %p240, %p241
      %p244 = scmp.ne.s32.totalorder %s229, %s243
      %p245 = scmp.eq.s32.totalorder %s51, 0
      %p246 = por %p244, %p245
      %s248 = sadd.s32 %s247, 1
      %p251 = scmp.eq.s32.totalorder %s45, 1
      %p252 = scmp.ne.s32.totalorder %s247, %s249
      %p253 = scmp.eq.s32.totalorder %s45, 0
      %p254 = por %p252, %p253
      %p255 = scmp.ne.s32.totalorder %s247, %s249
      %p256 = scmp.eq.s32.totalorder %s50, 1
      %p257 = por %p255, %p256
      %p258 = scmp.ne.s32.totalorder %s249, %s250
      %p259 = scmp.eq.s32.totalorder %s50, 0
      %p260 = por %p258, %p259
      %p261 = scmp.ne.s32.totalorder %s249, %s250
      %p262 = scmp.eq.s32.totalorder %s51, 1
      %p263 = por %p261, %p262
      %p265 = scmp.ne.s32.totalorder %s250, %s264
      %p266 = scmp.eq.s32.totalorder %s51, 0
      %p267 = por %p265, %p266
      %s269 = sadd.s32 %s268, 1
      %p272 = scmp.eq.s32.totalorder %s45, 1
      %p273 = scmp.ne.s32.totalorder %s268, %s270
      %p274 = scmp.eq.s32.totalorder %s45, 0
      %p275 = por %p273, %p274
      %p276 = scmp.ne.s32.totalorder %s268, %s270
      %p277 = scmp.eq.s32.totalorder %s50, 1
      %p278 = por %p276, %p277
      %p279 = scmp.ne.s32.totalorder %s270, %s271
      %p280 = scmp.eq.s32.totalorder %s50, 0
      %p281 = por %p279, %p280
      %p282 = scmp.ne.s32.totalorder %s270, %s271
      %p283 = scmp.eq.s32.totalorder %s51, 1
      %p284 = por %p282, %p283
      %p286 = scmp.ne.s32.totalorder %s271, %s285
      %p287 = scmp.eq.s32.totalorder %s51, 0
      %p288 = por %p286, %p287
      %s290 = sadd.s32 %s289, 1
      %p293 = scmp.eq.s32.totalorder %s45, 1
      %p294 = scmp.ne.s32.totalorder %s289, %s291
      %p295 = scmp.eq.s32.totalorder %s45, 0
      %p296 = por %p294, %p295
      %p297 = scmp.ne.s32.totalorder %s289, %s291
      %p298 = scmp.eq.s32.totalorder %s50, 1
      %p299 = por %p297, %p298
      %p300 = scmp.ne.s32.totalorder %s291, %s292
      %p301 = scmp.eq.s32.totalorder %s50, 0
      %p302 = por %p300, %p301
      %p303 = scmp.ne.s32.totalorder %s291, %s292
      %p304 = scmp.eq.s32.totalorder %s51, 1
      %p305 = por %p303, %p304
      %p307 = scmp.ne.s32.totalorder %s292, %s306
      %p308 = scmp.eq.s32.totalorder %s51, 0
      %p309 = por %p307, %p308
      %s311 = sadd.s32 %s310, 1
      %p314 = scmp.eq.s32.totalorder %s45, 1
      %p315 = scmp.ne.s32.totalorder %s310, %s312
      %p316 = scmp.eq.s32.totalorder %s45, 0
      %p317 = por %p315, %p316
      %p318 = scmp.ne.s32.totalorder %s310, %s312
      %p319 = scmp.eq.s32.totalorder %s50, 1
      %p320 = por %p318, %p319
      %p321 = scmp.ne.s32.totalorder %s312, %s313
      %p322 = scmp.eq.s32.totalorder %s50, 0
      %p323 = por %p321, %p322
      %p324 = scmp.ne.s32.totalorder %s312, %s313
      %p325 = scmp.eq.s32.totalorder %s51, 1
      %p326 = por %p324, %p325
      %p328 = scmp.ne.s32.totalorder %s313, %s327
      %p329 = scmp.eq.s32.totalorder %s51, 0
      %p330 = por %p328, %p329
      %s331 = ssub.s32 %s52, %s64
      %s332 = ssub.s32 %s53, %s60
      %s333 = sor.u32 %s331, %s332
      %p334 = scmp.eq.s32.totalorder %s333, 0
      %s336 = sadd.s32 %s335, 1
      %s337 = scalar_select %p334, %s335, %s336
      %p340 = pneg %p334
      %p341 = scmp.eq.s32.totalorder %s45, 1
      %p342 = por %p340, %p341
      %p343 = scmp.ne.s32.totalorder %s335, %s338
      %p344 = scmp.eq.s32.totalorder %s45, 0
      %p345 = por %p343, %p344
      %p346 = scmp.ne.s32.totalorder %s335, %s338
      %p347 = scmp.eq.s32.totalorder %s50, 1
      %p348 = por %p346, %p347
      %p349 = scmp.ne.s32.totalorder %s338, %s339
      %p350 = scmp.eq.s32.totalorder %s50, 0
      %p351 = por %p349, %p350
      %p352 = scmp.ne.s32.totalorder %s338, %s339
      %p353 = scmp.eq.s32.totalorder %s51, 1
      %p354 = por %p352, %p353
      %p356 = scmp.ne.s32.totalorder %s339, %s355
      %p357 = scmp.eq.s32.totalorder %s51, 0
      %p358 = por %p356, %p357
      %s359 = ssub.s32 %s52, %s64
      %s360 = ssub.s32 %s53, %s60
      %s361 = sor.u32 %s359, %s360
      %p362 = scmp.eq.s32.totalorder %s361, 0
      %s364 = sadd.s32 %s363, 1
      %s365 = scalar_select %p362, %s363, %s364
      %p368 = pneg %p362
      %p369 = scmp.eq.s32.totalorder %s45, 1
      %p370 = por %p368, %p369
      %p371 = scmp.ne.s32.totalorder %s363, %s366
      %p372 = scmp.eq.s32.totalorder %s45, 0
      %p373 = por %p371, %p372
      %p374 = scmp.ne.s32.totalorder %s363, %s366
      %p375 = scmp.eq.s32.totalorder %s50, 1
      %p376 = por %p374, %p375
      %p377 = scmp.ne.s32.totalorder %s366, %s367
      %p378 = scmp.eq.s32.totalorder %s50, 0
      %p379 = por %p377, %p378
      %p380 = scmp.ne.s32.totalorder %s366, %s367
      %p381 = scmp.eq.s32.totalorder %s51, 1
      %p382 = por %p380, %p381
      %p384 = scmp.ne.s32.totalorder %s367, %s383
      %p385 = scmp.eq.s32.totalorder %s51, 0
      %p386 = por %p384, %p385
      %s387 = ssub.s32 %s52, %s64
      %s388 = ssub.s32 %s53, %s60
      %s389 = sor.u32 %s387, %s388
      %p390 = scmp.eq.s32.totalorder %s389, 0
      %s392 = sadd.s32 %s391, 1
      %s393 = scalar_select %p390, %s391, %s392
      %p396 = pneg %p390
      %p397 = scmp.eq.s32.totalorder %s45, 1
      %p398 = por %p396, %p397
      %p399 = scmp.ne.s32.totalorder %s391, %s394
      %p400 = scmp.eq.s32.totalorder %s45, 0
      %p401 = por %p399, %p400
      %p402 = scmp.ne.s32.totalorder %s391, %s394
      %p403 = scmp.eq.s32.totalorder %s50, 1
      %p404 = por %p402, %p403
      %p405 = scmp.ne.s32.totalorder %s394, %s395
      %p406 = scmp.eq.s32.totalorder %s50, 0
      %p407 = por %p405, %p406
      %p408 = scmp.ne.s32.totalorder %s394, %s395
      %p409 = scmp.eq.s32.totalorder %s51, 1
      %p410 = por %p408, %p409
      %p412 = scmp.ne.s32.totalorder %s395, %s411
      %p413 = scmp.eq.s32.totalorder %s51, 0
      %p414 = por %p412, %p413
      %s415 = ssub.s32 %s52, %s64
      %s416 = ssub.s32 %s53, %s60
      %s417 = sor.u32 %s415, %s416
      %p418 = scmp.eq.s32.totalorder %s417, 0
      %s420 = sadd.s32 %s419, 1
      %s421 = scalar_select %p418, %s419, %s420
      %p424 = pneg %p418
      %p425 = scmp.eq.s32.totalorder %s45, 1
      %p426 = por %p424, %p425
      %p427 = scmp.ne.s32.totalorder %s419, %s422
      %p428 = scmp.eq.s32.totalorder %s45, 0
      %p429 = por %p427, %p428
      %p430 = scmp.ne.s32.totalorder %s419, %s422
      %p431 = scmp.eq.s32.totalorder %s50, 1
      %p432 = por %p430, %p431
      %p433 = scmp.ne.s32.totalorder %s422, %s423
      %p434 = scmp.eq.s32.totalorder %s50, 0
      %p435 = por %p433, %p434
      %p436 = scmp.ne.s32.totalorder %s422, %s423
      %p437 = scmp.eq.s32.totalorder %s51, 1
      %p438 = por %p436, %p437
      %p440 = scmp.ne.s32.totalorder %s423, %s439
      %p441 = scmp.eq.s32.totalorder %s51, 0
      %p442 = por %p440, %p441
      %s443 = ssub.s32 %s52, %s64
      %s444 = ssub.s32 %s53, %s60
      %s445 = sor.u32 %s443, %s444
      %p446 = scmp.eq.s32.totalorder %s445, 0
      %s448 = sadd.s32 %s447, 1
      %s449 = scalar_select %p446, %s447, %s448
      %p452 = pneg %p446
      %p453 = scmp.eq.s32.totalorder %s45, 1
      %p454 = por %p452, %p453
      %p455 = scmp.ne.s32.totalorder %s447, %s450
      %p456 = scmp.eq.s32.totalorder %s45, 0
      %p457 = por %p455, %p456
      %p458 = scmp.ne.s32.totalorder %s447, %s450
      %p459 = scmp.eq.s32.totalorder %s50, 1
      %p460 = por %p458, %p459
      %p461 = scmp.ne.s32.totalorder %s450, %s451
      %p462 = scmp.eq.s32.totalorder %s50, 0
      %p463 = por %p461, %p462
      %p464 = scmp.ne.s32.totalorder %s450, %s451
      %p465 = scmp.eq.s32.totalorder %s51, 1
      %p466 = por %p464, %p465
      %p468 = scmp.ne.s32.totalorder %s451, %s467
      %p469 = scmp.eq.s32.totalorder %s51, 0
      %p470 = por %p468, %p469
      %s471 = ssub.s32 %s52, %s64
      %p472 = scmp.eq.s32.totalorder %s471, 0
      %s474 = sadd.s32 %s473, 1
      %s475 = scalar_select %p472, %s473, %s474
      %p478 = pneg %p472
      %p479 = scmp.eq.s32.totalorder %s45, 1
      %p480 = por %p478, %p479
      %p481 = scmp.ne.s32.totalorder %s473, %s476
      %p482 = scmp.eq.s32.totalorder %s45, 0
      %p483 = por %p481, %p482
      %p484 = scmp.ne.s32.totalorder %s473, %s476
      %p485 = scmp.eq.s32.totalorder %s50, 1
      %p486 = por %p484, %p485
      %p487 = scmp.ne.s32.totalorder %s476, %s477
      %p488 = scmp.eq.s32.totalorder %s50, 0
      %p489 = por %p487, %p488
      %p490 = scmp.ne.s32.totalorder %s476, %s477
      %p491 = scmp.eq.s32.totalorder %s51, 1
      %p492 = por %p490, %p491
      %p494 = scmp.ne.s32.totalorder %s477, %s493
      %p495 = scmp.eq.s32.totalorder %s51, 0
      %p496 = por %p494, %p495
      %s497 = ssub.s32 %s52, %s64
      %p498 = scmp.eq.s32.totalorder %s497, 0
      %s500 = sadd.s32 %s499, 1
      %s501 = scalar_select %p498, %s499, %s500
      %p504 = pneg %p498
      %p505 = scmp.eq.s32.totalorder %s45, 1
      %p506 = por %p504, %p505
      %p507 = scmp.ne.s32.totalorder %s499, %s502
      %p508 = scmp.eq.s32.totalorder %s45, 0
      %p509 = por %p507, %p508
      %p510 = scmp.ne.s32.totalorder %s499, %s502
      %p511 = scmp.eq.s32.totalorder %s50, 1
      %p512 = por %p510, %p511
      %p513 = scmp.ne.s32.totalorder %s502, %s503
      %p514 = scmp.eq.s32.totalorder %s50, 0
      %p515 = por %p513, %p514
      %p516 = scmp.ne.s32.totalorder %s502, %s503
      %p517 = scmp.eq.s32.totalorder %s51, 1
      %p518 = por %p516, %p517
      %p520 = scmp.ne.s32.totalorder %s503, %s519
      %p521 = scmp.eq.s32.totalorder %s51, 0
      %p522 = por %p520, %p521
      %s523 = ssub.s32 %s52, %s64
      %p524 = scmp.eq.s32.totalorder %s523, 0
      %s526 = sadd.s32 %s525, 1
      %s527 = scalar_select %p524, %s525, %s526
      %p530 = pneg %p524
      %p531 = scmp.eq.s32.totalorder %s45, 1
      %p532 = por %p530, %p531
      %p533 = scmp.ne.s32.totalorder %s525, %s528
      %p534 = scmp.eq.s32.totalorder %s45, 0
      %p535 = por %p533, %p534
      %p536 = scmp.ne.s32.totalorder %s525, %s528
      %p537 = scmp.eq.s32.totalorder %s50, 1
      %p538 = por %p536, %p537
      %p539 = scmp.ne.s32.totalorder %s528, %s529
      %p540 = scmp.eq.s32.totalorder %s50, 0
      %p541 = por %p539, %p540
      %p542 = scmp.ne.s32.totalorder %s528, %s529
      %p543 = scmp.eq.s32.totalorder %s51, 1
      %p544 = por %p542, %p543
      %p546 = scmp.ne.s32.totalorder %s529, %s545
      %p547 = scmp.eq.s32.totalorder %s51, 0
      %p548 = por %p546, %p547
      %p549 = scmp.le.s32.totalorder 1, %s45
      %p550 = scmp.lt.s32.totalorder %s45, 3
      %p551 = pnand %p549, %p550
      %p552 = pneg %p551
      // Predicated region
      $region9: #{tpu_custom_call.1} parent=5 // pred_check
        _
      $region10: #{tpu_custom_call.1} parent=5 // pred_check_branch
        %554 = sbr.rel (%p551) target = $region12
      $region11: #{tpu_custom_call.1} parent=5 // pred_region
        %s555 = ssub.s32 %s45, 1
        // Predicated region
        $region13: #{tpu_custom_call.1} parent=11 // pred_check
          %p556 = pneg %p78
        $region14: #{tpu_custom_call.1} parent=11 // pred_check_branch
          %558 = sbr.rel (%p556) target = $region16
        $region15: #{tpu_custom_call.1} parent=11 // pred_region
          _
        $region16: #{tpu_custom_call.1} parent=11 // pred_fallthru
          _
        // Predicated region
        $region17: #{tpu_custom_call.1} parent=11 // pred_check
          %p559 = pneg %p155
        $region18: #{tpu_custom_call.1} parent=11 // pred_check_branch
          %561 = sbr.rel (%p559) target = $region20
        $region19: #{tpu_custom_call.1} parent=11 // pred_region
          %s563 = ssub.s32 7680, 7680
          %564 = vsyncadd [#allocation4], %s563
          %s565 = sshll.u32 [#allocation3], 4
          %s566 = int_to_ptr.vmem [resolvable:$true] %s565
          %571 = dma.hbm_to_vmem [thread:$0]  %s3, 7680, %s566, [#allocation4], 384, 384, 24
        $region20: #{tpu_custom_call.1} parent=11 // pred_fallthru
          _
        // Predicated region
        $region21: #{tpu_custom_call.1} parent=11 // pred_check
          %p572 = pneg %p176
        $region22: #{tpu_custom_call.1} parent=11 // pred_check_branch
          %574 = sbr.rel (%p572) target = $region24
        $region23: #{tpu_custom_call.1} parent=11 // pred_region
          %s576 = ssub.s32 12288, 12288
          %577 = vsyncadd [#allocation7], %s576
          %s578 = sshll.u32 [#allocation6], 4
          %s579 = int_to_ptr.vmem [resolvable:$true] %s578
          %584 = dma.hbm_to_vmem [thread:$0]  %s4, 12288, %s579, [#allocation7], 128, 128, 8
        $region24: #{tpu_custom_call.1} parent=11 // pred_fallthru
          _
        // Predicated region
        $region25: #{tpu_custom_call.1} parent=11 // pred_check
          %p585 = pneg %p197
        $region26: #{tpu_custom_call.1} parent=11 // pred_check_branch
          %587 = sbr.rel (%p585) target = $region28
        $region27: #{tpu_custom_call.1} parent=11 // pred_region
          _
        $region28: #{tpu_custom_call.1} parent=11 // pred_fallthru
          _
        // Predicated region
        $region29: #{tpu_custom_call.1} parent=11 // pred_check
          %p588 = pneg %p218
        $region30: #{tpu_custom_call.1} parent=11 // pred_check_branch
          %590 = sbr.rel (%p588) target = $region32
        $region31: #{tpu_custom_call.1} parent=11 // pred_region
          _
        $region32: #{tpu_custom_call.1} parent=11 // pred_fallthru
          _
        // Predicated region
        $region33: #{tpu_custom_call.1} parent=11 // pred_check
          %p591 = pneg %p239
        $region34: #{tpu_custom_call.1} parent=11 // pred_check_branch
          %593 = sbr.rel (%p591) target = $region36
        $region35: #{tpu_custom_call.1} parent=11 // pred_region
          %s595 = ssub.s32 4096, 4096
          %596 = vsyncadd [#allocation7], %s595
          %s597 = sshll.u32 [#allocation8], 4
          %s598 = int_to_ptr.vmem [resolvable:$true] %s597
          %603 = dma.hbm_to_vmem [thread:$0]  %s7, 4096, %s598, [#allocation7], 128, 128, 8
        $region36: #{tpu_custom_call.1} parent=11 // pred_fallthru
          _
        // Predicated region
        $region37: #{tpu_custom_call.1} parent=11 // pred_check
          %p604 = pneg %p260
        $region38: #{tpu_custom_call.1} parent=11 // pred_check_branch
          %606 = sbr.rel (%p604) target = $region40
        $region39: #{tpu_custom_call.1} parent=11 // pred_region
          _
        $region40: #{tpu_custom_call.1} parent=11 // pred_fallthru
          _
        // Predicated region
        $region41: #{tpu_custom_call.1} parent=11 // pred_check
          %p607 = pneg %p281
        $region42: #{tpu_custom_call.1} parent=11 // pred_check_branch
          %609 = sbr.rel (%p607) target = $region44
        $region43: #{tpu_custom_call.1} parent=11 // pred_region
          %s611 = ssub.s32 4096, 4096
          %612 = vsyncadd [#allocation10], %s611
          %s613 = sshll.u32 [#allocation9], 4
          %s614 = int_to_ptr.vmem [resolvable:$true] %s613
          %619 = dma.hbm_to_vmem [thread:$0]  %s9, 4096, %s614, [#allocation10], 128, 128, 8
        $region44: #{tpu_custom_call.1} parent=11 // pred_fallthru
          _
        // Predicated region
        $region45: #{tpu_custom_call.1} parent=11 // pred_check
          %p620 = pneg %p302
        $region46: #{tpu_custom_call.1} parent=11 // pred_check_branch
          %622 = sbr.rel (%p620) target = $region48
        $region47: #{tpu_custom_call.1} parent=11 // pred_region
          _
        $region48: #{tpu_custom_call.1} parent=11 // pred_fallthru
          _
        // Predicated region
        $region49: #{tpu_custom_call.1} parent=11 // pred_check
          %p623 = pneg %p323
        $region50: #{tpu_custom_call.1} parent=11 // pred_check_branch
          %625 = sbr.rel (%p623) target = $region52
        $region51: #{tpu_custom_call.1} parent=11 // pred_region
          _
        $region52: #{tpu_custom_call.1} parent=11 // pred_fallthru
          _
      $region12: #{tpu_custom_call.1} parent=5 // pred_fallthru
        _
      %p626 = scmp.lt.s32.totalorder %s45, 2
      // Predicated region
      $region53: #{tpu_custom_call.1} parent=5 // pred_check
        %p627 = pneg %p626
      $region54: #{tpu_custom_call.1} parent=5 // pred_check_branch
        %629 = sbr.rel (%p627) target = $region56
      $region55: #{tpu_custom_call.1} parent=5 // pred_region
        // Predicated region
        $region57: #{tpu_custom_call.1} parent=55 // pred_check
          %p630 = pneg %p100
        $region58: #{tpu_custom_call.1} parent=55 // pred_check_branch
          %632 = sbr.rel (%p630) target = $region60
        $region59: #{tpu_custom_call.1} parent=55 // pred_region
          %p633 = scmp.lt.s32.totalorder %s52, 1
          %s634 = scalar_select %p633, %s52, 1
          %p635 = scmp.lt.s32.totalorder %s53, 0
          %s636 = scalar_select %p635, %s53, 0
          %s637 = smul.addr %s636, 2
          %s638 = smul.addr %s634, 2
          %s639 = sadd.s32 %s637, %s638
          %s640 = smul.addr %s639, 8
          %s641 = scalar_lea.vmem %s1, %s640
        $region60: #{tpu_custom_call.1} parent=55 // pred_fallthru
          _
        // Predicated region
        $region61: #{tpu_custom_call.1} parent=55 // pred_check
          %p642 = pneg %p128
        $region62: #{tpu_custom_call.1} parent=55 // pred_check_branch
          %644 = sbr.rel (%p642) target = $region64
        $region63: #{tpu_custom_call.1} parent=55 // pred_region
          %p645 = scmp.lt.s32.totalorder %s52, 1
          %s646 = scalar_select %p645, %s52, 1
          %p647 = scmp.lt.s32.totalorder %s53, 0
          %s648 = scalar_select %p647, %s53, 0
          %s649 = smul.addr %s646, 8
          %s650 = sadd.s32 %s648, %s649
          %s651 = smul.addr %s650, 8
          %s652 = scalar_lea.vmem %s2, %s651
        $region64: #{tpu_custom_call.1} parent=55 // pred_fallthru
          _
      $region56: #{tpu_custom_call.1} parent=5 // pred_fallthru
        _
      %p653 = scmp.le.s32.totalorder 1, %s45
      %p654 = scmp.lt.s32.totalorder %s45, 3
      %p655 = pnand %p653, %p654
      %p656 = pneg %p655
      // Predicated region
      $region65: #{tpu_custom_call.1} parent=5 // pred_check
        _
      $region66: #{tpu_custom_call.1} parent=5 // pred_check_branch
        %658 = sbr.rel (%p655) target = $region68
      $region67: #{tpu_custom_call.1} parent=5 // pred_region
        %s659 = ssub.s32 %s45, 1
        // Predicated region
        $region69: #{tpu_custom_call.1} parent=67 // pred_check
          %p660 = pneg %p155
        $region70: #{tpu_custom_call.1} parent=67 // pred_check_branch
          %662 = sbr.rel (%p660) target = $region72
        $region71: #{tpu_custom_call.1} parent=67 // pred_region
          %663 = dma.done [#allocation4], 7680
        $region72: #{tpu_custom_call.1} parent=67 // pred_fallthru
          _
        // Predicated region
        $region73: #{tpu_custom_call.1} parent=67 // pred_check
          %p664 = pneg %p176
        $region74: #{tpu_custom_call.1} parent=67 // pred_check_branch
          %666 = sbr.rel (%p664) target = $region76
        $region75: #{tpu_custom_call.1} parent=67 // pred_region
          %667 = dma.done [#allocation7], 12288
        $region76: #{tpu_custom_call.1} parent=67 // pred_fallthru
          _
        // Predicated region
        $region77: #{tpu_custom_call.1} parent=67 // pred_check
          %p668 = pneg %p239
        $region78: #{tpu_custom_call.1} parent=67 // pred_check_branch
          %670 = sbr.rel (%p668) target = $region80
        $region79: #{tpu_custom_call.1} parent=67 // pred_region
          %671 = dma.done [#allocation7], 4096
        $region80: #{tpu_custom_call.1} parent=67 // pred_fallthru
          _
        // Predicated region
        $region81: #{tpu_custom_call.1} parent=67 // pred_check
          %p672 = pneg %p281
        $region82: #{tpu_custom_call.1} parent=67 // pred_check_branch
          %674 = sbr.rel (%p672) target = $region84
        $region83: #{tpu_custom_call.1} parent=67 // pred_region
          %675 = dma.done [#allocation10], 4096
        $region84: #{tpu_custom_call.1} parent=67 // pred_fallthru
          _
        %p676 = pneg %p78
        %p677 = pneg %p75
        %p678 = scmp.lt.s32.totalorder %s54, 1
        %s679 = scalar_select %p678, %s54, 1
        %p680 = scmp.lt.s32.totalorder %s55, 0
        %s681 = scalar_select %p680, %s55, 0
        %s682 = smul.addr %s681, 2
        %s683 = smul.addr %s679, 2
        %s684 = sadd.s32 %s682, %s683
        %s685 = smul.addr %s684, 8
        %s686 = scalar_lea.vmem %s1, %s685
        %p687 = pneg %p106
        %p688 = pneg %p103
        %p689 = scmp.lt.s32.totalorder %s54, 1
        %s690 = scalar_select %p689, %s54, 1
        %p691 = scmp.lt.s32.totalorder %s55, 0
        %s692 = scalar_select %p691, %s55, 0
        %s693 = smul.addr %s690, 8
        %s694 = sadd.s32 %s692, %s693
        %s695 = smul.addr %s694, 8
        %s696 = scalar_lea.vmem %s2, %s695
        %p697 = pneg %p134
        %p698 = pneg %p131
        %p699 = pneg %p155
        %p700 = pneg %p152
        %p701 = pneg %p176
        %p702 = pneg %p173
        %p703 = pneg %p197
        %p704 = pneg %p194
        %p705 = pneg %p218
        %p706 = pneg %p215
        %p707 = pneg %p239
        %p708 = pneg %p236
        %p709 = pneg %p260
        %p710 = pneg %p257
        %p711 = pneg %p281
        %p712 = pneg %p278
        %p713 = pneg %p302
        %p714 = pneg %p299
        %p715 = pneg %p323
        %p716 = pneg %p320
        %p717 = pneg %p351
        %p718 = pneg %p348
        %s719 = sand.u32 %s338, 1
        %s720 = scalar_lea.sflag [#allocation5], %s719
        %s721 = sand.u32 %s338, 1
        %s722 = smul.addr %s721, 8
        %s723 = scalar_lea.vmem [#allocation11], %s722
        %p724 = pneg %p379
        %p725 = pneg %p376
        %s726 = sand.u32 %s50, 1
        %s727 = scalar_lea.sflag [#allocation13], %s726
        %s728 = sand.u32 %s366, 1
        %s729 = smul.addr %s728, 8
        %s730 = scalar_lea.vmem [#allocation12], %s729
        %p731 = pneg %p407
        %p732 = pneg %p404
        %s733 = sand.u32 %s50, 1
        %s734 = scalar_lea.sflag [#allocation13], %s733
        %s735 = sand.u32 %s394, 1
        %s736 = smul.addr %s735, 8
        %s737 = scalar_lea.vmem [#allocation14], %s736
        %p738 = pneg %p435
        %p739 = pneg %p432
        %s740 = sand.u32 %s50, 1
        %s741 = scalar_lea.sflag [#allocation16], %s740
        %s742 = sand.u32 %s422, 1
        %s743 = smul.addr %s742, 8
        %s744 = scalar_lea.vmem [#allocation15], %s743
        %p745 = pneg %p463
        %p746 = pneg %p460
        %s747 = sand.u32 %s50, 1
        %s748 = scalar_lea.sflag [#allocation16], %s747
        %s749 = sand.u32 %s450, 1
        %s750 = smul.addr %s749, 8
        %s751 = scalar_lea.vmem [#allocation17], %s750
        %p752 = pneg %p489
        %p753 = pneg %p486
        %s754 = sand.u32 %s50, 1
        %s755 = scalar_lea.sflag [#allocation19], %s754
        %s756 = sand.u32 %s476, 1
        %s757 = smul.addr %s756, 2
        %s758 = scalar_lea.vmem [#allocation18], %s757
        %p759 = pneg %p515
        %p760 = pneg %p512
        %s761 = sand.u32 %s50, 1
        %s762 = scalar_lea.sflag [#allocation19], %s761
        %s763 = sand.u32 %s502, 1
        %s764 = smul.addr %s763, 2
        %s765 = scalar_lea.vmem [#allocation20], %s764
        %p766 = pneg %p541
        %p767 = pneg %p538
        %s768 = sand.u32 %s528, 1
        %s769 = scalar_lea.sflag [#allocation22], %s768
        %s770 = sand.u32 %s528, 1
        %s771 = smul.addr %s770, 2
        %s772 = scalar_lea.vmem [#allocation21], %s771
        %p773 = scmp.lt.s32.totalorder %s54, 1
        %s774 = scalar_select %p773, %s54, 1
        %p775 = scmp.lt.s32.totalorder %s55, 0
        %s776 = scalar_select %p775, %s55, 0
        %s777 = smul.addr %s776, 2
        %s778 = smul.addr %s774, 2
        %s779 = sadd.s32 %s777, %s778
        %s780 = smul.addr %s779, 8
        %s781 = scalar_lea.vmem %s1, %s780
        %p782 = scmp.lt.s32.totalorder %s54, 1
        %s783 = scalar_select %p782, %s54, 1
        %p784 = scmp.lt.s32.totalorder %s55, 0
        %s785 = scalar_select %p784, %s55, 0
        %s786 = smul.addr %s783, 8
        %s787 = sadd.s32 %s785, %s786
        %s788 = smul.addr %s787, 8
        %s789 = scalar_lea.vmem %s2, %s788
        %s791 = sld [smem:[#allocation2]]
        %v792 = vld [vmem:[%s781] sm:$0xff]
        %v793 = vld [vmem:[%s781 + $0x8] sm:$0xff]
        %v794 = vpack.c.bf16 %v792, %v792
        %v795 = vpack.c.bf16 %v793, %v793
        %v796 = vld [vmem:[#allocation3] sm:$0xff]
        %v797 = vld [vmem:[#allocation3 + $0x8] sm:$0xff]
        %v798 = vld [vmem:[#allocation3 + $0x10] sm:$0xff]
        %v799 = vld [vmem:[#allocation3 + $0x18] sm:$0xff]
        %v800 = vld [vmem:[#allocation3 + $0x20] sm:$0xff]
        %v801 = vld [vmem:[#allocation3 + $0x28] sm:$0xff]
        %v802 = vld [vmem:[#allocation3 + $0x30] sm:$0xff]
        %v803 = vld [vmem:[#allocation3 + $0x38] sm:$0xff]
        %v804 = vld [vmem:[#allocation3 + $0x40] sm:$0xff]
        %v805 = vld [vmem:[#allocation3 + $0x48] sm:$0xff]
        %v806 = vld [vmem:[#allocation3 + $0x50] sm:$0xff]
        %v807 = vld [vmem:[#allocation3 + $0x58] sm:$0xff]
        %v808 = vld [vmem:[#allocation3 + $0x60] sm:$0xff]
        %v809 = vld [vmem:[#allocation3 + $0x68] sm:$0xff]
        %v810 = vld [vmem:[#allocation3 + $0x70] sm:$0xff]
        %v811 = vld [vmem:[#allocation3 + $0x78] sm:$0xff]
        %v812 = vld [vmem:[#allocation3 + $0x80] sm:$0xff]
        %v813 = vld [vmem:[#allocation3 + $0x88] sm:$0xff]
        %v814 = vld [vmem:[#allocation3 + $0x90] sm:$0xff]
        %v815 = vld [vmem:[#allocation3 + $0x98] sm:$0xff]
        %v816 = vld [vmem:[#allocation3 + $0xa0] sm:$0xff]
        %v817 = vld [vmem:[#allocation3 + $0xa8] sm:$0xff]
        %v818 = vld [vmem:[#allocation3 + $0xb0] sm:$0xff]
        %v819 = vld [vmem:[#allocation3 + $0xb8] sm:$0xff]
        %v820 = vld [vmem:[#allocation3 + $0xc0] sm:$0xff]
        %v821 = vld [vmem:[#allocation3 + $0xc8] sm:$0xff]
        %v822 = vld [vmem:[#allocation3 + $0xd0] sm:$0xff]
        %v823 = vld [vmem:[#allocation3 + $0xd8] sm:$0xff]
        %v824 = vld [vmem:[#allocation3 + $0xe0] sm:$0xff]
        %v825 = vld [vmem:[#allocation3 + $0xe8] sm:$0xff]
        %v826 = vld [vmem:[#allocation3 + $0xf0] sm:$0xff]
        %v827 = vld [vmem:[#allocation3 + $0xf8] sm:$0xff]
        %v828 = vld [vmem:[#allocation3 + $0x100] sm:$0xff]
        %v829 = vld [vmem:[#allocation3 + $0x108] sm:$0xff]
        %v830 = vld [vmem:[#allocation3 + $0x110] sm:$0xff]
        %v831 = vld [vmem:[#allocation3 + $0x118] sm:$0xff]
        %v832 = vld [vmem:[#allocation3 + $0x120] sm:$0xff]
        %v833 = vld [vmem:[#allocation3 + $0x128] sm:$0xff]
        %v834 = vld [vmem:[#allocation3 + $0x130] sm:$0xff]
        %v835 = vld [vmem:[#allocation3 + $0x138] sm:$0xff]
        %v836 = vld [vmem:[#allocation3 + $0x140] sm:$0xff]
        %v837 = vld [vmem:[#allocation3 + $0x148] sm:$0xff]
        %v838 = vld [vmem:[#allocation3 + $0x150] sm:$0xff]
        %v839 = vld [vmem:[#allocation3 + $0x158] sm:$0xff]
        %v840 = vld [vmem:[#allocation3 + $0x160] sm:$0xff]
        %v841 = vld [vmem:[#allocation3 + $0x168] sm:$0xff]
        %v842 = vld [vmem:[#allocation3 + $0x170] sm:$0xff]
        %v843 = vld [vmem:[#allocation3 + $0x178] sm:$0xff]
        %v844 = vld [vmem:[#allocation3 + $0x180] sm:$0xff]
        %v845 = vld [vmem:[#allocation3 + $0x188] sm:$0xff]
        %v846 = vld [vmem:[#allocation3 + $0x190] sm:$0xff]
        %v847 = vld [vmem:[#allocation3 + $0x198] sm:$0xff]
        %v848 = vld [vmem:[#allocation3 + $0x1a0] sm:$0xff]
        %v849 = vld [vmem:[#allocation3 + $0x1a8] sm:$0xff]
        %v850 = vld [vmem:[#allocation3 + $0x1b0] sm:$0xff]
        %v851 = vld [vmem:[#allocation3 + $0x1b8] sm:$0xff]
        %v852 = vld [vmem:[#allocation3 + $0x1c0] sm:$0xff]
        %v853 = vld [vmem:[#allocation3 + $0x1c8] sm:$0xff]
        %v854 = vld [vmem:[#allocation3 + $0x1d0] sm:$0xff]
        %v855 = vld [vmem:[#allocation3 + $0x1d8] sm:$0xff]
        %v916 = vunpack.c.l.b16 %v796
        %v917 = vunpack.c.h.b16 %v796
        %v918 = vunpack.c.l.b16 %v797
        %v919 = vunpack.c.h.b16 %v797
        %v920 = vunpack.c.l.b16 %v798
        %v921 = vunpack.c.h.b16 %v798
        %v922 = vunpack.c.l.b16 %v799
        %v923 = vunpack.c.h.b16 %v799
        %v924 = vunpack.c.l.b16 %v800
        %v925 = vunpack.c.h.b16 %v800
        %v926 = vunpack.c.l.b16 %v801
        %v927 = vunpack.c.h.b16 %v801
        %v928 = vunpack.c.l.b16 %v802
        %v929 = vunpack.c.h.b16 %v802
        %v930 = vunpack.c.l.b16 %v803
        %v931 = vunpack.c.h.b16 %v803
        %v932 = vunpack.c.l.b16 %v804
        %v933 = vunpack.c.h.b16 %v804
        %v934 = vunpack.c.l.b16 %v805
        %v935 = vunpack.c.h.b16 %v805
        %v936 = vunpack.c.l.b16 %v806
        %v937 = vunpack.c.h.b16 %v806
        %v938 = vunpack.c.l.b16 %v807
        %v939 = vunpack.c.h.b16 %v807
        %v940 = vunpack.c.l.b16 %v808
        %v941 = vunpack.c.h.b16 %v808
        %v942 = vunpack.c.l.b16 %v809
        %v943 = vunpack.c.h.b16 %v809
        %v944 = vunpack.c.l.b16 %v810
        %v945 = vunpack.c.h.b16 %v810
        %v946 = vunpack.c.l.b16 %v811
        %v947 = vunpack.c.h.b16 %v811
        %v948 = vunpack.c.l.b16 %v812
        %v949 = vunpack.c.h.b16 %v812
        %v950 = vunpack.c.l.b16 %v813
        %v951 = vunpack.c.h.b16 %v813
        %v952 = vunpack.c.l.b16 %v814
        %v953 = vunpack.c.h.b16 %v814
        %v954 = vunpack.c.l.b16 %v815
        %v955 = vunpack.c.h.b16 %v815
        %v956 = vunpack.c.l.b16 %v816
        %v957 = vunpack.c.h.b16 %v816
        %v958 = vunpack.c.l.b16 %v817
        %v959 = vunpack.c.h.b16 %v817
        %v960 = vunpack.c.l.b16 %v818
        %v961 = vunpack.c.h.b16 %v818
        %v962 = vunpack.c.l.b16 %v819
        %v963 = vunpack.c.h.b16 %v819
        %v964 = vunpack.c.l.b16 %v820
        %v965 = vunpack.c.h.b16 %v820
        %v966 = vunpack.c.l.b16 %v821
        %v967 = vunpack.c.h.b16 %v821
        %v968 = vunpack.c.l.b16 %v822
        %v969 = vunpack.c.h.b16 %v822
        %v970 = vunpack.c.l.b16 %v823
        %v971 = vunpack.c.h.b16 %v823
        %v972 = vunpack.c.l.b16 %v824
        %v973 = vunpack.c.h.b16 %v824
        %v974 = vunpack.c.l.b16 %v825
        %v975 = vunpack.c.h.b16 %v825
        %v976 = vunpack.c.l.b16 %v826
        %v977 = vunpack.c.h.b16 %v826
        %v978 = vunpack.c.l.b16 %v827
        %v979 = vunpack.c.h.b16 %v827
        %v980 = vunpack.c.l.b16 %v828
        %v981 = vunpack.c.h.b16 %v828
        %v982 = vunpack.c.l.b16 %v829
        %v983 = vunpack.c.h.b16 %v829
        %v984 = vunpack.c.l.b16 %v830
        %v985 = vunpack.c.h.b16 %v830
        %v986 = vunpack.c.l.b16 %v831
        %v987 = vunpack.c.h.b16 %v831
        %v988 = vunpack.c.l.b16 %v832
        %v989 = vunpack.c.h.b16 %v832
        %v990 = vunpack.c.l.b16 %v833
        %v991 = vunpack.c.h.b16 %v833
        %v992 = vunpack.c.l.b16 %v834
        %v993 = vunpack.c.h.b16 %v834
        %v994 = vunpack.c.l.b16 %v835
        %v995 = vunpack.c.h.b16 %v835
        %v996 = vunpack.c.l.b16 %v836
        %v997 = vunpack.c.h.b16 %v836
        %v998 = vunpack.c.l.b16 %v837
        %v999 = vunpack.c.h.b16 %v837
        %v1000 = vunpack.c.l.b16 %v838
        %v1001 = vunpack.c.h.b16 %v838
        %v1002 = vunpack.c.l.b16 %v839
        %v1003 = vunpack.c.h.b16 %v839
        %v1004 = vunpack.c.l.b16 %v840
        %v1005 = vunpack.c.h.b16 %v840
        %v1006 = vunpack.c.l.b16 %v841
        %v1007 = vunpack.c.h.b16 %v841
        %v1008 = vunpack.c.l.b16 %v842
        %v1009 = vunpack.c.h.b16 %v842
        %v1010 = vunpack.c.l.b16 %v843
        %v1011 = vunpack.c.h.b16 %v843
        %v1012 = vunpack.c.l.b16 %v844
        %v1013 = vunpack.c.h.b16 %v844
        %v1014 = vunpack.c.l.b16 %v845
        %v1015 = vunpack.c.h.b16 %v845
        %v1016 = vunpack.c.l.b16 %v846
        %v1017 = vunpack.c.h.b16 %v846
        %v1018 = vunpack.c.l.b16 %v847
        %v1019 = vunpack.c.h.b16 %v847
        %v1020 = vunpack.c.l.b16 %v848
        %v1021 = vunpack.c.h.b16 %v848
        %v1022 = vunpack.c.l.b16 %v849
        %v1023 = vunpack.c.h.b16 %v849
        %v1024 = vunpack.c.l.b16 %v850
        %v1025 = vunpack.c.h.b16 %v850
        %v1026 = vunpack.c.l.b16 %v851
        %v1027 = vunpack.c.h.b16 %v851
        %v1028 = vunpack.c.l.b16 %v852
        %v1029 = vunpack.c.h.b16 %v852
        %v1030 = vunpack.c.l.b16 %v853
        %v1031 = vunpack.c.h.b16 %v853
        %v1032 = vunpack.c.l.b16 %v854
        %v1033 = vunpack.c.h.b16 %v854
        %v1034 = vunpack.c.l.b16 %v855
        %v1035 = vunpack.c.h.b16 %v855
        %v1036 = vpack.c.b16 %v922, %v916
        %v1037 = vpack.c.b16 %v923, %v917
        %v1038 = vpack.c.b16 %v924, %v918
        %v1039 = vpack.c.b16 %v925, %v919
        %v1040 = vpack.c.b16 %v926, %v920
        %v1041 = vpack.c.b16 %v927, %v921
        %v1042 = vpack.c.b16 %v934, %v928
        %v1043 = vpack.c.b16 %v935, %v929
        %v1044 = vpack.c.b16 %v936, %v930
        %v1045 = vpack.c.b16 %v937, %v931
        %v1046 = vpack.c.b16 %v938, %v932
        %v1047 = vpack.c.b16 %v939, %v933
        %v1048 = vpack.c.b16 %v946, %v940
        %v1049 = vpack.c.b16 %v947, %v941
        %v1050 = vpack.c.b16 %v948, %v942
        %v1051 = vpack.c.b16 %v949, %v943
        %v1052 = vpack.c.b16 %v950, %v944
        %v1053 = vpack.c.b16 %v951, %v945
        %v1054 = vpack.c.b16 %v958, %v952
        %v1055 = vpack.c.b16 %v959, %v953
        %v1056 = vpack.c.b16 %v960, %v954
        %v1057 = vpack.c.b16 %v961, %v955
        %v1058 = vpack.c.b16 %v962, %v956
        %v1059 = vpack.c.b16 %v963, %v957
        %v1060 = vpack.c.b16 %v970, %v964
        %v1061 = vpack.c.b16 %v971, %v965
        %v1062 = vpack.c.b16 %v972, %v966
        %v1063 = vpack.c.b16 %v973, %v967
        %v1064 = vpack.c.b16 %v974, %v968
        %v1065 = vpack.c.b16 %v975, %v969
        %v1066 = vpack.c.b16 %v982, %v976
        %v1067 = vpack.c.b16 %v983, %v977
        %v1068 = vpack.c.b16 %v984, %v978
        %v1069 = vpack.c.b16 %v985, %v979
        %v1070 = vpack.c.b16 %v986, %v980
        %v1071 = vpack.c.b16 %v987, %v981
        %v1072 = vpack.c.b16 %v994, %v988
        %v1073 = vpack.c.b16 %v995, %v989
        %v1074 = vpack.c.b16 %v996, %v990
        %v1075 = vpack.c.b16 %v997, %v991
        %v1076 = vpack.c.b16 %v998, %v992
        %v1077 = vpack.c.b16 %v999, %v993
        %v1078 = vpack.c.b16 %v1006, %v1000
        %v1079 = vpack.c.b16 %v1007, %v1001
        %v1080 = vpack.c.b16 %v1008, %v1002
        %v1081 = vpack.c.b16 %v1009, %v1003
        %v1082 = vpack.c.b16 %v1010, %v1004
        %v1083 = vpack.c.b16 %v1011, %v1005
        %v1084 = vpack.c.b16 %v1018, %v1012
        %v1085 = vpack.c.b16 %v1019, %v1013
        %v1086 = vpack.c.b16 %v1020, %v1014
        %v1087 = vpack.c.b16 %v1021, %v1015
        %v1088 = vpack.c.b16 %v1022, %v1016
        %v1089 = vpack.c.b16 %v1023, %v1017
        %v1090 = vpack.c.b16 %v1030, %v1024
        %v1091 = vpack.c.b16 %v1031, %v1025
        %v1092 = vpack.c.b16 %v1032, %v1026
        %v1093 = vpack.c.b16 %v1033, %v1027
        %v1094 = vpack.c.b16 %v1034, %v1028
        %v1095 = vpack.c.b16 %v1035, %v1029
        %vm1156 = vcmask 261120
        %v1158 = vsel %vm1156, %v795, 0
        %1160 = vmatprep.subr.bf16.mxu0 %v1037
        %1161 = vmatpush1.bf16.msra.mxu0 %v1036
        %1162 = vmatprep.subr.bf16.mxu0 %v1043
        %1163 = vmatpush1.bf16.msra.mxu0 %v1042
        %1164 = vmatprep.subr.bf16.mxu0 %v1049
        %1165 = vmatpush1.bf16.msra.mxu0 %v1048
        %1166 = vmatprep.subr.bf16.mxu0 %v1055
        %1167 = vmatpush1.bf16.msra.mxu0 %v1054
        %1168 = vmatprep.subr.bf16.mxu0 %v1061
        %1169 = vmatpush1.bf16.msra.mxu0 %v1060
        %1170 = vmatprep.subr.bf16.mxu0 %v1067
        %1171 = vmatpush1.bf16.msra.mxu0 %v1066
        %1172 = vmatprep.subr.bf16.mxu0 %v1073
        %1173 = vmatpush1.bf16.msra.mxu0 %v1072
        %1174 = vmatprep.subr.bf16.mxu0 %v1079
        %1175 = vmatpush1.bf16.msra.mxu0 %v1078
        %1176 = vmatprep.subr.bf16.mxu0 %v1085
        %1177 = vmatpush1.bf16.msra.mxu0 %v1084
        %1178 = vmatprep.subr.bf16.mxu0 %v1091
        %1179 = vmatpush1.bf16.msra.mxu0 %v1090
        %1180 = vmatprep.subr.bf16.mxu0 0
        %1181 = vmatpush1.bf16.msra.mxu0 0
        %1182 = vmatprep.subr.bf16.mxu0 0
        %1183 = vmatpush1.bf16.msra.mxu0 0
        %1184 = vmatprep.subr.bf16.mxu0 0
        %1185 = vmatpush1.bf16.msra.mxu0 0
        %1186 = vmatprep.subr.bf16.mxu0 0
        %1187 = vmatpush1.bf16.msra.mxu0 0
        %1188 = vmatprep.subr.bf16.mxu0 0
        %1189 = vmatpush1.bf16.msra.mxu0 0
        %1190 = vmatprep.subr.bf16.mxu0 0
        %1191 = vmatpush1.bf16.msra.mxu0 0
        %1192 = vmatprep.mubr.bf16.mxu0 %v1158
        %1193 = vmatmul.mubr.bf16.gmra.mrb[0].mxu0 %v794
        %v1194 = vpop.f32.mrb[0].mxu0
        %v1195 = vadd.f32 0.0, %v1194
        %v1196 = vpop.f32.mrb[0].mxu0
        %v1197 = vadd.f32 0.0, %v1196
        %v1198 = vpop.f32.mrb[0].mxu0
        %v1199 = vpop.f32.mrb[0].mxu0
        %1200 = vdwg.mxu0
        %1201 = vmatprep.subr.bf16.mxu0 %v1039
        %1202 = vmatpush1.bf16.msra.mxu0 %v1038
        %1203 = vmatprep.subr.bf16.mxu0 %v1045
        %1204 = vmatpush1.bf16.msra.mxu0 %v1044
        %1205 = vmatprep.subr.bf16.mxu0 %v1051
        %1206 = vmatpush1.bf16.msra.mxu0 %v1050
        %1207 = vmatprep.subr.bf16.mxu0 %v1057
        %1208 = vmatpush1.bf16.msra.mxu0 %v1056
        %1209 = vmatprep.subr.bf16.mxu0 %v1063
        %1210 = vmatpush1.bf16.msra.mxu0 %v1062
        %1211 = vmatprep.subr.bf16.mxu0 %v1069
        %1212 = vmatpush1.bf16.msra.mxu0 %v1068
        %1213 = vmatprep.subr.bf16.mxu0 %v1075
        %1214 = vmatpush1.bf16.msra.mxu0 %v1074
        %1215 = vmatprep.subr.bf16.mxu0 %v1081
        %1216 = vmatpush1.bf16.msra.mxu0 %v1080
        %1217 = vmatprep.subr.bf16.mxu0 %v1087
        %1218 = vmatpush1.bf16.msra.mxu0 %v1086
        %1219 = vmatprep.subr.bf16.mxu0 %v1093
        %1220 = vmatpush1.bf16.msra.mxu0 %v1092
        %1221 = vmatprep.subr.bf16.mxu0 0
        %1222 = vmatpush1.bf16.msra.mxu0 0
        %1223 = vmatprep.subr.bf16.mxu0 0
        %1224 = vmatpush1.bf16.msra.mxu0 0
        %1225 = vmatprep.subr.bf16.mxu0 0
        %1226 = vmatpush1.bf16.msra.mxu0 0
        %1227 = vmatprep.subr.bf16.mxu0 0
        %1228 = vmatpush1.bf16.msra.mxu0 0
        %1229 = vmatprep.subr.bf16.mxu0 0
        %1230 = vmatpush1.bf16.msra.mxu0 0
        %1231 = vmatprep.subr.bf16.mxu0 0
        %1232 = vmatpush1.bf16.msra.mxu0 0
        %1233 = vmatprep.mubr.bf16.mxu0 %v1158
        %1234 = vmatmul.mubr.bf16.gmra.mrb[0].mxu0 %v794
        %v1235 = vpop.f32.mrb[0].mxu0
        %v1236 = vadd.f32 0.0, %v1235
        %v1237 = vpop.f32.mrb[0].mxu0
        %v1238 = vadd.f32 0.0, %v1237
        %v1239 = vpop.f32.mrb[0].mxu0
        %v1240 = vpop.f32.mrb[0].mxu0
        %1241 = vdwg.mxu0
        %1242 = vmatprep.subr.bf16.mxu0 %v1041
        %1243 = vmatpush1.bf16.msra.mxu0 %v1040
        %1244 = vmatprep.subr.bf16.mxu0 %v1047
        %1245 = vmatpush1.bf16.msra.mxu0 %v1046
        %1246 = vmatprep.subr.bf16.mxu0 %v1053
        %1247 = vmatpush1.bf16.msra.mxu0 %v1052
        %1248 = vmatprep.subr.bf16.mxu0 %v1059
        %1249 = vmatpush1.bf16.msra.mxu0 %v1058
        %1250 = vmatprep.subr.bf16.mxu0 %v1065
        %1251 = vmatpush1.bf16.msra.mxu0 %v1064
        %1252 = vmatprep.subr.bf16.mxu0 %v1071
        %1253 = vmatpush1.bf16.msra.mxu0 %v1070
        %1254 = vmatprep.subr.bf16.mxu0 %v1077
        %1255 = vmatpush1.bf16.msra.mxu0 %v1076
        %1256 = vmatprep.subr.bf16.mxu0 %v1083
        %1257 = vmatpush1.bf16.msra.mxu0 %v1082
        %1258 = vmatprep.subr.bf16.mxu0 %v1089
        %1259 = vmatpush1.bf16.msra.mxu0 %v1088
        %1260 = vmatprep.subr.bf16.mxu0 %v1095
        %1261 = vmatpush1.bf16.msra.mxu0 %v1094
        %1262 = vmatprep.subr.bf16.mxu0 0
        %1263 = vmatpush1.bf16.msra.mxu0 0
        %1264 = vmatprep.subr.bf16.mxu0 0
        %1265 = vmatpush1.bf16.msra.mxu0 0
        %1266 = vmatprep.subr.bf16.mxu0 0
        %1267 = vmatpush1.bf16.msra.mxu0 0
        %1268 = vmatprep.subr.bf16.mxu0 0
        %1269 = vmatpush1.bf16.msra.mxu0 0
        %1270 = vmatprep.subr.bf16.mxu0 0
        %1271 = vmatpush1.bf16.msra.mxu0 0
        %1272 = vmatprep.subr.bf16.mxu0 0
        %1273 = vmatpush1.bf16.msra.mxu0 0
        %1274 = vmatprep.mubr.bf16.mxu0 %v1158
        %1275 = vmatmul.mubr.bf16.gmra.mrb[0].mxu0 %v794
        %v1276 = vpop.f32.mrb[0].mxu0
        %v1277 = vadd.f32 0.0, %v1276
        %v1278 = vpop.f32.mrb[0].mxu0
        %v1279 = vadd.f32 0.0, %v1278
        %v1280 = vpop.f32.mrb[0].mxu0
        %v1281 = vpop.f32.mrb[0].mxu0
        %1282 = vdwg.mxu0
        %v1283 = vpack.c.bf16 %v1195, %v1195
        %v1284 = vpack.c.bf16 %v1197, %v1197
        %v1285 = vpack.c.bf16 %v1236, %v1236
        %v1286 = vpack.c.bf16 %v1238, %v1238
        %v1287 = vpack.c.bf16 %v1277, %v1277
        %v1288 = vpack.c.bf16 %v1279, %v1279
        %v1289 = vld [vmem:[#allocation6] sm:$0xff]
        %v1290 = vld [vmem:[#allocation6 + $0x8] sm:$0xff]
        %v1291 = vld [vmem:[#allocation6 + $0x10] sm:$0xff]
        %v1292 = vld [vmem:[#allocation6 + $0x18] sm:$0xff]
        %v1293 = vld [vmem:[#allocation6 + $0x20] sm:$0xff]
        %v1294 = vld [vmem:[#allocation6 + $0x28] sm:$0xff]
        %v1295 = vld [vmem:[#allocation6 + $0x30] sm:$0xff]
        %v1296 = vld [vmem:[#allocation6 + $0x38] sm:$0xff]
        %v1297 = vld [vmem:[#allocation6 + $0x40] sm:$0xff]
        %v1298 = vld [vmem:[#allocation6 + $0x48] sm:$0xff]
        %v1299 = vld [vmem:[#allocation6 + $0x50] sm:$0xff]
        %v1300 = vld [vmem:[#allocation6 + $0x58] sm:$0xff]
        %v1301 = vld [vmem:[#allocation6 + $0x60] sm:$0xff]
        %v1302 = vld [vmem:[#allocation6 + $0x68] sm:$0xff]
        %v1303 = vld [vmem:[#allocation6 + $0x70] sm:$0xff]
        %v1304 = vld [vmem:[#allocation6 + $0x78] sm:$0xff]
        %v1305 = vld [vmem:[#allocation6 + $0x80] sm:$0xff]
        %v1306 = vld [vmem:[#allocation6 + $0x88] sm:$0xff]
        %v1307 = vld [vmem:[#allocation6 + $0x90] sm:$0xff]
        %v1308 = vld [vmem:[#allocation6 + $0x98] sm:$0xff]
        %v1309 = vld [vmem:[#allocation6 + $0xa0] sm:$0xff]
        %v1310 = vld [vmem:[#allocation6 + $0xa8] sm:$0xff]
        %v1311 = vld [vmem:[#allocation6 + $0xb0] sm:$0xff]
        %v1312 = vld [vmem:[#allocation6 + $0xb8] sm:$0xff]
        %v1313 = vld [vmem:[#allocation6 + $0xc0] sm:$0xff]
        %v1314 = vld [vmem:[#allocation6 + $0xc8] sm:$0xff]
        %v1315 = vld [vmem:[#allocation6 + $0xd0] sm:$0xff]
        %v1316 = vld [vmem:[#allocation6 + $0xd8] sm:$0xff]
        %v1317 = vld [vmem:[#allocation6 + $0xe0] sm:$0xff]
        %v1318 = vld [vmem:[#allocation6 + $0xe8] sm:$0xff]
        %v1319 = vld [vmem:[#allocation6 + $0xf0] sm:$0xff]
        %v1320 = vld [vmem:[#allocation6 + $0xf8] sm:$0xff]
        %v1321 = vld [vmem:[#allocation6 + $0x100] sm:$0xff]
        %v1322 = vld [vmem:[#allocation6 + $0x108] sm:$0xff]
        %v1323 = vld [vmem:[#allocation6 + $0x110] sm:$0xff]
        %v1324 = vld [vmem:[#allocation6 + $0x118] sm:$0xff]
        %v1325 = vld [vmem:[#allocation6 + $0x120] sm:$0xff]
        %v1326 = vld [vmem:[#allocation6 + $0x128] sm:$0xff]
        %v1327 = vld [vmem:[#allocation6 + $0x130] sm:$0xff]
        %v1328 = vld [vmem:[#allocation6 + $0x138] sm:$0xff]
        %v1329 = vld [vmem:[#allocation6 + $0x140] sm:$0xff]
        %v1330 = vld [vmem:[#allocation6 + $0x148] sm:$0xff]
        %v1331 = vld [vmem:[#allocation6 + $0x150] sm:$0xff]
        %v1332 = vld [vmem:[#allocation6 + $0x158] sm:$0xff]
        %v1333 = vld [vmem:[#allocation6 + $0x160] sm:$0xff]
        %v1334 = vld [vmem:[#allocation6 + $0x168] sm:$0xff]
        %v1335 = vld [vmem:[#allocation6 + $0x170] sm:$0xff]
        %v1336 = vld [vmem:[#allocation6 + $0x178] sm:$0xff]
        %v1337 = vld [vmem:[#allocation6 + $0x180] sm:$0xff]
        %v1338 = vld [vmem:[#allocation6 + $0x188] sm:$0xff]
        %v1339 = vld [vmem:[#allocation6 + $0x190] sm:$0xff]
        %v1340 = vld [vmem:[#allocation6 + $0x198] sm:$0xff]
        %v1341 = vld [vmem:[#allocation6 + $0x1a0] sm:$0xff]
        %v1342 = vld [vmem:[#allocation6 + $0x1a8] sm:$0xff]
        %v1343 = vld [vmem:[#allocation6 + $0x1b0] sm:$0xff]
        %v1344 = vld [vmem:[#allocation6 + $0x1b8] sm:$0xff]
        %v1345 = vld [vmem:[#allocation6 + $0x1c0] sm:$0xff]
        %v1346 = vld [vmem:[#allocation6 + $0x1c8] sm:$0xff]
        %v1347 = vld [vmem:[#allocation6 + $0x1d0] sm:$0xff]
        %v1348 = vld [vmem:[#allocation6 + $0x1d8] sm:$0xff]
        %v1349 = vld [vmem:[#allocation6 + $0x1e0] sm:$0xff]
        %v1350 = vld [vmem:[#allocation6 + $0x1e8] sm:$0xff]
        %v1351 = vld [vmem:[#allocation6 + $0x1f0] sm:$0xff]
        %v1352 = vld [vmem:[#allocation6 + $0x1f8] sm:$0xff]
        %v1353 = vld [vmem:[#allocation6 + $0x200] sm:$0xff]
        %v1354 = vld [vmem:[#allocation6 + $0x208] sm:$0xff]
        %v1355 = vld [vmem:[#allocation6 + $0x210] sm:$0xff]
        %v1356 = vld [vmem:[#allocation6 + $0x218] sm:$0xff]
        %v1357 = vld [vmem:[#allocation6 + $0x220] sm:$0xff]
        %v1358 = vld [vmem:[#allocation6 + $0x228] sm:$0xff]
        %v1359 = vld [vmem:[#allocation6 + $0x230] sm:$0xff]
        %v1360 = vld [vmem:[#allocation6 + $0x238] sm:$0xff]
        %v1361 = vld [vmem:[#allocation6 + $0x240] sm:$0xff]
        %v1362 = vld [vmem:[#allocation6 + $0x248] sm:$0xff]
        %v1363 = vld [vmem:[#allocation6 + $0x250] sm:$0xff]
        %v1364 = vld [vmem:[#allocation6 + $0x258] sm:$0xff]
        %v1365 = vld [vmem:[#allocation6 + $0x260] sm:$0xff]
        %v1366 = vld [vmem:[#allocation6 + $0x268] sm:$0xff]
        %v1367 = vld [vmem:[#allocation6 + $0x270] sm:$0xff]
        %v1368 = vld [vmem:[#allocation6 + $0x278] sm:$0xff]
        %v1369 = vld [vmem:[#allocation6 + $0x280] sm:$0xff]
        %v1370 = vld [vmem:[#allocation6 + $0x288] sm:$0xff]
        %v1371 = vld [vmem:[#allocation6 + $0x290] sm:$0xff]
        %v1372 = vld [vmem:[#allocation6 + $0x298] sm:$0xff]
        %v1373 = vld [vmem:[#allocation6 + $0x2a0] sm:$0xff]
        %v1374 = vld [vmem:[#allocation6 + $0x2a8] sm:$0xff]
        %v1375 = vld [vmem:[#allocation6 + $0x2b0] sm:$0xff]
        %v1376 = vld [vmem:[#allocation6 + $0x2b8] sm:$0xff]
        %v1377 = vld [vmem:[#allocation6 + $0x2c0] sm:$0xff]
        %v1378 = vld [vmem:[#allocation6 + $0x2c8] sm:$0xff]
        %v1379 = vld [vmem:[#allocation6 + $0x2d0] sm:$0xff]
        %v1380 = vld [vmem:[#allocation6 + $0x2d8] sm:$0xff]
        %v1381 = vld [vmem:[#allocation6 + $0x2e0] sm:$0xff]
        %v1382 = vld [vmem:[#allocation6 + $0x2e8] sm:$0xff]
        %v1383 = vld [vmem:[#allocation6 + $0x2f0] sm:$0xff]
        %v1384 = vld [vmem:[#allocation6 + $0x2f8] sm:$0xff]
        %v1385 = vld [vmem:[%s5] sm:$0x3]
        %v1387 = vlaneseq
        %v1388 = vshrl.u32 %v1387, 7
        %v1389 = vsub.s32 0, %v1388
        %v1390 = vrot.slane %v1385, %v1389
        %v1391 = vlaneseq
        %v1392 = vshrl.u32 %v1391, 7
        %v1393 = vsub.s32 1, %v1392
        %v1394 = vrot.slane %v1385, %v1393
        %v1493 = vunpack.c.l.b16 %v1289
        %v1494 = vunpack.c.h.b16 %v1289
        %v1495 = vunpack.c.l.b16 %v1290
        %v1496 = vunpack.c.h.b16 %v1290
        %v1497 = vunpack.c.l.b16 %v1291
        %v1498 = vunpack.c.h.b16 %v1291
        %v1499 = vunpack.c.l.b16 %v1292
        %v1500 = vunpack.c.h.b16 %v1292
        %v1501 = vunpack.c.l.b16 %v1293
        %v1502 = vunpack.c.h.b16 %v1293
        %v1503 = vunpack.c.l.b16 %v1294
        %v1504 = vunpack.c.h.b16 %v1294
        %v1505 = vunpack.c.l.b16 %v1295
        %v1506 = vunpack.c.h.b16 %v1295
        %v1507 = vunpack.c.l.b16 %v1296
        %v1508 = vunpack.c.h.b16 %v1296
        %v1509 = vunpack.c.l.b16 %v1297
        %v1510 = vunpack.c.h.b16 %v1297
        %v1511 = vunpack.c.l.b16 %v1298
        %v1512 = vunpack.c.h.b16 %v1298
        %v1513 = vunpack.c.l.b16 %v1299
        %v1514 = vunpack.c.h.b16 %v1299
        %v1515 = vunpack.c.l.b16 %v1300
        %v1516 = vunpack.c.h.b16 %v1300
        %v1517 = vunpack.c.l.b16 %v1301
        %v1518 = vunpack.c.h.b16 %v1301
        %v1519 = vunpack.c.l.b16 %v1302
        %v1520 = vunpack.c.h.b16 %v1302
        %v1521 = vunpack.c.l.b16 %v1303
        %v1522 = vunpack.c.h.b16 %v1303
        %v1523 = vunpack.c.l.b16 %v1304
        %v1524 = vunpack.c.h.b16 %v1304
        %v1525 = vunpack.c.l.b16 %v1305
        %v1526 = vunpack.c.h.b16 %v1305
        %v1527 = vunpack.c.l.b16 %v1306
        %v1528 = vunpack.c.h.b16 %v1306
        %v1529 = vunpack.c.l.b16 %v1307
        %v1530 = vunpack.c.h.b16 %v1307
        %v1531 = vunpack.c.l.b16 %v1308
        %v1532 = vunpack.c.h.b16 %v1308
        %v1533 = vunpack.c.l.b16 %v1309
        %v1534 = vunpack.c.h.b16 %v1309
        %v1535 = vunpack.c.l.b16 %v1310
        %v1536 = vunpack.c.h.b16 %v1310
        %v1537 = vunpack.c.l.b16 %v1311
        %v1538 = vunpack.c.h.b16 %v1311
        %v1539 = vunpack.c.l.b16 %v1312
        %v1540 = vunpack.c.h.b16 %v1312
        %v1541 = vunpack.c.l.b16 %v1313
        %v1542 = vunpack.c.h.b16 %v1313
        %v1543 = vunpack.c.l.b16 %v1314
        %v1544 = vunpack.c.h.b16 %v1314
        %v1545 = vunpack.c.l.b16 %v1315
        %v1546 = vunpack.c.h.b16 %v1315
        %v1547 = vunpack.c.l.b16 %v1316
        %v1548 = vunpack.c.h.b16 %v1316
        %v1549 = vunpack.c.l.b16 %v1317
        %v1550 = vunpack.c.h.b16 %v1317
        %v1551 = vunpack.c.l.b16 %v1318
        %v1552 = vunpack.c.h.b16 %v1318
        %v1553 = vunpack.c.l.b16 %v1319
        %v1554 = vunpack.c.h.b16 %v1319
        %v1555 = vunpack.c.l.b16 %v1320
        %v1556 = vunpack.c.h.b16 %v1320
        %v1557 = vunpack.c.l.b16 %v1321
        %v1558 = vunpack.c.h.b16 %v1321
        %v1559 = vunpack.c.l.b16 %v1322
        %v1560 = vunpack.c.h.b16 %v1322
        %v1561 = vunpack.c.l.b16 %v1323
        %v1562 = vunpack.c.h.b16 %v1323
        %v1563 = vunpack.c.l.b16 %v1324
        %v1564 = vunpack.c.h.b16 %v1324
        %v1565 = vunpack.c.l.b16 %v1325
        %v1566 = vunpack.c.h.b16 %v1325
        %v1567 = vunpack.c.l.b16 %v1326
        %v1568 = vunpack.c.h.b16 %v1326
        %v1569 = vunpack.c.l.b16 %v1327
        %v1570 = vunpack.c.h.b16 %v1327
        %v1571 = vunpack.c.l.b16 %v1328
        %v1572 = vunpack.c.h.b16 %v1328
        %v1573 = vunpack.c.l.b16 %v1329
        %v1574 = vunpack.c.h.b16 %v1329
        %v1575 = vunpack.c.l.b16 %v1330
        %v1576 = vunpack.c.h.b16 %v1330
        %v1577 = vunpack.c.l.b16 %v1331
        %v1578 = vunpack.c.h.b16 %v1331
        %v1579 = vunpack.c.l.b16 %v1332
        %v1580 = vunpack.c.h.b16 %v1332
        %v1581 = vunpack.c.l.b16 %v1333
        %v1582 = vunpack.c.h.b16 %v1333
        %v1583 = vunpack.c.l.b16 %v1334
        %v1584 = vunpack.c.h.b16 %v1334
        %v1585 = vunpack.c.l.b16 %v1335
        %v1586 = vunpack.c.h.b16 %v1335
        %v1587 = vunpack.c.l.b16 %v1336
        %v1588 = vunpack.c.h.b16 %v1336
        %v1589 = vunpack.c.l.b16 %v1337
        %v1590 = vunpack.c.h.b16 %v1337
        %v1591 = vunpack.c.l.b16 %v1338
        %v1592 = vunpack.c.h.b16 %v1338
        %v1593 = vunpack.c.l.b16 %v1339
        %v1594 = vunpack.c.h.b16 %v1339
        %v1595 = vunpack.c.l.b16 %v1340
        %v1596 = vunpack.c.h.b16 %v1340
        %v1597 = vunpack.c.l.b16 %v1341
        %v1598 = vunpack.c.h.b16 %v1341
        %v1599 = vunpack.c.l.b16 %v1342
        %v1600 = vunpack.c.h.b16 %v1342
        %v1601 = vunpack.c.l.b16 %v1343
        %v1602 = vunpack.c.h.b16 %v1343
        %v1603 = vunpack.c.l.b16 %v1344
        %v1604 = vunpack.c.h.b16 %v1344
        %v1605 = vunpack.c.l.b16 %v1345
        %v1606 = vunpack.c.h.b16 %v1345
        %v1607 = vunpack.c.l.b16 %v1346
        %v1608 = vunpack.c.h.b16 %v1346
        %v1609 = vunpack.c.l.b16 %v1347
        %v1610 = vunpack.c.h.b16 %v1347
        %v1611 = vunpack.c.l.b16 %v1348
        %v1612 = vunpack.c.h.b16 %v1348
        %v1613 = vunpack.c.l.b16 %v1349
        %v1614 = vunpack.c.h.b16 %v1349
        %v1615 = vunpack.c.l.b16 %v1350
        %v1616 = vunpack.c.h.b16 %v1350
        %v1617 = vunpack.c.l.b16 %v1351
        %v1618 = vunpack.c.h.b16 %v1351
        %v1619 = vunpack.c.l.b16 %v1352
        %v1620 = vunpack.c.h.b16 %v1352
        %v1621 = vunpack.c.l.b16 %v1353
        %v1622 = vunpack.c.h.b16 %v1353
        %v1623 = vunpack.c.l.b16 %v1354
        %v1624 = vunpack.c.h.b16 %v1354
        %v1625 = vunpack.c.l.b16 %v1355
        %v1626 = vunpack.c.h.b16 %v1355
        %v1627 = vunpack.c.l.b16 %v1356
        %v1628 = vunpack.c.h.b16 %v1356
        %v1629 = vunpack.c.l.b16 %v1357
        %v1630 = vunpack.c.h.b16 %v1357
        %v1631 = vunpack.c.l.b16 %v1358
        %v1632 = vunpack.c.h.b16 %v1358
        %v1633 = vunpack.c.l.b16 %v1359
        %v1634 = vunpack.c.h.b16 %v1359
        %v1635 = vunpack.c.l.b16 %v1360
        %v1636 = vunpack.c.h.b16 %v1360
        %v1637 = vunpack.c.l.b16 %v1361
        %v1638 = vunpack.c.h.b16 %v1361
        %v1639 = vunpack.c.l.b16 %v1362
        %v1640 = vunpack.c.h.b16 %v1362
        %v1641 = vunpack.c.l.b16 %v1363
        %v1642 = vunpack.c.h.b16 %v1363
        %v1643 = vunpack.c.l.b16 %v1364
        %v1644 = vunpack.c.h.b16 %v1364
        %v1645 = vunpack.c.l.b16 %v1365
        %v1646 = vunpack.c.h.b16 %v1365
        %v1647 = vunpack.c.l.b16 %v1366
        %v1648 = vunpack.c.h.b16 %v1366
        %v1649 = vunpack.c.l.b16 %v1367
        %v1650 = vunpack.c.h.b16 %v1367
        %v1651 = vunpack.c.l.b16 %v1368
        %v1652 = vunpack.c.h.b16 %v1368
        %v1653 = vunpack.c.l.b16 %v1369
        %v1654 = vunpack.c.h.b16 %v1369
        %v1655 = vunpack.c.l.b16 %v1370
        %v1656 = vunpack.c.h.b16 %v1370
        %v1657 = vunpack.c.l.b16 %v1371
        %v1658 = vunpack.c.h.b16 %v1371
        %v1659 = vunpack.c.l.b16 %v1372
        %v1660 = vunpack.c.h.b16 %v1372
        %v1661 = vunpack.c.l.b16 %v1373
        %v1662 = vunpack.c.h.b16 %v1373
        %v1663 = vunpack.c.l.b16 %v1374
        %v1664 = vunpack.c.h.b16 %v1374
        %v1665 = vunpack.c.l.b16 %v1375
        %v1666 = vunpack.c.h.b16 %v1375
        %v1667 = vunpack.c.l.b16 %v1376
        %v1668 = vunpack.c.h.b16 %v1376
        %v1669 = vunpack.c.l.b16 %v1377
        %v1670 = vunpack.c.h.b16 %v1377
        %v1671 = vunpack.c.l.b16 %v1378
        %v1672 = vunpack.c.h.b16 %v1378
        %v1673 = vunpack.c.l.b16 %v1379
        %v1674 = vunpack.c.h.b16 %v1379
        %v1675 = vunpack.c.l.b16 %v1380
        %v1676 = vunpack.c.h.b16 %v1380
        %v1677 = vunpack.c.l.b16 %v1381
        %v1678 = vunpack.c.h.b16 %v1381
        %v1679 = vunpack.c.l.b16 %v1382
        %v1680 = vunpack.c.h.b16 %v1382
        %v1681 = vunpack.c.l.b16 %v1383
        %v1682 = vunpack.c.h.b16 %v1383
        %v1683 = vunpack.c.l.b16 %v1384
        %v1684 = vunpack.c.h.b16 %v1384
        %v1685 = vpack.c.b16 %v1495, %v1493
        %v1686 = vpack.c.b16 %v1496, %v1494
        %v1687 = vpack.c.b16 %v1499, %v1497
        %v1688 = vpack.c.b16 %v1500, %v1498
        %v1689 = vpack.c.b16 %v1503, %v1501
        %v1690 = vpack.c.b16 %v1504, %v1502
        %v1691 = vpack.c.b16 %v1507, %v1505
        %v1692 = vpack.c.b16 %v1508, %v1506
        %v1693 = vpack.c.b16 %v1511, %v1509
        %v1694 = vpack.c.b16 %v1512, %v1510
        %v1695 = vpack.c.b16 %v1515, %v1513
        %v1696 = vpack.c.b16 %v1516, %v1514
        %v1697 = vpack.c.b16 %v1519, %v1517
        %v1698 = vpack.c.b16 %v1520, %v1518
        %v1699 = vpack.c.b16 %v1523, %v1521
        %v1700 = vpack.c.b16 %v1524, %v1522
        %v1701 = vpack.c.b16 %v1527, %v1525
        %v1702 = vpack.c.b16 %v1528, %v1526
        %v1703 = vpack.c.b16 %v1531, %v1529
        %v1704 = vpack.c.b16 %v1532, %v1530
        %v1705 = vpack.c.b16 %v1535, %v1533
        %v1706 = vpack.c.b16 %v1536, %v1534
        %v1707 = vpack.c.b16 %v1539, %v1537
        %v1708 = vpack.c.b16 %v1540, %v1538
        %v1709 = vpack.c.b16 %v1543, %v1541
        %v1710 = vpack.c.b16 %v1544, %v1542
        %v1711 = vpack.c.b16 %v1547, %v1545
        %v1712 = vpack.c.b16 %v1548, %v1546
        %v1713 = vpack.c.b16 %v1551, %v1549
        %v1714 = vpack.c.b16 %v1552, %v1550
        %v1715 = vpack.c.b16 %v1555, %v1553
        %v1716 = vpack.c.b16 %v1556, %v1554
        %v1717 = vpack.c.b16 %v1559, %v1557
        %v1718 = vpack.c.b16 %v1560, %v1558
        %v1719 = vpack.c.b16 %v1563, %v1561
        %v1720 = vpack.c.b16 %v1564, %v1562
        %v1721 = vpack.c.b16 %v1567, %v1565
        %v1722 = vpack.c.b16 %v1568, %v1566
        %v1723 = vpack.c.b16 %v1571, %v1569
        %v1724 = vpack.c.b16 %v1572, %v1570
        %v1725 = vpack.c.b16 %v1575, %v1573
        %v1726 = vpack.c.b16 %v1576, %v1574
        %v1727 = vpack.c.b16 %v1579, %v1577
        %v1728 = vpack.c.b16 %v1580, %v1578
        %v1729 = vpack.c.b16 %v1583, %v1581
        %v1730 = vpack.c.b16 %v1584, %v1582
        %v1731 = vpack.c.b16 %v1587, %v1585
        %v1732 = vpack.c.b16 %v1588, %v1586
        %v1733 = vpack.c.b16 %v1591, %v1589
        %v1734 = vpack.c.b16 %v1592, %v1590
        %v1735 = vpack.c.b16 %v1595, %v1593
        %v1736 = vpack.c.b16 %v1596, %v1594
        %v1737 = vpack.c.b16 %v1599, %v1597
        %v1738 = vpack.c.b16 %v1600, %v1598
        %v1739 = vpack.c.b16 %v1603, %v1601
        %v1740 = vpack.c.b16 %v1604, %v1602
        %v1741 = vpack.c.b16 %v1607, %v1605
        %v1742 = vpack.c.b16 %v1608, %v1606
        %v1743 = vpack.c.b16 %v1611, %v1609
        %v1744 = vpack.c.b16 %v1612, %v1610
        %v1745 = vpack.c.b16 %v1615, %v1613
        %v1746 = vpack.c.b16 %v1616, %v1614
        %v1747 = vpack.c.b16 %v1619, %v1617
        %v1748 = vpack.c.b16 %v1620, %v1618
        %v1749 = vpack.c.b16 %v1623, %v1621
        %v1750 = vpack.c.b16 %v1624, %v1622
        %v1751 = vpack.c.b16 %v1627, %v1625
        %v1752 = vpack.c.b16 %v1628, %v1626
        %v1753 = vpack.c.b16 %v1631, %v1629
        %v1754 = vpack.c.b16 %v1632, %v1630
        %v1755 = vpack.c.b16 %v1635, %v1633
        %v1756 = vpack.c.b16 %v1636, %v1634
        %v1757 = vpack.c.b16 %v1639, %v1637
        %v1758 = vpack.c.b16 %v1640, %v1638
        %v1759 = vpack.c.b16 %v1643, %v1641
        %v1760 = vpack.c.b16 %v1644, %v1642
        %v1761 = vpack.c.b16 %v1647, %v1645
        %v1762 = vpack.c.b16 %v1648, %v1646
        %v1763 = vpack.c.b16 %v1651, %v1649
        %v1764 = vpack.c.b16 %v1652, %v1650
        %v1765 = vpack.c.b16 %v1655, %v1653
        %v1766 = vpack.c.b16 %v1656, %v1654
        %v1767 = vpack.c.b16 %v1659, %v1657
        %v1768 = vpack.c.b16 %v1660, %v1658
        %v1769 = vpack.c.b16 %v1663, %v1661
        %v1770 = vpack.c.b16 %v1664, %v1662
        %v1771 = vpack.c.b16 %v1667, %v1665
        %v1772 = vpack.c.b16 %v1668, %v1666
        %v1773 = vpack.c.b16 %v1671, %v1669
        %v1774 = vpack.c.b16 %v1672, %v1670
        %v1775 = vpack.c.b16 %v1675, %v1673
        %v1776 = vpack.c.b16 %v1676, %v1674
        %v1777 = vpack.c.b16 %v1679, %v1677
        %v1778 = vpack.c.b16 %v1680, %v1678
        %v1779 = vpack.c.b16 %v1683, %v1681
        %v1780 = vpack.c.b16 %v1684, %v1682
        %1877 = vmatprep.subr.bf16.mxu0 %v1686
        %1878 = vmatpush1.bf16.msra.mxu0 %v1685
        %1879 = vmatprep.subr.bf16.mxu0 %v1688
        %1880 = vmatpush1.bf16.msra.mxu0 %v1687
        %1881 = vmatprep.subr.bf16.mxu0 %v1690
        %1882 = vmatpush1.bf16.msra.mxu0 %v1689
        %1883 = vmatprep.subr.bf16.mxu0 %v1692
        %1884 = vmatpush1.bf16.msra.mxu0 %v1691
        %1885 = vmatprep.subr.bf16.mxu0 %v1694
        %1886 = vmatpush1.bf16.msra.mxu0 %v1693
        %1887 = vmatprep.subr.bf16.mxu0 %v1696
        %1888 = vmatpush1.bf16.msra.mxu0 %v1695
        %1889 = vmatprep.subr.bf16.mxu0 %v1698
        %1890 = vmatpush1.bf16.msra.mxu0 %v1697
        %1891 = vmatprep.subr.bf16.mxu0 %v1700
        %1892 = vmatpush1.bf16.msra.mxu0 %v1699
        %1893 = vmatprep.subr.bf16.mxu0 %v1702
        %1894 = vmatpush1.bf16.msra.mxu0 %v1701
        %1895 = vmatprep.subr.bf16.mxu0 %v1704
        %1896 = vmatpush1.bf16.msra.mxu0 %v1703
        %1897 = vmatprep.subr.bf16.mxu0 %v1706
        %1898 = vmatpush1.bf16.msra.mxu0 %v1705
        %1899 = vmatprep.subr.bf16.mxu0 %v1708
        %1900 = vmatpush1.bf16.msra.mxu0 %v1707
        %1901 = vmatprep.subr.bf16.mxu0 %v1710
        %1902 = vmatpush1.bf16.msra.mxu0 %v1709
        %1903 = vmatprep.subr.bf16.mxu0 %v1712
        %1904 = vmatpush1.bf16.msra.mxu0 %v1711
        %1905 = vmatprep.subr.bf16.mxu0 %v1714
        %1906 = vmatpush1.bf16.msra.mxu0 %v1713
        %1907 = vmatprep.subr.bf16.mxu0 %v1716
        %1908 = vmatpush1.bf16.msra.mxu0 %v1715
        %1909 = vmatprep.mubr.bf16.mxu0 %v1284
        %1910 = vmatmul.mubr.bf16.gmra.mrb[0].mxu0 %v1283
        %v1911 = vpop.f32.mrb[0].mxu0
        %v1912 = vadd.f32 %v1390, %v1911
        %v1913 = vpop.f32.mrb[0].mxu0
        %v1914 = vadd.f32 %v1394, %v1913
        %v1915 = vpop.f32.mrb[0].mxu0
        %v1916 = vpop.f32.mrb[0].mxu0
        %1917 = vdwg.mxu0
        %1918 = vmatprep.subr.bf16.mxu0 %v1718
        %1919 = vmatpush1.bf16.msra.mxu0 %v1717
        %1920 = vmatprep.subr.bf16.mxu0 %v1720
        %1921 = vmatpush1.bf16.msra.mxu0 %v1719
        %1922 = vmatprep.subr.bf16.mxu0 %v1722
        %1923 = vmatpush1.bf16.msra.mxu0 %v1721
        %1924 = vmatprep.subr.bf16.mxu0 %v1724
        %1925 = vmatpush1.bf16.msra.mxu0 %v1723
        %1926 = vmatprep.subr.bf16.mxu0 %v1726
        %1927 = vmatpush1.bf16.msra.mxu0 %v1725
        %1928 = vmatprep.subr.bf16.mxu0 %v1728
        %1929 = vmatpush1.bf16.msra.mxu0 %v1727
        %1930 = vmatprep.subr.bf16.mxu0 %v1730
        %1931 = vmatpush1.bf16.msra.mxu0 %v1729
        %1932 = vmatprep.subr.bf16.mxu0 %v1732
        %1933 = vmatpush1.bf16.msra.mxu0 %v1731
        %1934 = vmatprep.subr.bf16.mxu0 %v1734
        %1935 = vmatpush1.bf16.msra.mxu0 %v1733
        %1936 = vmatprep.subr.bf16.mxu0 %v1736
        %1937 = vmatpush1.bf16.msra.mxu0 %v1735
        %1938 = vmatprep.subr.bf16.mxu0 %v1738
        %1939 = vmatpush1.bf16.msra.mxu0 %v1737
        %1940 = vmatprep.subr.bf16.mxu0 %v1740
        %1941 = vmatpush1.bf16.msra.mxu0 %v1739
        %1942 = vmatprep.subr.bf16.mxu0 %v1742
        %1943 = vmatpush1.bf16.msra.mxu0 %v1741
        %1944 = vmatprep.subr.bf16.mxu0 %v1744
        %1945 = vmatpush1.bf16.msra.mxu0 %v1743
        %1946 = vmatprep.subr.bf16.mxu0 %v1746
        %1947 = vmatpush1.bf16.msra.mxu0 %v1745
        %1948 = vmatprep.subr.bf16.mxu0 %v1748
        %1949 = vmatpush1.bf16.msra.mxu0 %v1747
        %1950 = vmatprep.mubr.bf16.mxu0 %v1286
        %1951 = vmatmul.mubr.bf16.gmra.mrb[0].mxu0 %v1285
        %v1952 = vpop.f32.mrb[0].mxu0
        %v1953 = vadd.f32 %v1912, %v1952
        %v1954 = vpop.f32.mrb[0].mxu0
        %v1955 = vadd.f32 %v1914, %v1954
        %v1956 = vpop.f32.mrb[0].mxu0
        %v1957 = vpop.f32.mrb[0].mxu0
        %1958 = vdwg.mxu0
        %1959 = vmatprep.subr.bf16.mxu0 %v1750
        %1960 = vmatpush1.bf16.msra.mxu0 %v1749
        %1961 = vmatprep.subr.bf16.mxu0 %v1752
        %1962 = vmatpush1.bf16.msra.mxu0 %v1751
        %1963 = vmatprep.subr.bf16.mxu0 %v1754
        %1964 = vmatpush1.bf16.msra.mxu0 %v1753
        %1965 = vmatprep.subr.bf16.mxu0 %v1756
        %1966 = vmatpush1.bf16.msra.mxu0 %v1755
        %1967 = vmatprep.subr.bf16.mxu0 %v1758
        %1968 = vmatpush1.bf16.msra.mxu0 %v1757
        %1969 = vmatprep.subr.bf16.mxu0 %v1760
        %1970 = vmatpush1.bf16.msra.mxu0 %v1759
        %1971 = vmatprep.subr.bf16.mxu0 %v1762
        %1972 = vmatpush1.bf16.msra.mxu0 %v1761
        %1973 = vmatprep.subr.bf16.mxu0 %v1764
        %1974 = vmatpush1.bf16.msra.mxu0 %v1763
        %1975 = vmatprep.subr.bf16.mxu0 %v1766
        %1976 = vmatpush1.bf16.msra.mxu0 %v1765
        %1977 = vmatprep.subr.bf16.mxu0 %v1768
        %1978 = vmatpush1.bf16.msra.mxu0 %v1767
        %1979 = vmatprep.subr.bf16.mxu0 %v1770
        %1980 = vmatpush1.bf16.msra.mxu0 %v1769
        %1981 = vmatprep.subr.bf16.mxu0 %v1772
        %1982 = vmatpush1.bf16.msra.mxu0 %v1771
        %1983 = vmatprep.subr.bf16.mxu0 %v1774
        %1984 = vmatpush1.bf16.msra.mxu0 %v1773
        %1985 = vmatprep.subr.bf16.mxu0 %v1776
        %1986 = vmatpush1.bf16.msra.mxu0 %v1775
        %1987 = vmatprep.subr.bf16.mxu0 %v1778
        %1988 = vmatpush1.bf16.msra.mxu0 %v1777
        %1989 = vmatprep.subr.bf16.mxu0 %v1780
        %1990 = vmatpush1.bf16.msra.mxu0 %v1779
        %1991 = vmatprep.mubr.bf16.mxu0 %v1288
        %1992 = vmatmul.mubr.bf16.gmra.mrb[0].mxu0 %v1287
        %v1993 = vpop.f32.mrb[0].mxu0
        %v1994 = vadd.f32 %v1953, %v1993
        %v1995 = vpop.f32.mrb[0].mxu0
        %v1996 = vadd.f32 %v1955, %v1995
        %v1997 = vpop.f32.mrb[0].mxu0
        %v1998 = vpop.f32.mrb[0].mxu0
        %1999 = vdwg.mxu0
        %v2000 = vmax.f32 %v1994, 0.0
        %v2001 = vmax.f32 %v1996, 0.0
        %v2002 = vld [vmem:[%s789] sm:$0xff]
        %v2003 = vld [vmem:[%s789 + $0x8] sm:$0xff]
        %v2004 = vld [vmem:[%s789 + $0x10] sm:$0xff]
        %v2005 = vld [vmem:[%s789 + $0x18] sm:$0xff]
        %v2006 = vld [vmem:[%s789 + $0x20] sm:$0xff]
        %v2007 = vld [vmem:[%s789 + $0x28] sm:$0xff]
        %v2008 = vld [vmem:[%s789 + $0x30] sm:$0xff]
        %v2009 = vld [vmem:[%s789 + $0x38] sm:$0xff]
        %v2010 = vpack.c.bf16 %v2003, %v2002
        %v2011 = vpack.c.bf16 %v2005, %v2004
        %v2012 = vpack.c.bf16 %v2007, %v2006
        %v2013 = vpack.c.bf16 %v2009, %v2008
        %v2014 = vld [vmem:[%s6] sm:$0xff]
        %v2015 = vld [vmem:[%s6 + $0x8] sm:$0xff]
        %v2016 = vld [vmem:[%s6 + $0x10] sm:$0xff]
        %v2017 = vld [vmem:[%s6 + $0x18] sm:$0xff]
        %v2018 = vld [vmem:[%s6 + $0x20] sm:$0xff]
        %v2019 = vld [vmem:[%s6 + $0x28] sm:$0xff]
        %v2020 = vld [vmem:[%s6 + $0x30] sm:$0xff]
        %v2021 = vld [vmem:[%s6 + $0x38] sm:$0xff]
        %2022 = vxpose.xlu0.c.b16.start [1/8] %v2010, 128
        %2023 = vxpose.xlu0.c.b16.cont [2/8] %v2011, 128
        %2024 = vxpose.xlu0.c.b16.cont [3/8] %v2012, 128
        %2025 = vxpose.xlu0.c.b16.cont [4/8] %v2013, 128
        %2026 = vxpose.xlu0.c.b16.cont [5/8] 0, 128
        %2027 = vxpose.xlu0.c.b16.cont [6/8] 0, 128
        %2028 = vxpose.xlu0.c.b16.cont [7/8] 0, 128
        %2029 = vxpose.xlu0.c.b16.end [8/8] 0, 128
        %v2030 = vpop.trf.xlu0
        %v2031 = vpop.trf.xlu0
        %v2032 = vpop.trf.xlu0
        %v2033 = vpop.trf.xlu0
        %v2034 = vpop.trf.xlu0
        %v2035 = vpop.trf.xlu0
        %v2036 = vpop.trf.xlu0
        %v2037 = vpop.trf.xlu0
        %v2046 = vunpack.c.l.b16 %v2014
        %v2047 = vunpack.c.h.b16 %v2014
        %v2048 = vunpack.c.l.b16 %v2015
        %v2049 = vunpack.c.h.b16 %v2015
        %v2050 = vunpack.c.l.b16 %v2016
        %v2051 = vunpack.c.h.b16 %v2016
        %v2052 = vunpack.c.l.b16 %v2017
        %v2053 = vunpack.c.h.b16 %v2017
        %v2054 = vunpack.c.l.b16 %v2018
        %v2055 = vunpack.c.h.b16 %v2018
        %v2056 = vunpack.c.l.b16 %v2019
        %v2057 = vunpack.c.h.b16 %v2019
        %v2058 = vunpack.c.l.b16 %v2020
        %v2059 = vunpack.c.h.b16 %v2020
        %v2060 = vunpack.c.l.b16 %v2021
        %v2061 = vunpack.c.h.b16 %v2021
        %v2062 = vpack.c.b16 %v2048, %v2046
        %v2063 = vpack.c.b16 %v2049, %v2047
        %v2064 = vpack.c.b16 %v2052, %v2050
        %v2065 = vpack.c.b16 %v2053, %v2051
        %v2066 = vpack.c.b16 %v2056, %v2054
        %v2067 = vpack.c.b16 %v2057, %v2055
        %v2068 = vpack.c.b16 %v2060, %v2058
        %v2069 = vpack.c.b16 %v2061, %v2059
        %vm2078 = vcmask 523264
        %v2080 = vsel %vm2078, %v2030, 0
        %2082 = vmatprep.subr.bf16.mxu0 %v2063
        %2083 = vmatpush1.bf16.msra.mxu0 %v2062
        %2084 = vmatprep.subr.bf16.mxu0 %v2065
        %2085 = vmatpush1.bf16.msra.mxu0 %v2064
        %2086 = vmatprep.subr.bf16.mxu0 %v2067
        %2087 = vmatpush1.bf16.msra.mxu0 %v2066
        %2088 = vmatprep.subr.bf16.mxu0 %v2069
        %2089 = vmatpush1.bf16.msra.mxu0 %v2068
        %2090 = vmatprep.subr.bf16.mxu0 0
        %2091 = vmatpush1.bf16.msra.mxu0 0
        %2092 = vmatprep.subr.bf16.mxu0 0
        %2093 = vmatpush1.bf16.msra.mxu0 0
        %2094 = vmatprep.subr.bf16.mxu0 0
        %2095 = vmatpush1.bf16.msra.mxu0 0
        %2096 = vmatprep.subr.bf16.mxu0 0
        %2097 = vmatpush1.bf16.msra.mxu0 0
        %2098 = vmatprep.subr.bf16.mxu0 0
        %2099 = vmatpush1.bf16.msra.mxu0 0
        %2100 = vmatprep.subr.bf16.mxu0 0
        %2101 = vmatpush1.bf16.msra.mxu0 0
        %2102 = vmatprep.subr.bf16.mxu0 0
        %2103 = vmatpush1.bf16.msra.mxu0 0
        %2104 = vmatprep.subr.bf16.mxu0 0
        %2105 = vmatpush1.bf16.msra.mxu0 0
        %2106 = vmatprep.subr.bf16.mxu0 0
        %2107 = vmatpush1.bf16.msra.mxu0 0
        %2108 = vmatprep.subr.bf16.mxu0 0
        %2109 = vmatpush1.bf16.msra.mxu0 0
        %2110 = vmatprep.subr.bf16.mxu0 0
        %2111 = vmatpush1.bf16.msra.mxu0 0
        %2112 = vmatprep.subr.bf16.mxu0 0
        %2113 = vmatpush1.bf16.msra.mxu0 0
        %2114 = vmatprep.mubr.bf16.mxu0 0
        %2115 = vmatmul.mubr.bf16.gmra.mrb[0].mxu0 %v2080
        %v2116 = vpop.f32.mrb[0].mxu0
        %v2117 = vadd.f32 0.0, %v2116
        %v2118 = vpop.f32.mrb[0].mxu0
        %v2119 = vadd.f32 0.0, %v2118
        %v2120 = vpop.f32.mrb[0].mxu0
        %v2121 = vpop.f32.mrb[0].mxu0
        %2122 = vdwg.mxu0
        %v2123 = vpack.c.bf16 %v2117, %v2117
        %v2124 = vpack.c.bf16 %v2119, %v2119
        %v2125 = vld [vmem:[#allocation8] sm:$0xff]
        %v2126 = vld [vmem:[#allocation8 + $0x8] sm:$0xff]
        %v2127 = vld [vmem:[#allocation8 + $0x10] sm:$0xff]
        %v2128 = vld [vmem:[#allocation8 + $0x18] sm:$0xff]
        %v2129 = vld [vmem:[#allocation8 + $0x20] sm:$0xff]
        %v2130 = vld [vmem:[#allocation8 + $0x28] sm:$0xff]
        %v2131 = vld [vmem:[#allocation8 + $0x30] sm:$0xff]
        %v2132 = vld [vmem:[#allocation8 + $0x38] sm:$0xff]
        %v2133 = vld [vmem:[#allocation8 + $0x40] sm:$0xff]
        %v2134 = vld [vmem:[#allocation8 + $0x48] sm:$0xff]
        %v2135 = vld [vmem:[#allocation8 + $0x50] sm:$0xff]
        %v2136 = vld [vmem:[#allocation8 + $0x58] sm:$0xff]
        %v2137 = vld [vmem:[#allocation8 + $0x60] sm:$0xff]
        %v2138 = vld [vmem:[#allocation8 + $0x68] sm:$0xff]
        %v2139 = vld [vmem:[#allocation8 + $0x70] sm:$0xff]
        %v2140 = vld [vmem:[#allocation8 + $0x78] sm:$0xff]
        %v2141 = vld [vmem:[#allocation8 + $0x80] sm:$0xff]
        %v2142 = vld [vmem:[#allocation8 + $0x88] sm:$0xff]
        %v2143 = vld [vmem:[#allocation8 + $0x90] sm:$0xff]
        %v2144 = vld [vmem:[#allocation8 + $0x98] sm:$0xff]
        %v2145 = vld [vmem:[#allocation8 + $0xa0] sm:$0xff]
        %v2146 = vld [vmem:[#allocation8 + $0xa8] sm:$0xff]
        %v2147 = vld [vmem:[#allocation8 + $0xb0] sm:$0xff]
        %v2148 = vld [vmem:[#allocation8 + $0xb8] sm:$0xff]
        %v2149 = vld [vmem:[#allocation8 + $0xc0] sm:$0xff]
        %v2150 = vld [vmem:[#allocation8 + $0xc8] sm:$0xff]
        %v2151 = vld [vmem:[#allocation8 + $0xd0] sm:$0xff]
        %v2152 = vld [vmem:[#allocation8 + $0xd8] sm:$0xff]
        %v2153 = vld [vmem:[#allocation8 + $0xe0] sm:$0xff]
        %v2154 = vld [vmem:[#allocation8 + $0xe8] sm:$0xff]
        %v2155 = vld [vmem:[#allocation8 + $0xf0] sm:$0xff]
        %v2156 = vld [vmem:[#allocation8 + $0xf8] sm:$0xff]
        %v2157 = vld [vmem:[%s8] sm:$0x3]
        %v2159 = vlaneseq
        %v2160 = vshrl.u32 %v2159, 7
        %v2161 = vsub.s32 0, %v2160
        %v2162 = vrot.slane %v2157, %v2161
        %v2163 = vlaneseq
        %v2164 = vshrl.u32 %v2163, 7
        %v2165 = vsub.s32 1, %v2164
        %v2166 = vrot.slane %v2157, %v2165
        %v2201 = vunpack.c.l.b16 %v2125
        %v2202 = vunpack.c.h.b16 %v2125
        %v2203 = vunpack.c.l.b16 %v2126
        %v2204 = vunpack.c.h.b16 %v2126
        %v2205 = vunpack.c.l.b16 %v2127
        %v2206 = vunpack.c.h.b16 %v2127
        %v2207 = vunpack.c.l.b16 %v2128
        %v2208 = vunpack.c.h.b16 %v2128
        %v2209 = vunpack.c.l.b16 %v2129
        %v2210 = vunpack.c.h.b16 %v2129
        %v2211 = vunpack.c.l.b16 %v2130
        %v2212 = vunpack.c.h.b16 %v2130
        %v2213 = vunpack.c.l.b16 %v2131
        %v2214 = vunpack.c.h.b16 %v2131
        %v2215 = vunpack.c.l.b16 %v2132
        %v2216 = vunpack.c.h.b16 %v2132
        %v2217 = vunpack.c.l.b16 %v2133
        %v2218 = vunpack.c.h.b16 %v2133
        %v2219 = vunpack.c.l.b16 %v2134
        %v2220 = vunpack.c.h.b16 %v2134
        %v2221 = vunpack.c.l.b16 %v2135
        %v2222 = vunpack.c.h.b16 %v2135
        %v2223 = vunpack.c.l.b16 %v2136
        %v2224 = vunpack.c.h.b16 %v2136
        %v2225 = vunpack.c.l.b16 %v2137
        %v2226 = vunpack.c.h.b16 %v2137
        %v2227 = vunpack.c.l.b16 %v2138
        %v2228 = vunpack.c.h.b16 %v2138
        %v2229 = vunpack.c.l.b16 %v2139
        %v2230 = vunpack.c.h.b16 %v2139
        %v2231 = vunpack.c.l.b16 %v2140
        %v2232 = vunpack.c.h.b16 %v2140
        %v2233 = vunpack.c.l.b16 %v2141
        %v2234 = vunpack.c.h.b16 %v2141
        %v2235 = vunpack.c.l.b16 %v2142
        %v2236 = vunpack.c.h.b16 %v2142
        %v2237 = vunpack.c.l.b16 %v2143
        %v2238 = vunpack.c.h.b16 %v2143
        %v2239 = vunpack.c.l.b16 %v2144
        %v2240 = vunpack.c.h.b16 %v2144
        %v2241 = vunpack.c.l.b16 %v2145
        %v2242 = vunpack.c.h.b16 %v2145
        %v2243 = vunpack.c.l.b16 %v2146
        %v2244 = vunpack.c.h.b16 %v2146
        %v2245 = vunpack.c.l.b16 %v2147
        %v2246 = vunpack.c.h.b16 %v2147
        %v2247 = vunpack.c.l.b16 %v2148
        %v2248 = vunpack.c.h.b16 %v2148
        %v2249 = vunpack.c.l.b16 %v2149
        %v2250 = vunpack.c.h.b16 %v2149
        %v2251 = vunpack.c.l.b16 %v2150
        %v2252 = vunpack.c.h.b16 %v2150
        %v2253 = vunpack.c.l.b16 %v2151
        %v2254 = vunpack.c.h.b16 %v2151
        %v2255 = vunpack.c.l.b16 %v2152
        %v2256 = vunpack.c.h.b16 %v2152
        %v2257 = vunpack.c.l.b16 %v2153
        %v2258 = vunpack.c.h.b16 %v2153
        %v2259 = vunpack.c.l.b16 %v2154
        %v2260 = vunpack.c.h.b16 %v2154
        %v2261 = vunpack.c.l.b16 %v2155
        %v2262 = vunpack.c.h.b16 %v2155
        %v2263 = vunpack.c.l.b16 %v2156
        %v2264 = vunpack.c.h.b16 %v2156
        %v2265 = vpack.c.b16 %v2203, %v2201
        %v2266 = vpack.c.b16 %v2204, %v2202
        %v2267 = vpack.c.b16 %v2207, %v2205
        %v2268 = vpack.c.b16 %v2208, %v2206
        %v2269 = vpack.c.b16 %v2211, %v2209
        %v2270 = vpack.c.b16 %v2212, %v2210
        %v2271 = vpack.c.b16 %v2215, %v2213
        %v2272 = vpack.c.b16 %v2216, %v2214
        %v2273 = vpack.c.b16 %v2219, %v2217
        %v2274 = vpack.c.b16 %v2220, %v2218
        %v2275 = vpack.c.b16 %v2223, %v2221
        %v2276 = vpack.c.b16 %v2224, %v2222
        %v2277 = vpack.c.b16 %v2227, %v2225
        %v2278 = vpack.c.b16 %v2228, %v2226
        %v2279 = vpack.c.b16 %v2231, %v2229
        %v2280 = vpack.c.b16 %v2232, %v2230
        %v2281 = vpack.c.b16 %v2235, %v2233
        %v2282 = vpack.c.b16 %v2236, %v2234
        %v2283 = vpack.c.b16 %v2239, %v2237
        %v2284 = vpack.c.b16 %v2240, %v2238
        %v2285 = vpack.c.b16 %v2243, %v2241
        %v2286 = vpack.c.b16 %v2244, %v2242
        %v2287 = vpack.c.b16 %v2247, %v2245
        %v2288 = vpack.c.b16 %v2248, %v2246
        %v2289 = vpack.c.b16 %v2251, %v2249
        %v2290 = vpack.c.b16 %v2252, %v2250
        %v2291 = vpack.c.b16 %v2255, %v2253
        %v2292 = vpack.c.b16 %v2256, %v2254
        %v2293 = vpack.c.b16 %v2259, %v2257
        %v2294 = vpack.c.b16 %v2260, %v2258
        %v2295 = vpack.c.b16 %v2263, %v2261
        %v2296 = vpack.c.b16 %v2264, %v2262
        %2329 = vmatprep.subr.bf16.mxu0 %v2266
        %2330 = vmatpush1.bf16.msra.mxu0 %v2265
        %2331 = vmatprep.subr.bf16.mxu0 %v2268
        %2332 = vmatpush1.bf16.msra.mxu0 %v2267
        %2333 = vmatprep.subr.bf16.mxu0 %v2270
        %2334 = vmatpush1.bf16.msra.mxu0 %v2269
        %2335 = vmatprep.subr.bf16.mxu0 %v2272
        %2336 = vmatpush1.bf16.msra.mxu0 %v2271
        %2337 = vmatprep.subr.bf16.mxu0 %v2274
        %2338 = vmatpush1.bf16.msra.mxu0 %v2273
        %2339 = vmatprep.subr.bf16.mxu0 %v2276
        %2340 = vmatpush1.bf16.msra.mxu0 %v2275
        %2341 = vmatprep.subr.bf16.mxu0 %v2278
        %2342 = vmatpush1.bf16.msra.mxu0 %v2277
        %2343 = vmatprep.subr.bf16.mxu0 %v2280
        %2344 = vmatpush1.bf16.msra.mxu0 %v2279
        %2345 = vmatprep.subr.bf16.mxu0 %v2282
        %2346 = vmatpush1.bf16.msra.mxu0 %v2281
        %2347 = vmatprep.subr.bf16.mxu0 %v2284
        %2348 = vmatpush1.bf16.msra.mxu0 %v2283
        %2349 = vmatprep.subr.bf16.mxu0 %v2286
        %2350 = vmatpush1.bf16.msra.mxu0 %v2285
        %2351 = vmatprep.subr.bf16.mxu0 %v2288
        %2352 = vmatpush1.bf16.msra.mxu0 %v2287
        %2353 = vmatprep.subr.bf16.mxu0 %v2290
        %2354 = vmatpush1.bf16.msra.mxu0 %v2289
        %2355 = vmatprep.subr.bf16.mxu0 %v2292
        %2356 = vmatpush1.bf16.msra.mxu0 %v2291
        %2357 = vmatprep.subr.bf16.mxu0 %v2294
        %2358 = vmatpush1.bf16.msra.mxu0 %v2293
        %2359 = vmatprep.subr.bf16.mxu0 %v2296
        %2360 = vmatpush1.bf16.msra.mxu0 %v2295
        %2361 = vmatprep.mubr.bf16.mxu0 %v2124
        %2362 = vmatmul.mubr.bf16.gmra.mrb[0].mxu0 %v2123
        %v2363 = vpop.f32.mrb[0].mxu0
        %v2364 = vadd.f32 %v2162, %v2363
        %v2365 = vpop.f32.mrb[0].mxu0
        %v2366 = vadd.f32 %v2166, %v2365
        %v2367 = vpop.f32.mrb[0].mxu0
        %v2368 = vpop.f32.mrb[0].mxu0
        %2369 = vdwg.mxu0
        %v2370 = vmax.f32 %v2364, 0.0
        %v2371 = vmax.f32 %v2366, 0.0
        %s2372 = smul.u32 %s55, 8
        %v2373 = vlaneseq
        %v2374 = vshrl.u32 %v2373, 7
        %v2375 = vstv %s2372
        %v2376 = vadd.s32 %v2375, %v2374
        %v2377 = vstv %s791
        %vm2378 = vcmp.lt.s32.totalorder %v2376, %v2377
        %v2379 = vsel %vm2378, 1, 0
        %v2380 = vcvt.s32.f32 %v2379
        %v2381 = vmul.f32 %v2000, %v2380
        %v2382 = vmul.f32 %v2001, %v2380
        %v2383 = vmul.f32 %v2370, %v2380
        %v2384 = vmul.f32 %v2371, %v2380
        %v2385 = vpack.c.bf16 %v2383, %v2383
        %v2386 = vpack.c.bf16 %v2384, %v2384
        %v2387 = vld [vmem:[#allocation9] sm:$0xff]
        %v2388 = vld [vmem:[#allocation9 + $0x8] sm:$0xff]
        %v2389 = vld [vmem:[#allocation9 + $0x10] sm:$0xff]
        %v2390 = vld [vmem:[#allocation9 + $0x18] sm:$0xff]
        %v2391 = vld [vmem:[#allocation9 + $0x20] sm:$0xff]
        %v2392 = vld [vmem:[#allocation9 + $0x28] sm:$0xff]
        %v2393 = vld [vmem:[#allocation9 + $0x30] sm:$0xff]
        %v2394 = vld [vmem:[#allocation9 + $0x38] sm:$0xff]
        %v2395 = vld [vmem:[#allocation9 + $0x40] sm:$0xff]
        %v2396 = vld [vmem:[#allocation9 + $0x48] sm:$0xff]
        %v2397 = vld [vmem:[#allocation9 + $0x50] sm:$0xff]
        %v2398 = vld [vmem:[#allocation9 + $0x58] sm:$0xff]
        %v2399 = vld [vmem:[#allocation9 + $0x60] sm:$0xff]
        %v2400 = vld [vmem:[#allocation9 + $0x68] sm:$0xff]
        %v2401 = vld [vmem:[#allocation9 + $0x70] sm:$0xff]
        %v2402 = vld [vmem:[#allocation9 + $0x78] sm:$0xff]
        %v2403 = vld [vmem:[#allocation9 + $0x80] sm:$0xff]
        %v2404 = vld [vmem:[#allocation9 + $0x88] sm:$0xff]
        %v2405 = vld [vmem:[#allocation9 + $0x90] sm:$0xff]
        %v2406 = vld [vmem:[#allocation9 + $0x98] sm:$0xff]
        %v2407 = vld [vmem:[#allocation9 + $0xa0] sm:$0xff]
        %v2408 = vld [vmem:[#allocation9 + $0xa8] sm:$0xff]
        %v2409 = vld [vmem:[#allocation9 + $0xb0] sm:$0xff]
        %v2410 = vld [vmem:[#allocation9 + $0xb8] sm:$0xff]
        %v2411 = vld [vmem:[#allocation9 + $0xc0] sm:$0xff]
        %v2412 = vld [vmem:[#allocation9 + $0xc8] sm:$0xff]
        %v2413 = vld [vmem:[#allocation9 + $0xd0] sm:$0xff]
        %v2414 = vld [vmem:[#allocation9 + $0xd8] sm:$0xff]
        %v2415 = vld [vmem:[#allocation9 + $0xe0] sm:$0xff]
        %v2416 = vld [vmem:[#allocation9 + $0xe8] sm:$0xff]
        %v2417 = vld [vmem:[#allocation9 + $0xf0] sm:$0xff]
        %v2418 = vld [vmem:[#allocation9 + $0xf8] sm:$0xff]
        %v2419 = vld [vmem:[%s10] sm:$0x3]
        %v2421 = vlaneseq
        %v2422 = vshrl.u32 %v2421, 7
        %v2423 = vsub.s32 0, %v2422
        %v2424 = vrot.slane %v2419, %v2423
        %v2425 = vlaneseq
        %v2426 = vshrl.u32 %v2425, 7
        %v2427 = vsub.s32 1, %v2426
        %v2428 = vrot.slane %v2419, %v2427
        %v2463 = vunpack.c.l.b16 %v2387
        %v2464 = vunpack.c.h.b16 %v2387
        %v2465 = vunpack.c.l.b16 %v2388
        %v2466 = vunpack.c.h.b16 %v2388
        %v2467 = vunpack.c.l.b16 %v2389
        %v2468 = vunpack.c.h.b16 %v2389
        %v2469 = vunpack.c.l.b16 %v2390
        %v2470 = vunpack.c.h.b16 %v2390
        %v2471 = vunpack.c.l.b16 %v2391
        %v2472 = vunpack.c.h.b16 %v2391
        %v2473 = vunpack.c.l.b16 %v2392
        %v2474 = vunpack.c.h.b16 %v2392
        %v2475 = vunpack.c.l.b16 %v2393
        %v2476 = vunpack.c.h.b16 %v2393
        %v2477 = vunpack.c.l.b16 %v2394
        %v2478 = vunpack.c.h.b16 %v2394
        %v2479 = vunpack.c.l.b16 %v2395
        %v2480 = vunpack.c.h.b16 %v2395
        %v2481 = vunpack.c.l.b16 %v2396
        %v2482 = vunpack.c.h.b16 %v2396
        %v2483 = vunpack.c.l.b16 %v2397
        %v2484 = vunpack.c.h.b16 %v2397
        %v2485 = vunpack.c.l.b16 %v2398
        %v2486 = vunpack.c.h.b16 %v2398
        %v2487 = vunpack.c.l.b16 %v2399
        %v2488 = vunpack.c.h.b16 %v2399
        %v2489 = vunpack.c.l.b16 %v2400
        %v2490 = vunpack.c.h.b16 %v2400
        %v2491 = vunpack.c.l.b16 %v2401
        %v2492 = vunpack.c.h.b16 %v2401
        %v2493 = vunpack.c.l.b16 %v2402
        %v2494 = vunpack.c.h.b16 %v2402
        %v2495 = vunpack.c.l.b16 %v2403
        %v2496 = vunpack.c.h.b16 %v2403
        %v2497 = vunpack.c.l.b16 %v2404
        %v2498 = vunpack.c.h.b16 %v2404
        %v2499 = vunpack.c.l.b16 %v2405
        %v2500 = vunpack.c.h.b16 %v2405
        %v2501 = vunpack.c.l.b16 %v2406
        %v2502 = vunpack.c.h.b16 %v2406
        %v2503 = vunpack.c.l.b16 %v2407
        %v2504 = vunpack.c.h.b16 %v2407
        %v2505 = vunpack.c.l.b16 %v2408
        %v2506 = vunpack.c.h.b16 %v2408
        %v2507 = vunpack.c.l.b16 %v2409
        %v2508 = vunpack.c.h.b16 %v2409
        %v2509 = vunpack.c.l.b16 %v2410
        %v2510 = vunpack.c.h.b16 %v2410
        %v2511 = vunpack.c.l.b16 %v2411
        %v2512 = vunpack.c.h.b16 %v2411
        %v2513 = vunpack.c.l.b16 %v2412
        %v2514 = vunpack.c.h.b16 %v2412
        %v2515 = vunpack.c.l.b16 %v2413
        %v2516 = vunpack.c.h.b16 %v2413
        %v2517 = vunpack.c.l.b16 %v2414
        %v2518 = vunpack.c.h.b16 %v2414
        %v2519 = vunpack.c.l.b16 %v2415
        %v2520 = vunpack.c.h.b16 %v2415
        %v2521 = vunpack.c.l.b16 %v2416
        %v2522 = vunpack.c.h.b16 %v2416
        %v2523 = vunpack.c.l.b16 %v2417
        %v2524 = vunpack.c.h.b16 %v2417
        %v2525 = vunpack.c.l.b16 %v2418
        %v2526 = vunpack.c.h.b16 %v2418
        %v2527 = vpack.c.b16 %v2465, %v2463
        %v2528 = vpack.c.b16 %v2466, %v2464
        %v2529 = vpack.c.b16 %v2469, %v2467
        %v2530 = vpack.c.b16 %v2470, %v2468
        %v2531 = vpack.c.b16 %v2473, %v2471
        %v2532 = vpack.c.b16 %v2474, %v2472
        %v2533 = vpack.c.b16 %v2477, %v2475
        %v2534 = vpack.c.b16 %v2478, %v2476
        %v2535 = vpack.c.b16 %v2481, %v2479
        %v2536 = vpack.c.b16 %v2482, %v2480
        %v2537 = vpack.c.b16 %v2485, %v2483
        %v2538 = vpack.c.b16 %v2486, %v2484
        %v2539 = vpack.c.b16 %v2489, %v2487
        %v2540 = vpack.c.b16 %v2490, %v2488
        %v2541 = vpack.c.b16 %v2493, %v2491
        %v2542 = vpack.c.b16 %v2494, %v2492
        %v2543 = vpack.c.b16 %v2497, %v2495
        %v2544 = vpack.c.b16 %v2498, %v2496
        %v2545 = vpack.c.b16 %v2501, %v2499
        %v2546 = vpack.c.b16 %v2502, %v2500
        %v2547 = vpack.c.b16 %v2505, %v2503
        %v2548 = vpack.c.b16 %v2506, %v2504
        %v2549 = vpack.c.b16 %v2509, %v2507
        %v2550 = vpack.c.b16 %v2510, %v2508
        %v2551 = vpack.c.b16 %v2513, %v2511
        %v2552 = vpack.c.b16 %v2514, %v2512
        %v2553 = vpack.c.b16 %v2517, %v2515
        %v2554 = vpack.c.b16 %v2518, %v2516
        %v2555 = vpack.c.b16 %v2521, %v2519
        %v2556 = vpack.c.b16 %v2522, %v2520
        %v2557 = vpack.c.b16 %v2525, %v2523
        %v2558 = vpack.c.b16 %v2526, %v2524
        %2591 = vmatprep.subr.bf16.mxu0 %v2528
        %2592 = vmatpush1.bf16.msra.mxu0 %v2527
        %2593 = vmatprep.subr.bf16.mxu0 %v2530
        %2594 = vmatpush1.bf16.msra.mxu0 %v2529
        %2595 = vmatprep.subr.bf16.mxu0 %v2532
        %2596 = vmatpush1.bf16.msra.mxu0 %v2531
        %2597 = vmatprep.subr.bf16.mxu0 %v2534
        %2598 = vmatpush1.bf16.msra.mxu0 %v2533
        %2599 = vmatprep.subr.bf16.mxu0 %v2536
        %2600 = vmatpush1.bf16.msra.mxu0 %v2535
        %2601 = vmatprep.subr.bf16.mxu0 %v2538
        %2602 = vmatpush1.bf16.msra.mxu0 %v2537
        %2603 = vmatprep.subr.bf16.mxu0 %v2540
        %2604 = vmatpush1.bf16.msra.mxu0 %v2539
        %2605 = vmatprep.subr.bf16.mxu0 %v2542
        %2606 = vmatpush1.bf16.msra.mxu0 %v2541
        %2607 = vmatprep.subr.bf16.mxu0 %v2544
        %2608 = vmatpush1.bf16.msra.mxu0 %v2543
        %2609 = vmatprep.subr.bf16.mxu0 %v2546
        %2610 = vmatpush1.bf16.msra.mxu0 %v2545
        %2611 = vmatprep.subr.bf16.mxu0 %v2548
        %2612 = vmatpush1.bf16.msra.mxu0 %v2547
        %2613 = vmatprep.subr.bf16.mxu0 %v2550
        %2614 = vmatpush1.bf16.msra.mxu0 %v2549
        %2615 = vmatprep.subr.bf16.mxu0 %v2552
        %2616 = vmatpush1.bf16.msra.mxu0 %v2551
        %2617 = vmatprep.subr.bf16.mxu0 %v2554
        %2618 = vmatpush1.bf16.msra.mxu0 %v2553
        %2619 = vmatprep.subr.bf16.mxu0 %v2556
        %2620 = vmatpush1.bf16.msra.mxu0 %v2555
        %2621 = vmatprep.subr.bf16.mxu0 %v2558
        %2622 = vmatpush1.bf16.msra.mxu0 %v2557
        %2623 = vmatprep.mubr.bf16.mxu0 %v2386
        %2624 = vmatmul.mubr.bf16.gmra.mrb[0].mxu0 %v2385
        %v2625 = vpop.f32.mrb[0].mxu0
        %v2626 = vadd.f32 %v2424, %v2625
        %v2627 = vpop.f32.mrb[0].mxu0
        %v2628 = vadd.f32 %v2428, %v2627
        %v2629 = vpop.f32.mrb[0].mxu0
        %v2630 = vpop.f32.mrb[0].mxu0
        %2631 = vdwg.mxu0
        %v2632 = vpack.c.bf16 %v2381, %v2381
        %v2633 = vpack.c.bf16 %v2382, %v2382
        %2634 = vmatprep.subr.bf16.mxu0 %v2528
        %2635 = vmatpush1.bf16.msra.mxu0 %v2527
        %2636 = vmatprep.subr.bf16.mxu0 %v2530
        %2637 = vmatpush1.bf16.msra.mxu0 %v2529
        %2638 = vmatprep.subr.bf16.mxu0 %v2532
        %2639 = vmatpush1.bf16.msra.mxu0 %v2531
        %2640 = vmatprep.subr.bf16.mxu0 %v2534
        %2641 = vmatpush1.bf16.msra.mxu0 %v2533
        %2642 = vmatprep.subr.bf16.mxu0 %v2536
        %2643 = vmatpush1.bf16.msra.mxu0 %v2535
        %2644 = vmatprep.subr.bf16.mxu0 %v2538
        %2645 = vmatpush1.bf16.msra.mxu0 %v2537
        %2646 = vmatprep.subr.bf16.mxu0 %v2540
        %2647 = vmatpush1.bf16.msra.mxu0 %v2539
        %2648 = vmatprep.subr.bf16.mxu0 %v2542
        %2649 = vmatpush1.bf16.msra.mxu0 %v2541
        %2650 = vmatprep.subr.bf16.mxu0 %v2544
        %2651 = vmatpush1.bf16.msra.mxu0 %v2543
        %2652 = vmatprep.subr.bf16.mxu0 %v2546
        %2653 = vmatpush1.bf16.msra.mxu0 %v2545
        %2654 = vmatprep.subr.bf16.mxu0 %v2548
        %2655 = vmatpush1.bf16.msra.mxu0 %v2547
        %2656 = vmatprep.subr.bf16.mxu0 %v2550
        %2657 = vmatpush1.bf16.msra.mxu0 %v2549
        %2658 = vmatprep.subr.bf16.mxu0 %v2552
        %2659 = vmatpush1.bf16.msra.mxu0 %v2551
        %2660 = vmatprep.subr.bf16.mxu0 %v2554
        %2661 = vmatpush1.bf16.msra.mxu0 %v2553
        %2662 = vmatprep.subr.bf16.mxu0 %v2556
        %2663 = vmatpush1.bf16.msra.mxu0 %v2555
        %2664 = vmatprep.subr.bf16.mxu0 %v2558
        %2665 = vmatpush1.bf16.msra.mxu0 %v2557
        %2666 = vmatprep.mubr.bf16.mxu0 %v2633
        %2667 = vmatmul.mubr.bf16.gmra.mrb[0].mxu0 %v2632
        %v2668 = vpop.f32.mrb[0].mxu0
        %v2669 = vadd.f32 %v2424, %v2668
        %v2670 = vpop.f32.mrb[0].mxu0
        %v2671 = vadd.f32 %v2428, %v2670
        %v2672 = vpop.f32.mrb[0].mxu0
        %v2673 = vpop.f32.mrb[0].mxu0
        %2674 = vdwg.mxu0
        %v2675 = vld [vmem:[%s11] sm:$0x3]
        %v2676 = vxor.u32 %v2675, 2147483648
        %v2677 = vmul.f32 %v2676, 1.442695
        %v2678 = vpow.pop %v2677
        %v2679 = vadd.f32 %v2678, 1.0
        %v2680 = vrcp.pop %v2679
        %v2681 = vmul.f32 1.0, %v2680
        %v2683 = vlaneseq
        %v2684 = vshrl.u32 %v2683, 7
        %v2685 = vsub.s32 0, %v2684
        %v2686 = vrot.slane %v2681, %v2685
        %v2687 = vlaneseq
        %v2688 = vshrl.u32 %v2687, 7
        %v2689 = vsub.s32 1, %v2688
        %v2690 = vrot.slane %v2681, %v2689
        %v2693 = vmul.f32 %v2686, %v2381
        %v2694 = vmul.f32 %v2690, %v2382
        %v2695 = vsub.f32 1.0, %v2681
        %v2697 = vlaneseq
        %v2698 = vshrl.u32 %v2697, 7
        %v2699 = vsub.s32 0, %v2698
        %v2700 = vrot.slane %v2695, %v2699
        %v2701 = vlaneseq
        %v2702 = vshrl.u32 %v2701, 7
        %v2703 = vsub.s32 1, %v2702
        %v2704 = vrot.slane %v2695, %v2703
        %v2707 = vmul.f32 %v2700, %v2383
        %v2708 = vmul.f32 %v2704, %v2384
        %v2709 = vadd.f32 %v2693, %v2707
        %v2710 = vadd.f32 %v2694, %v2708
        %v2713 = vunpack.c.l.b16 %v2632
        %v2714 = vunpack.c.l.b16 %v2633
        %v2715 = vpack.c.b16 %v2714, %v2713
        %2717 = vst [vmem:[%s723] sm:$0xff] %v2715
        %v2720 = vunpack.c.l.b16 %v2385
        %v2721 = vunpack.c.l.b16 %v2386
        %v2722 = vpack.c.b16 %v2721, %v2720
        %2724 = vst [vmem:[%s730] sm:$0xff] %v2722
        %v2725 = vpack.c.bf16 %v2709, %v2709
        %v2726 = vpack.c.bf16 %v2710, %v2710
        %v2729 = vunpack.c.l.b16 %v2725
        %v2730 = vunpack.c.l.b16 %v2726
        %v2731 = vpack.c.b16 %v2730, %v2729
        %2733 = vst [vmem:[%s737] sm:$0xff] %v2731
        %v2734 = vpack.c.bf16 %v2626, %v2626
        %v2735 = vpack.c.bf16 %v2628, %v2628
        %v2738 = vunpack.c.l.b16 %v2734
        %v2739 = vunpack.c.l.b16 %v2735
        %v2740 = vpack.c.b16 %v2739, %v2738
        %2742 = vst [vmem:[%s744] sm:$0xff] %v2740
        %v2743 = vpack.c.bf16 %v2669, %v2669
        %v2744 = vpack.c.bf16 %v2671, %v2671
        %v2747 = vunpack.c.l.b16 %v2743
        %v2748 = vunpack.c.l.b16 %v2744
        %v2749 = vpack.c.b16 %v2748, %v2747
        %2751 = vst [vmem:[%s751] sm:$0xff] %v2749
        %p2752 = scmp.eq.s32.totalorder %s55, 0
        // Predicated region
        $region85: #{tpu_custom_call.1} parent=67 // pred_check
          %p2753 = pneg %p2752
        $region86: #{tpu_custom_call.1} parent=67 // pred_check_branch
          %2755 = sbr.rel (%p2753) target = $region88
        $region87: #{tpu_custom_call.1} parent=67 // pred_region
          %v2756 = vlaneseq
          %vm2757 = vcmp.ge.s32.totalorder %v2756, 0
          %vm2758 = vcmp.lt.s32.totalorder %v2756, 256
          %vm2759 = vmand %vm2757, %vm2758
          %2760 = vst.msk [vmem:[%s758] sm:$0x3] %vm2759, 0.0
          %2761 = vst.msk [vmem:[%s765] sm:$0x3] %vm2759, 0.0
          %2762 = vst.msk [vmem:[%s772] sm:$0x3] %vm2759, 0.0
        $region88: #{tpu_custom_call.1} parent=67 // pred_fallthru
          _
        %v2763 = vld [vmem:[%s758] sm:$0x3]
        %v2764 = vrot.slane %v2381, 4
        %v2765 = vadd.f32 %v2381, %v2764
        %v2766 = vrot.slane %v2765, 2
        %v2767 = vadd.f32 %v2765, %v2766
        %v2768 = vrot.slane %v2767, 1
        %v2769 = vadd.f32 %v2767, %v2768
        %v2770 = vrot.slane %v2382, 4
        %v2771 = vadd.f32 %v2382, %v2770
        %v2772 = vrot.slane %v2771, 2
        %v2773 = vadd.f32 %v2771, %v2772
        %v2774 = vrot.slane %v2773, 1
        %v2775 = vadd.f32 %v2773, %v2774
        %v2778 = vcombine.low %v2769, %v2775
        %v2780 = vunpack.c.l.s4 1966171168
        %v2781 = vunpack.c.0.s8 %v2780
        %v2782 = vlaneseq
        %v2783 = vshrl.u32 %v2782, 7
        %v2784 = vsub.s32 %v2781, %v2783
        %v2785 = vrot.slane %v2778, %v2784
        %v2787 = vunpack.c.l.s4 1966171168
        %v2788 = vunpack.c.0.s8 %v2787
        %v2789 = vlaneseq
        %v2790 = vshrl.u32 %v2789, 7
        %v2791 = vsub.s32 %v2788, %v2790
        %v2792 = vrot.slane %v2785, %v2791
        %v2794 = vadd.f32 %v2763, %v2792
        %v2795 = vlaneseq
        %vm2796 = vcmp.ge.s32.totalorder %v2795, 0
        %vm2797 = vcmp.lt.s32.totalorder %v2795, 256
        %vm2798 = vmand %vm2796, %vm2797
        %2799 = vst.msk [vmem:[%s758] sm:$0x3] %vm2798, %v2794
        %v2800 = vld [vmem:[%s765] sm:$0x3]
        %v2801 = vrot.slane %v2383, 4
        %v2802 = vadd.f32 %v2383, %v2801
        %v2803 = vrot.slane %v2802, 2
        %v2804 = vadd.f32 %v2802, %v2803
        %v2805 = vrot.slane %v2804, 1
        %v2806 = vadd.f32 %v2804, %v2805
        %v2807 = vrot.slane %v2384, 4
        %v2808 = vadd.f32 %v2384, %v2807
        %v2809 = vrot.slane %v2808, 2
        %v2810 = vadd.f32 %v2808, %v2809
        %v2811 = vrot.slane %v2810, 1
        %v2812 = vadd.f32 %v2810, %v2811
        %v2815 = vcombine.low %v2806, %v2812
        %v2817 = vunpack.c.l.s4 1966171168
        %v2818 = vunpack.c.0.s8 %v2817
        %v2819 = vlaneseq
        %v2820 = vshrl.u32 %v2819, 7
        %v2821 = vsub.s32 %v2818, %v2820
        %v2822 = vrot.slane %v2815, %v2821
        %v2824 = vunpack.c.l.s4 1966171168
        %v2825 = vunpack.c.0.s8 %v2824
        %v2826 = vlaneseq
        %v2827 = vshrl.u32 %v2826, 7
        %v2828 = vsub.s32 %v2825, %v2827
        %v2829 = vrot.slane %v2822, %v2828
        %v2831 = vadd.f32 %v2800, %v2829
        %2832 = vst.msk [vmem:[%s765] sm:$0x3] %vm2798, %v2831
        %v2833 = vld [vmem:[%s772] sm:$0x3]
        %v2834 = vrot.slane %v2709, 4
        %v2835 = vadd.f32 %v2709, %v2834
        %v2836 = vrot.slane %v2835, 2
        %v2837 = vadd.f32 %v2835, %v2836
        %v2838 = vrot.slane %v2837, 1
        %v2839 = vadd.f32 %v2837, %v2838
        %v2840 = vrot.slane %v2710, 4
        %v2841 = vadd.f32 %v2710, %v2840
        %v2842 = vrot.slane %v2841, 2
        %v2843 = vadd.f32 %v2841, %v2842
        %v2844 = vrot.slane %v2843, 1
        %v2845 = vadd.f32 %v2843, %v2844
        %v2848 = vcombine.low %v2839, %v2845
        %v2850 = vunpack.c.l.s4 1966171168
        %v2851 = vunpack.c.0.s8 %v2850
        %v2852 = vlaneseq
        %v2853 = vshrl.u32 %v2852, 7
        %v2854 = vsub.s32 %v2851, %v2853
        %v2855 = vrot.slane %v2848, %v2854
        %v2857 = vunpack.c.l.s4 1966171168
        %v2858 = vunpack.c.0.s8 %v2857
        %v2859 = vlaneseq
        %v2860 = vshrl.u32 %v2859, 7
        %v2861 = vsub.s32 %v2858, %v2860
        %v2862 = vrot.slane %v2855, %v2861
        %v2864 = vadd.f32 %v2833, %v2862
        %2865 = vst.msk [vmem:[%s772] sm:$0x3] %vm2798, %v2864
        %s2866 = sand.u32 %s338, 1
        %s2867 = scalar_lea.sflag [#allocation5], %s2866
        %s2868 = sand.u32 %s338, 1
        %s2869 = smul.addr %s2868, 8
        %s2870 = scalar_lea.vmem [#allocation11], %s2869
        %s2871 = sand.u32 %s50, 1
        %s2872 = scalar_lea.sflag [#allocation13], %s2871
        %s2873 = sand.u32 %s366, 1
        %s2874 = smul.addr %s2873, 8
        %s2875 = scalar_lea.vmem [#allocation12], %s2874
        %s2876 = sand.u32 %s50, 1
        %s2877 = scalar_lea.sflag [#allocation13], %s2876
        %s2878 = sand.u32 %s394, 1
        %s2879 = smul.addr %s2878, 8
        %s2880 = scalar_lea.vmem [#allocation14], %s2879
        %s2881 = sand.u32 %s50, 1
        %s2882 = scalar_lea.sflag [#allocation16], %s2881
        %s2883 = sand.u32 %s422, 1
        %s2884 = smul.addr %s2883, 8
        %s2885 = scalar_lea.vmem [#allocation15], %s2884
        %s2886 = sand.u32 %s50, 1
        %s2887 = scalar_lea.sflag [#allocation16], %s2886
        %s2888 = sand.u32 %s450, 1
        %s2889 = smul.addr %s2888, 8
        %s2890 = scalar_lea.vmem [#allocation17], %s2889
        %s2891 = sand.u32 %s50, 1
        %s2892 = scalar_lea.sflag [#allocation19], %s2891
        %s2893 = sand.u32 %s476, 1
        %s2894 = smul.addr %s2893, 2
        %s2895 = scalar_lea.vmem [#allocation18], %s2894
        %s2896 = sand.u32 %s50, 1
        %s2897 = scalar_lea.sflag [#allocation19], %s2896
        %s2898 = sand.u32 %s502, 1
        %s2899 = smul.addr %s2898, 2
        %s2900 = scalar_lea.vmem [#allocation20], %s2899
        %s2901 = sand.u32 %s528, 1
        %s2902 = scalar_lea.sflag [#allocation22], %s2901
        %s2903 = sand.u32 %s528, 1
        %s2904 = smul.addr %s2903, 2
        %s2905 = scalar_lea.vmem [#allocation21], %s2904
        // Predicated region
        $region89: #{tpu_custom_call.1} parent=67 // pred_check
          %p2906 = pneg %p348
        $region90: #{tpu_custom_call.1} parent=67 // pred_check_branch
          %2908 = sbr.rel (%p2906) target = $region92
        $region91: #{tpu_custom_call.1} parent=67 // pred_region
          %s2910 = ssub.s32 128, 128
          %2911 = vsyncadd %s2867, %s2910
          %s2912 = smul.addr %s55, 2
          %s2913 = smul.addr %s54, 2
          %s2914 = sadd.s32 %s2912, %s2913
          %s2915 = smul.addr %s2914, 64
          %s2916 = scalar_lea.hbm %s12, %s2915
          %s2918 = sshll.u32 %s2870, 4
          %s2919 = int_to_ptr.vmem [resolvable:$true] %s2918
          %2921 = dma.vmem_to_hbm [thread:$0]  %s2919, 128, %s2916, %s2867
        $region92: #{tpu_custom_call.1} parent=67 // pred_fallthru
          _
        // Predicated region
        $region93: #{tpu_custom_call.1} parent=67 // pred_check
          %p2922 = pneg %p376
        $region94: #{tpu_custom_call.1} parent=67 // pred_check_branch
          %2924 = sbr.rel (%p2922) target = $region96
        $region95: #{tpu_custom_call.1} parent=67 // pred_region
          %s2926 = ssub.s32 128, 128
          %2927 = vsyncadd %s2872, %s2926
          %s2928 = smul.addr %s55, 2
          %s2929 = smul.addr %s54, 2
          %s2930 = sadd.s32 %s2928, %s2929
          %s2931 = smul.addr %s2930, 64
          %s2932 = scalar_lea.hbm %s13, %s2931
          %s2934 = sshll.u32 %s2875, 4
          %s2935 = int_to_ptr.vmem [resolvable:$true] %s2934
          %2937 = dma.vmem_to_hbm [thread:$0]  %s2935, 128, %s2932, %s2872
        $region96: #{tpu_custom_call.1} parent=67 // pred_fallthru
          _
        // Predicated region
        $region97: #{tpu_custom_call.1} parent=67 // pred_check
          %p2938 = pneg %p404
        $region98: #{tpu_custom_call.1} parent=67 // pred_check_branch
          %2940 = sbr.rel (%p2938) target = $region100
        $region99: #{tpu_custom_call.1} parent=67 // pred_region
          %s2942 = ssub.s32 128, 128
          %2943 = vsyncadd %s2877, %s2942
          %s2944 = smul.addr %s55, 2
          %s2945 = smul.addr %s54, 2
          %s2946 = sadd.s32 %s2944, %s2945
          %s2947 = smul.addr %s2946, 64
          %s2948 = scalar_lea.hbm %s14, %s2947
          %s2950 = sshll.u32 %s2880, 4
          %s2951 = int_to_ptr.vmem [resolvable:$true] %s2950
          %2953 = dma.vmem_to_hbm [thread:$0]  %s2951, 128, %s2948, %s2877
        $region100: #{tpu_custom_call.1} parent=67 // pred_fallthru
          _
        // Predicated region
        $region101: #{tpu_custom_call.1} parent=67 // pred_check
          %p2954 = pneg %p432
        $region102: #{tpu_custom_call.1} parent=67 // pred_check_branch
          %2956 = sbr.rel (%p2954) target = $region104
        $region103: #{tpu_custom_call.1} parent=67 // pred_region
          %s2958 = ssub.s32 128, 128
          %2959 = vsyncadd %s2882, %s2958
          %s2960 = smul.addr %s55, 2
          %s2961 = smul.addr %s54, 2
          %s2962 = sadd.s32 %s2960, %s2961
          %s2963 = smul.addr %s2962, 64
          %s2964 = scalar_lea.hbm %s15, %s2963
          %s2966 = sshll.u32 %s2885, 4
          %s2967 = int_to_ptr.vmem [resolvable:$true] %s2966
          %2969 = dma.vmem_to_hbm [thread:$0]  %s2967, 128, %s2964, %s2882
        $region104: #{tpu_custom_call.1} parent=67 // pred_fallthru
          _
        // Predicated region
        $region105: #{tpu_custom_call.1} parent=67 // pred_check
          %p2970 = pneg %p460
        $region106: #{tpu_custom_call.1} parent=67 // pred_check_branch
          %2972 = sbr.rel (%p2970) target = $region108
        $region107: #{tpu_custom_call.1} parent=67 // pred_region
          %s2974 = ssub.s32 128, 128
          %2975 = vsyncadd %s2887, %s2974
          %s2976 = smul.addr %s55, 2
          %s2977 = smul.addr %s54, 2
          %s2978 = sadd.s32 %s2976, %s2977
          %s2979 = smul.addr %s2978, 64
          %s2980 = scalar_lea.hbm %s16, %s2979
          %s2982 = sshll.u32 %s2890, 4
          %s2983 = int_to_ptr.vmem [resolvable:$true] %s2982
          %2985 = dma.vmem_to_hbm [thread:$0]  %s2983, 128, %s2980, %s2887
        $region108: #{tpu_custom_call.1} parent=67 // pred_fallthru
          _
        // Predicated region
        $region109: #{tpu_custom_call.1} parent=67 // pred_check
          %p2986 = pneg %p486
        $region110: #{tpu_custom_call.1} parent=67 // pred_check_branch
          %2988 = sbr.rel (%p2986) target = $region112
        $region111: #{tpu_custom_call.1} parent=67 // pred_region
          %s2990 = ssub.s32 32, 32
          %2991 = vsyncadd %s2892, %s2990
          %s2992 = smul.addr %s54, 2
          %s2993 = smul.addr %s2992, 16
          %s2994 = scalar_lea.hbm %s17, %s2993
          %s2996 = sshll.u32 %s2895, 4
          %s2997 = int_to_ptr.vmem [resolvable:$true] %s2996
          %2999 = dma.vmem_to_hbm [thread:$0]  %s2997, 32, %s2994, %s2892
        $region112: #{tpu_custom_call.1} parent=67 // pred_fallthru
          _
        // Predicated region
        $region113: #{tpu_custom_call.1} parent=67 // pred_check
          %p3000 = pneg %p512
        $region114: #{tpu_custom_call.1} parent=67 // pred_check_branch
          %3002 = sbr.rel (%p3000) target = $region116
        $region115: #{tpu_custom_call.1} parent=67 // pred_region
          %s3004 = ssub.s32 32, 32
          %3005 = vsyncadd %s2897, %s3004
          %s3006 = smul.addr %s54, 2
          %s3007 = smul.addr %s3006, 16
          %s3008 = scalar_lea.hbm %s18, %s3007
          %s3010 = sshll.u32 %s2900, 4
          %s3011 = int_to_ptr.vmem [resolvable:$true] %s3010
          %3013 = dma.vmem_to_hbm [thread:$0]  %s3011, 32, %s3008, %s2897
        $region116: #{tpu_custom_call.1} parent=67 // pred_fallthru
          _
        // Predicated region
        $region117: #{tpu_custom_call.1} parent=67 // pred_check
          %p3014 = pneg %p538
        $region118: #{tpu_custom_call.1} parent=67 // pred_check_branch
          %3016 = sbr.rel (%p3014) target = $region120
        $region119: #{tpu_custom_call.1} parent=67 // pred_region
          %s3018 = ssub.s32 32, 32
          %3019 = vsyncadd %s2902, %s3018
          %s3020 = smul.addr %s54, 2
          %s3021 = smul.addr %s3020, 16
          %s3022 = scalar_lea.hbm %s19, %s3021
          %s3024 = sshll.u32 %s2905, 4
          %s3025 = int_to_ptr.vmem [resolvable:$true] %s3024
          %3027 = dma.vmem_to_hbm [thread:$0]  %s3025, 32, %s3022, %s2902
        $region120: #{tpu_custom_call.1} parent=67 // pred_fallthru
          _
      $region68: #{tpu_custom_call.1} parent=5 // pred_fallthru
        _
      %p3028 = scmp.le.s32.totalorder 2, %s45
      // Predicated region
      $region121: #{tpu_custom_call.1} parent=5 // pred_check
        %p3029 = pneg %p3028
      $region122: #{tpu_custom_call.1} parent=5 // pred_check_branch
        %3031 = sbr.rel (%p3029) target = $region124
      $region123: #{tpu_custom_call.1} parent=5 // pred_region
        %s3032 = ssub.s32 %s45, 2
        // Predicated region
        $region125: #{tpu_custom_call.1} parent=123 // pred_check
          %p3033 = pneg %p354
        $region126: #{tpu_custom_call.1} parent=123 // pred_check_branch
          %3035 = sbr.rel (%p3033) target = $region128
        $region127: #{tpu_custom_call.1} parent=123 // pred_region
          %s3036 = sand.u32 %s339, 1
          %s3037 = scalar_lea.sflag [#allocation5], %s3036
          %s3038 = sand.u32 %s339, 1
          %s3039 = smul.addr %s3038, 8
          %s3040 = scalar_lea.vmem [#allocation11], %s3039
          %3041 = dma.done %s3037, 128
        $region128: #{tpu_custom_call.1} parent=123 // pred_fallthru
          _
        // Predicated region
        $region129: #{tpu_custom_call.1} parent=123 // pred_check
          %p3042 = pneg %p382
        $region130: #{tpu_custom_call.1} parent=123 // pred_check_branch
          %3044 = sbr.rel (%p3042) target = $region132
        $region131: #{tpu_custom_call.1} parent=123 // pred_region
          %s3045 = sand.u32 %s51, 1
          %s3046 = scalar_lea.sflag [#allocation13], %s3045
          %s3047 = sand.u32 %s367, 1
          %s3048 = smul.addr %s3047, 8
          %s3049 = scalar_lea.vmem [#allocation12], %s3048
          %3050 = dma.done %s3046, 128
        $region132: #{tpu_custom_call.1} parent=123 // pred_fallthru
          _
        // Predicated region
        $region133: #{tpu_custom_call.1} parent=123 // pred_check
          %p3051 = pneg %p410
        $region134: #{tpu_custom_call.1} parent=123 // pred_check_branch
          %3053 = sbr.rel (%p3051) target = $region136
        $region135: #{tpu_custom_call.1} parent=123 // pred_region
          %s3054 = sand.u32 %s51, 1
          %s3055 = scalar_lea.sflag [#allocation13], %s3054
          %s3056 = sand.u32 %s395, 1
          %s3057 = smul.addr %s3056, 8
          %s3058 = scalar_lea.vmem [#allocation14], %s3057
          %3059 = dma.done %s3055, 128
        $region136: #{tpu_custom_call.1} parent=123 // pred_fallthru
          _
        // Predicated region
        $region137: #{tpu_custom_call.1} parent=123 // pred_check
          %p3060 = pneg %p438
        $region138: #{tpu_custom_call.1} parent=123 // pred_check_branch
          %3062 = sbr.rel (%p3060) target = $region140
        $region139: #{tpu_custom_call.1} parent=123 // pred_region
          %s3063 = sand.u32 %s51, 1
          %s3064 = scalar_lea.sflag [#allocation16], %s3063
          %s3065 = sand.u32 %s423, 1
          %s3066 = smul.addr %s3065, 8
          %s3067 = scalar_lea.vmem [#allocation15], %s3066
          %3068 = dma.done %s3064, 128
        $region140: #{tpu_custom_call.1} parent=123 // pred_fallthru
          _
        // Predicated region
        $region141: #{tpu_custom_call.1} parent=123 // pred_check
          %p3069 = pneg %p466
        $region142: #{tpu_custom_call.1} parent=123 // pred_check_branch
          %3071 = sbr.rel (%p3069) target = $region144
        $region143: #{tpu_custom_call.1} parent=123 // pred_region
          %s3072 = sand.u32 %s51, 1
          %s3073 = scalar_lea.sflag [#allocation16], %s3072
          %s3074 = sand.u32 %s451, 1
          %s3075 = smul.addr %s3074, 8
          %s3076 = scalar_lea.vmem [#allocation17], %s3075
          %3077 = dma.done %s3073, 128
        $region144: #{tpu_custom_call.1} parent=123 // pred_fallthru
          _
        // Predicated region
        $region145: #{tpu_custom_call.1} parent=123 // pred_check
          %p3078 = pneg %p492
        $region146: #{tpu_custom_call.1} parent=123 // pred_check_branch
          %3080 = sbr.rel (%p3078) target = $region148
        $region147: #{tpu_custom_call.1} parent=123 // pred_region
          %s3081 = sand.u32 %s51, 1
          %s3082 = scalar_lea.sflag [#allocation19], %s3081
          %s3083 = sand.u32 %s477, 1
          %s3084 = smul.addr %s3083, 2
          %s3085 = scalar_lea.vmem [#allocation18], %s3084
          %3086 = dma.done %s3082, 32
        $region148: #{tpu_custom_call.1} parent=123 // pred_fallthru
          _
        // Predicated region
        $region149: #{tpu_custom_call.1} parent=123 // pred_check
          %p3087 = pneg %p518
        $region150: #{tpu_custom_call.1} parent=123 // pred_check_branch
          %3089 = sbr.rel (%p3087) target = $region152
        $region151: #{tpu_custom_call.1} parent=123 // pred_region
          %s3090 = sand.u32 %s51, 1
          %s3091 = scalar_lea.sflag [#allocation19], %s3090
          %s3092 = sand.u32 %s503, 1
          %s3093 = smul.addr %s3092, 2
          %s3094 = scalar_lea.vmem [#allocation20], %s3093
          %3095 = dma.done %s3091, 32
        $region152: #{tpu_custom_call.1} parent=123 // pred_fallthru
          _
        // Predicated region
        $region153: #{tpu_custom_call.1} parent=123 // pred_check
          %p3096 = pneg %p544
        $region154: #{tpu_custom_call.1} parent=123 // pred_check_branch
          %3098 = sbr.rel (%p3096) target = $region156
        $region155: #{tpu_custom_call.1} parent=123 // pred_region
          %s3099 = sand.u32 %s529, 1
          %s3100 = scalar_lea.sflag [#allocation22], %s3099
          %s3101 = sand.u32 %s529, 1
          %s3102 = smul.addr %s3101, 2
          %s3103 = scalar_lea.vmem [#allocation21], %s3102
          %3104 = dma.done %s3100, 32
        $region156: #{tpu_custom_call.1} parent=123 // pred_fallthru
          _
      $region124: #{tpu_custom_call.1} parent=5 // pred_fallthru
        _
    $region6: #{tpu_custom_call.1} parent=1 // loop_footer
      %s49 = sadd.s32 1, %s45
    $region7: #{tpu_custom_call.1} parent=1 // loop_footer_branch
      %44 = sbr.rel target = $region3
    $region8: #{tpu_custom_call.1} parent=1 // loop_exit
      _
    %3105 = vsyncpa [#allocation4], 1
    %s3106 = scalar_lea.sflag [#allocation4], 1
    %3107 = vsyncpa %s3106, 1
    %3108 = vsyncpa [#allocation7], 1
    %3109 = vsyncpa [#allocation10], 1
    %3110 = vsyncpa [#allocation5], 1
    %s3111 = scalar_lea.sflag [#allocation5], 1
    %3112 = vsyncpa %s3111, 1
    %3113 = vsyncpa [#allocation13], 1
    %s3114 = scalar_lea.sflag [#allocation13], 1
    %3115 = vsyncpa %s3114, 1
    %3116 = vsyncpa [#allocation16], 1
    %s3117 = scalar_lea.sflag [#allocation16], 1
    %3118 = vsyncpa %s3117, 1
    %3119 = vsyncpa [#allocation19], 1
    %s3120 = scalar_lea.sflag [#allocation19], 1
    %3121 = vsyncpa %s3120, 1
    %3122 = vsyncpa [#allocation22], 1
    %s3123 = scalar_lea.sflag [#allocation22], 1
    %3124 = vsyncpa %s3123, 1

</llo_original>
